<compile_context>
chip_gen: v5e
topology: v5e:2x2
jax: 0.10.0
libtpu: 0.0.40
codegen_flags: <defaults>
</compile_context>

<pallas_src>
import math
from functools import partial, reduce
from operator import mul

import jax
import jax.numpy as jnp
from jax import lax
from jax.experimental import pallas as pl
from jax.experimental.pallas import tpu as pltpu


# ----------------------------- tiling helper ---------------------------------

def _pick_tile(dim, target, align):
    """Largest t <= target with t % align == 0 and dim % t == 0, else full dim."""
    if dim <= target:
        return dim
    t = (target // align) * align
    while t >= align:
        if dim % t == 0:
            return t
        t -= align
    return dim  # fall back to a single full block (still correct, less pipelined)


# ------------------- fused LN + matmul + epilogue kernel ----------------------

def _linear_kernel(*refs, nk, has_ln, has_bias, has_res, activation, ln_eps):
    it = iter(refs)
    x_ref = next(it)
    w_ref = next(it)
    g_ref = next(it) if has_ln else None
    bln_ref = next(it) if has_ln else None
    bias_ref = next(it) if has_bias else None
    res_ref = next(it) if has_res else None
    o_ref = next(it)
    acc_ref = next(it)

    @pl.when(pl.program_id(2) == 0)
    def _init():
        acc_ref[...] = jnp.zeros_like(acc_ref)

    x = x_ref[...]
    if has_ln:  # LN over the full K row (K is untiled whenever LN is fused)
        xf = x.astype(jnp.float32)
        mean = jnp.mean(xf, axis=-1, keepdims=True)
        var = jnp.mean((xf - mean) ** 2, axis=-1, keepdims=True)
        xf = (xf - mean) * lax.rsqrt(var + ln_eps)
        xf = xf * g_ref[...].astype(jnp.float32) + bln_ref[...].astype(jnp.float32)
        x = xf.astype(w_ref.dtype)

    acc_ref[...] += jnp.dot(x, w_ref[...], preferred_element_type=jnp.float32)

    @pl.when(pl.program_id(2) == nk - 1)
    def _finalize():
        acc = acc_ref[...]
        if has_bias:
            acc = acc + bias_ref[...].astype(jnp.float32)
        if activation == "quick_gelu":  # CLIP QuickGELU: x * sigmoid(1.702 x)
            acc = acc * jax.nn.sigmoid(1.702 * acc)
        if has_res:
            acc = acc + res_ref[...].astype(jnp.float32)
        o_ref[...] = acc.astype(o_ref.dtype)


def pallas_linear(x, w, bias=None, ln=None, residual=None, activation=None,
                  out_dtype=jnp.bfloat16, ln_eps=1e-5, tm=256, tn=256, tk=512):
    """out = [residual +] act(LN(x) @ w + bias); w stored (K, N)-major."""
    M, K = x.shape
    K2, N = w.shape
    assert K == K2
    has_ln = ln is not None
    has_bias = bias is not None
    has_res = residual is not None

    tm = _pick_tile(M, tm, 8)
    tn = _pick_tile(N, tn, 128)
    tk = K if has_ln else _pick_tile(K, tk, 128)  # LN needs the whole row
    nk = K // tk
    grid = (M // tm, N // tn, nk)

    in_specs = [
        pl.BlockSpec((tm, tk), lambda i, j, k: (i, k)),
        pl.BlockSpec((tk, tn), lambda i, j, k: (k, j)),
    ]
    args = [x, w]
    if has_ln:
        g, b = ln
        in_specs += [pl.BlockSpec((1, tk), lambda i, j, k: (0, k)),
                     pl.BlockSpec((1, tk), lambda i, j, k: (0, k))]
        args += [g.reshape(1, K), b.reshape(1, K)]
    if has_bias:
        in_specs.append(pl.BlockSpec((1, tn), lambda i, j, k: (0, j)))
        args.append(bias.reshape(1, N))
    if has_res:
        in_specs.append(pl.BlockSpec((tm, tn), lambda i, j, k: (i, j)))
        args.append(residual)

    kernel = partial(_linear_kernel, nk=nk, has_ln=has_ln, has_bias=has_bias,
                     has_res=has_res, activation=activation, ln_eps=ln_eps)
    return pl.pallas_call(
        kernel,
        out_shape=jax.ShapeDtypeStruct((M, N), out_dtype),
        grid=grid,
        in_specs=in_specs,
        out_specs=pl.BlockSpec((tm, tn), lambda i, j, k: (i, j)),
        scratch_shapes=[pltpu.VMEM((tm, tn), jnp.float32)],
        compiler_params=pltpu.CompilerParams(
            dimension_semantics=("parallel", "parallel", "arbitrary")),
    )(*args)


# --------------------- standalone LayerNorm (ln_pre only) ---------------------

def _layernorm_kernel(x_ref, g_ref, b_ref, o_ref, *, eps):
    x = x_ref[...].astype(jnp.float32)
    mean = jnp.mean(x, axis=-1, keepdims=True)
    var = jnp.mean((x - mean) ** 2, axis=-1, keepdims=True)
    y = (x - mean) * lax.rsqrt(var + eps)
    y = y * g_ref[...].astype(jnp.float32) + b_ref[...].astype(jnp.float32)
    o_ref[...] = y.astype(o_ref.dtype)


def pallas_layernorm(x2d, gamma, beta, eps=1e-5, out_dtype=jnp.bfloat16, tm=512):
    M, D = x2d.shape
    tm = _pick_tile(M, tm, 8)
    return pl.pallas_call(
        partial(_layernorm_kernel, eps=eps),
        out_shape=jax.ShapeDtypeStruct((M, D), out_dtype),
        grid=(M // tm,),
        in_specs=[pl.BlockSpec((tm, D), lambda i: (i, 0)),
                  pl.BlockSpec((1, D), lambda i: (0, 0)),
                  pl.BlockSpec((1, D), lambda i: (0, 0))],
        out_specs=pl.BlockSpec((tm, D), lambda i: (i, 0)),
        compiler_params=pltpu.CompilerParams(dimension_semantics=("parallel",)),
    )(x2d, gamma.reshape(1, D), beta.reshape(1, D))


# -------------------------- multi-head attention ------------------------------

def _attention_kernel(qkv_ref, o_ref, *, num_heads, scale):
    D = o_ref.shape[2]
    dh = D // num_heads
    qkv = qkv_ref[0]                              # (L, 3D), one dense load
    outs = []
    for h in range(num_heads):                    # static unrolled head loop
        q = qkv[:, h * dh:(h + 1) * dh]
        k = qkv[:, D + h * dh:D + (h + 1) * dh]
        v = qkv[:, 2 * D + h * dh:2 * D + (h + 1) * dh]
        # contract the head dims directly (no explicit k.T relayout)
        s = lax.dot_general(q, k, (((1,), (1,)), ((), ())),
                            preferred_element_type=jnp.float32) * scale
        s = s - jnp.max(s, axis=-1, keepdims=True)
        p = jnp.exp(s)
        p = p * pl.reciprocal(jnp.sum(p, axis=-1, keepdims=True), approx=True)
        outs.append(jnp.dot(p.astype(v.dtype), v,
                            preferred_element_type=jnp.float32))
    # single lane-dense store of the full (L, D) head-concatenated output
    o_ref[0] = jnp.concatenate(outs, axis=-1).astype(o_ref.dtype)


def pallas_attention(qkv, num_heads):
    """qkv: (B, L, 3D) with [q;k;v] concatenated on the last dim -> (B, L, D)."""
    B, L, threeD = qkv.shape
    D = threeD // 3
    scale = 1.0 / math.sqrt(D // num_heads)
    return pl.pallas_call(
        partial(_attention_kernel, num_heads=num_heads, scale=scale),
        out_shape=jax.ShapeDtypeStruct((B, L, D), qkv.dtype),
        grid=(B,),
        in_specs=[pl.BlockSpec((1, L, threeD), lambda b: (b, 0, 0))],
        out_specs=pl.BlockSpec((1, L, D), lambda b: (b, 0, 0)),
        compiler_params=pltpu.CompilerParams(dimension_semantics=("parallel",)),
    )(qkv)


# ------------------------------ model glue ------------------------------------

def residual_attention_block(x, p, num_heads):
    B, L, D = x.shape
    x2d = x.reshape(B * L, D)
    # attention branch: ln_1 fused into the QKV projection
    qkv = pallas_linear(x2d, p["w_in"], bias=p["b_in"],
                        ln=(p["ln1_g"], p["ln1_b"]))                 # (B*L, 3D)
    attn = pallas_attention(qkv.reshape(B, L, 3 * D), num_heads)     # (B, L, D)
    # output projection with the residual add fused into the epilogue
    x2d = pallas_linear(attn.reshape(B * L, D), p["w_out"], bias=p["b_out"],
                        residual=x2d)
    # MLP branch: ln_2 fused into fc1 (+QuickGELU); residual fused into fc2
    h = pallas_linear(x2d, p["w_fc1"], bias=p["b_fc1"],
                      ln=(p["ln2_g"], p["ln2_b"]), activation="quick_gelu")
    x2d = pallas_linear(h, p["w_fc2"], bias=p["b_fc2"], residual=x2d)
    return x2d.reshape(B, L, D)


def encode_image(image, params, cfg):
    B, C, H, W = image.shape
    P, D = cfg["patch"], cfg["width"]
    gh, gw = H // P, W // P
    nP = gh * gw
    # conv1: kernel == stride == patch, no padding, no bias -> patchify + matmul
    patches = image.reshape(B, C, gh, P, gw, P).transpose(0, 2, 4, 1, 3, 5)
    patches = patches.reshape(B * nP, C * P * P).astype(jnp.bfloat16)
    x = pallas_linear(patches, params["conv_w"]).reshape(B, nP, D)   # no bias
    # class token + positional embedding (tiny, plain JAX)
    cls = jnp.broadcast_to(params["class_emb"].reshape(1, 1, D), (B, 1, D))
    x = jnp.concatenate([cls, x.astype(jnp.float32)], axis=1)
    x = x + params["pos_emb"][None, :, :]
    # VPT: prompt tokens right after the class token (prompt_proj is Identity)
    if cfg["vp_len"] > 0:
        prompts = jnp.broadcast_to(params["prompt_emb"], (B, cfg["vp_len"], D))
        x = jnp.concatenate([x[:, :1, :], prompts, x[:, 1:, :]], axis=1)
    x = x.astype(jnp.bfloat16)
    B, L, D = x.shape
    # ln_pre (standalone: its output is the residual stream)
    x = pallas_layernorm(x.reshape(B * L, D),
                         params["ln_pre_g"], params["ln_pre_b"]).reshape(B, L, D)
    # transformer (PyTorch's (B,L,D)<->(L,B,D) permutes are mathematical no-ops)
    for p in params["blocks"]:
        x = residual_attention_block(x, p, cfg["heads"])
    # ln_post on the class token fused into the final projection
    cls_tok = x[:, 0, :]
    return pallas_linear(cls_tok, params["proj"],
                         ln=(params["ln_post_g"], params["ln_post_b"]),
                         out_dtype=jnp.float32)


# ------------------------------ init / main ------------------------------------

def init_params(key, cfg):
    D, P, C = cfg["width"], cfg["patch"], 3
    layers, out_dim = cfg["layers"], cfg["out_dim"]
    nP = (cfg["resolution"] // P) ** 2
    ks = jax.random.split(key, 8 + layers)

    def nrm(k, shape, scale=0.02, dtype=jnp.bfloat16):
        return (scale * jax.random.normal(k, shape, jnp.float32)).astype(dtype)

    params = {
        # all matmul weights stored pre-transposed (K, N): no .T at call time
        "conv_w": nrm(ks[0], (C * P * P, D)),
        "class_emb": nrm(ks[1], (D,), dtype=jnp.float32),
        "pos_emb": nrm(ks[2], (1 + nP, D), dtype=jnp.float32),
        "ln_pre_g": jnp.ones((D,), jnp.float32), "ln_pre_b": jnp.zeros((D,), jnp.float32),
        "ln_post_g": jnp.ones((D,), jnp.float32), "ln_post_b": jnp.zeros((D,), jnp.float32),
        "proj": nrm(ks[3], (D, out_dim)),
    }
    # VPT prompt embeddings: uniform(-val, val), val as in the PyTorch module
    grid = (cfg["resolution"] - P + 2 * 0) // P + 1
    val = math.sqrt(6.0 / float(3 * reduce(mul, [grid, grid], 1) + D))
    params["prompt_emb"] = jax.random.uniform(
        ks[4], (1, cfg["vp_len"], D), minval=-val, maxval=val).astype(jnp.float32)

    blocks = []
    for i in range(layers):
        bk = jax.random.split(ks[8 + i], 4)
        blocks.append({
            "ln1_g": jnp.ones((D,), jnp.float32), "ln1_b": jnp.zeros((D,), jnp.float32),
            "ln2_g": jnp.ones((D,), jnp.float32), "ln2_b": jnp.zeros((D,), jnp.float32),
            "w_in": nrm(bk[0], (D, 3 * D)), "b_in": jnp.zeros((3 * D,), jnp.float32),
            "w_out": nrm(bk[1], (D, D)), "b_out": jnp.zeros((D,), jnp.float32),
            "w_fc1": nrm(bk[2], (D, 4 * D)), "b_fc1": jnp.zeros((4 * D,), jnp.float32),
            "w_fc2": nrm(bk[3], (4 * D, D)), "b_fc2": jnp.zeros((D,), jnp.float32),
        })
    params["blocks"] = blocks
    return params


if __name__ == "__main__":
    cfg = dict(resolution=16, patch=4, width=32, heads=4, layers=2, out_dim=16, vp_len=4)
    key = jax.random.PRNGKey(0)
    pkey, ikey = jax.random.split(key)
    params = init_params(pkey, cfg)
    image = jax.random.normal(ikey, (2, 3, cfg["resolution"], cfg["resolution"]), jnp.float32)
    fwd = jax.jit(partial(encode_image, cfg=cfg))
    out = fwd(image, params)
    jax.block_until_ready(out)
    assert out.shape == (2, cfg["out_dim"]), out.shape
    print("KERNEL_OK")
</pallas_src>

<mosaic_0001>
module attributes {stable_mosaic.version = 11 : i64} {
  func.func @_linear_kernel(%arg0: i32, %arg1: i32, %arg2: i32, %arg3: memref<32x48xbf16, #tpu.memory_space<vmem>>, %arg4: memref<48x32xbf16, #tpu.memory_space<vmem>>, %arg5: memref<32x32xbf16, #tpu.memory_space<vmem>>, %arg6: memref<32x32xf32, #tpu.memory_space<vmem>>) attributes {dimension_semantics = [#tpu.dimension_semantics<parallel>, #tpu.dimension_semantics<parallel>, #tpu.dimension_semantics<arbitrary>], iteration_bounds = array<i64: 1, 1, 1>, scalar_prefetch = 0 : i64, scratch_operands = 1 : i64, tpu.core_type = #tpu.core_type<tc>, window_params = [{transform_indices = @transform_0, window_bounds = array<i64: 32, 48>}, {transform_indices = @transform_1, window_bounds = array<i64: 48, 32>}, {transform_indices = @transform_2, window_bounds = array<i64: 32, 32>}]} {
    %c0_i32 = arith.constant 0 : i32
    %0 = arith.cmpi eq, %arg2, %c0_i32 : i32
    %1 = arith.extui %0 : i1 to i32
    %c0_i32_0 = arith.constant 0 : i32
    %2 = arith.cmpi ne, %1, %c0_i32_0 : i32
    scf.if %2 {
      %cst_10 = arith.constant 0.000000e+00 : f32
      %12 = vector.broadcast %cst_10 : f32 to vector<32x32xf32>
      %c0_11 = arith.constant 0 : index
      %c0_12 = arith.constant 0 : index
      %13 = vector.load %arg6[%c0_11, %c0_12] : memref<32x32xf32, #tpu.memory_space<vmem>>, vector<32x32xf32>
      tpu.vector_store %arg6[%c0_11, %c0_12], %12 {strides = array<i32>} : memref<32x32xf32, #tpu.memory_space<vmem>>, vector<32x32xf32>,
    } else {
    }
    %c0 = arith.constant 0 : index
    %c0_1 = arith.constant 0 : index
    %3 = vector.load %arg3[%c0, %c0_1] : memref<32x48xbf16, #tpu.memory_space<vmem>>, vector<32x48xbf16>
    %c0_2 = arith.constant 0 : index
    %c0_3 = arith.constant 0 : index
    %4 = vector.load %arg6[%c0_2, %c0_3] : memref<32x32xf32, #tpu.memory_space<vmem>>, vector<32x32xf32>
    %c0_4 = arith.constant 0 : index
    %c0_5 = arith.constant 0 : index
    %5 = vector.load %arg4[%c0_4, %c0_5] : memref<48x32xbf16, #tpu.memory_space<vmem>>, vector<48x32xbf16>
    %cst = arith.constant dense<0.000000e+00> : vector<32x32xf32>
    %6 = tpu.matmul %3, %5, %cst {dimension_numbers = #tpu.dot_dimension_numbers<[1], [0], [0], [1], [0, 0, 1, 1], [], []>} : vector<32x48xbf16>, vector<48x32xbf16>, vector<32x32xf32> -> vector<32x32xf32>
    %7 = arith.addf %4, %6 : vector<32x32xf32>
    %c0_6 = arith.constant 0 : index
    %c0_7 = arith.constant 0 : index
    %8 = vector.load %arg6[%c0_6, %c0_7] : memref<32x32xf32, #tpu.memory_space<vmem>>, vector<32x32xf32>
    tpu.vector_store %arg6[%c0_6, %c0_7], %7 {strides = array<i32>} : memref<32x32xf32, #tpu.memory_space<vmem>>, vector<32x32xf32>,
    %c0_i32_8 = arith.constant 0 : i32
    %9 = arith.cmpi eq, %arg2, %c0_i32_8 : i32
    %10 = arith.extui %9 : i1 to i32
    %c0_i32_9 = arith.constant 0 : i32
    %11 = arith.cmpi ne, %10, %c0_i32_9 : i32
    scf.if %11 {
      %c0_10 = arith.constant 0 : index
      %c0_11 = arith.constant 0 : index
      %12 = vector.load %arg6[%c0_10, %c0_11] : memref<32x32xf32, #tpu.memory_space<vmem>>, vector<32x32xf32>
      %13 = arith.truncf %12 : vector<32x32xf32> to vector<32x32xbf16>
      %c0_12 = arith.constant 0 : index
      %c0_13 = arith.constant 0 : index
      %14 = vector.load %arg5[%c0_12, %c0_13] : memref<32x32xbf16, #tpu.memory_space<vmem>>, vector<32x32xbf16>
      tpu.vector_store %arg5[%c0_12, %c0_13], %13 {strides = array<i32>} : memref<32x32xbf16, #tpu.memory_space<vmem>>, vector<32x32xbf16>,
    } else {
    }
    return
  }
  func.func @transform_0(%arg0: i32, %arg1: i32, %arg2: i32) -> (i32, i32) {
    %c0_i32 = arith.constant 0 : i32
    return %arg0, %arg2 : i32, i32
  }
  func.func @transform_1(%arg0: i32, %arg1: i32, %arg2: i32) -> (i32, i32) {
    %c0_i32 = arith.constant 0 : i32
    return %arg2, %arg1 : i32, i32
  }
  func.func @transform_2(%arg0: i32, %arg1: i32, %arg2: i32) -> (i32, i32) {
    %c0_i32 = arith.constant 0 : i32
    return %arg0, %arg1 : i32, i32
  }
}

module attributes {stable_mosaic.version = 11 : i64} {
  func.func @_layernorm_kernel(%arg0: i32, %arg1: memref<42x32xbf16, #tpu.memory_space<vmem>>, %arg2: memref<1x32xf32, #tpu.memory_space<vmem>>, %arg3: memref<1x32xf32, #tpu.memory_space<vmem>>, %arg4: memref<42x32xbf16, #tpu.memory_space<vmem>>) attributes {dimension_semantics = [#tpu.dimension_semantics<parallel>], iteration_bounds = array<i64: 1>, scalar_prefetch = 0 : i64, scratch_operands = 0 : i64, tpu.core_type = #tpu.core_type<tc>, window_params = [{transform_indices = @transform_0, window_bounds = array<i64: 42, 32>}, {pipeline_mode = #tpu.pipeline_mode<synchronous>, transform_indices = @transform_1, window_bounds = array<i64: 1, 32>}, {pipeline_mode = #tpu.pipeline_mode<synchronous>, transform_indices = @transform_2, window_bounds = array<i64: 1, 32>}, {transform_indices = @transform_3, window_bounds = array<i64: 42, 32>}]} {
    %c0 = arith.constant 0 : index
    %c0_0 = arith.constant 0 : index
    %0 = vector.load %arg1[%c0, %c0_0] : memref<42x32xbf16, #tpu.memory_space<vmem>>, vector<42x32xbf16>
    %1 = arith.extf %0 : vector<42x32xbf16> to vector<42x32xf32>
    %cst = arith.constant dense<0.000000e+00> : vector<42xf32>
    %2 = vector.multi_reduction <add>, %1, %cst [1] : vector<42x32xf32> to vector<42xf32>
    %3 = vector.shape_cast %2 : vector<42xf32> to vector<42x1xf32>
    %cst_1 = arith.constant 3.200000e+01 : f32
    %4 = vector.broadcast %cst_1 : f32 to vector<42x1xf32>
    %5 = arith.divf %3, %4 : vector<42x1xf32>
    %6 = vector.broadcast %5 : vector<42x1xf32> to vector<42x32xf32>
    %7 = arith.subf %1, %6 : vector<42x32xf32>
    %8 = arith.mulf %7, %7 : vector<42x32xf32>
    %cst_2 = arith.constant dense<0.000000e+00> : vector<42xf32>
    %9 = vector.multi_reduction <add>, %8, %cst_2 [1] : vector<42x32xf32> to vector<42xf32>
    %10 = vector.shape_cast %9 : vector<42xf32> to vector<42x1xf32>
    %cst_3 = arith.constant 3.200000e+01 : f32
    %11 = vector.broadcast %cst_3 : f32 to vector<42x1xf32>
    %12 = arith.divf %10, %11 : vector<42x1xf32>
    %13 = vector.broadcast %5 : vector<42x1xf32> to vector<42x32xf32>
    %14 = arith.subf %1, %13 : vector<42x32xf32>
    %cst_4 = arith.constant 9.99999974E-6 : f32
    %15 = vector.broadcast %cst_4 : f32 to vector<42x1xf32>
    %16 = arith.addf %12, %15 : vector<42x1xf32>
    %17 = math.rsqrt %16 : vector<42x1xf32>
    %18 = vector.broadcast %17 : vector<42x1xf32> to vector<42x32xf32>
    %19 = arith.mulf %14, %18 : vector<42x32xf32>
    %c0_5 = arith.constant 0 : index
    %c0_6 = arith.constant 0 : index
    %20 = vector.load %arg2[%c0_5, %c0_6] : memref<1x32xf32, #tpu.memory_space<vmem>>, vector<1x32xf32>
    %21 = vector.broadcast %20 : vector<1x32xf32> to vector<42x32xf32>
    %22 = arith.mulf %19, %21 : vector<42x32xf32>
    %c0_7 = arith.constant 0 : index
    %c0_8 = arith.constant 0 : index
    %23 = vector.load %arg3[%c0_7, %c0_8] : memref<1x32xf32, #tpu.memory_space<vmem>>, vector<1x32xf32>
    %24 = vector.broadcast %23 : vector<1x32xf32> to vector<42x32xf32>
    %25 = arith.addf %22, %24 : vector<42x32xf32>
    %26 = arith.truncf %25 : vector<42x32xf32> to vector<42x32xbf16>
    %c0_9 = arith.constant 0 : index
    %c0_10 = arith.constant 0 : index
    %27 = vector.load %arg4[%c0_9, %c0_10] : memref<42x32xbf16, #tpu.memory_space<vmem>>, vector<42x32xbf16>
    tpu.vector_store %arg4[%c0_9, %c0_10], %26 {strides = array<i32>} : memref<42x32xbf16, #tpu.memory_space<vmem>>, vector<42x32xbf16>,
    return
  }
  func.func @transform_0(%arg0: i32) -> (i32, i32) {
    %c0_i32 = arith.constant 0 : i32
    %c0_i32_0 = arith.constant 0 : i32
    return %arg0, %c0_i32 : i32, i32
  }
  func.func @transform_1(%arg0: i32) -> (i32, i32) {
    %c0_i32 = arith.constant 0 : i32
    %c0_i32_0 = arith.constant 0 : i32
    %c0_i32_1 = arith.constant 0 : i32
    return %c0_i32, %c0_i32_0 : i32, i32
  }
  func.func @transform_2(%arg0: i32) -> (i32, i32) {
    %c0_i32 = arith.constant 0 : i32
    %c0_i32_0 = arith.constant 0 : i32
    %c0_i32_1 = arith.constant 0 : i32
    return %c0_i32, %c0_i32_0 : i32, i32
  }
  func.func @transform_3(%arg0: i32) -> (i32, i32) {
    %c0_i32 = arith.constant 0 : i32
    %c0_i32_0 = arith.constant 0 : i32
    return %arg0, %c0_i32 : i32, i32
  }
}

module attributes {stable_mosaic.version = 11 : i64} {
  func.func @_linear_kernel(%arg0: i32, %arg1: i32, %arg2: i32, %arg3: memref<42x32xbf16, #tpu.memory_space<vmem>>, %arg4: memref<32x96xbf16, #tpu.memory_space<vmem>>, %arg5: memref<1x32xf32, #tpu.memory_space<vmem>>, %arg6: memref<1x32xf32, #tpu.memory_space<vmem>>, %arg7: memref<1x96xf32, #tpu.memory_space<vmem>>, %arg8: memref<42x96xbf16, #tpu.memory_space<vmem>>, %arg9: memref<42x96xf32, #tpu.memory_space<vmem>>) attributes {dimension_semantics = [#tpu.dimension_semantics<parallel>, #tpu.dimension_semantics<parallel>, #tpu.dimension_semantics<arbitrary>], iteration_bounds = array<i64: 1, 1, 1>, scalar_prefetch = 0 : i64, scratch_operands = 1 : i64, tpu.core_type = #tpu.core_type<tc>, window_params = [{transform_indices = @transform_0, window_bounds = array<i64: 42, 32>}, {transform_indices = @transform_1, window_bounds = array<i64: 32, 96>}, {transform_indices = @transform_2, window_bounds = array<i64: 1, 32>}, {transform_indices = @transform_3, window_bounds = array<i64: 1, 32>}, {transform_indices = @transform_4, window_bounds = array<i64: 1, 96>}, {transform_indices = @transform_5, window_bounds = array<i64: 42, 96>}]} {
    %c0_i32 = arith.constant 0 : i32
    %0 = arith.cmpi eq, %arg2, %c0_i32 : i32
    %1 = arith.extui %0 : i1 to i32
    %c0_i32_0 = arith.constant 0 : i32
    %2 = arith.cmpi ne, %1, %c0_i32_0 : i32
    scf.if %2 {
      %cst_19 = arith.constant 0.000000e+00 : f32
      %38 = vector.broadcast %cst_19 : f32 to vector<42x96xf32>
      %c0_20 = arith.constant 0 : index
      %c0_21 = arith.constant 0 : index
      %39 = vector.load %arg9[%c0_20, %c0_21] : memref<42x96xf32, #tpu.memory_space<vmem>>, vector<42x96xf32>
      tpu.vector_store %arg9[%c0_20, %c0_21], %38 {strides = array<i32>} : memref<42x96xf32, #tpu.memory_space<vmem>>, vector<42x96xf32>,
    } else {
    }
    %c0 = arith.constant 0 : index
    %c0_1 = arith.constant 0 : index
    %3 = vector.load %arg3[%c0, %c0_1] : memref<42x32xbf16, #tpu.memory_space<vmem>>, vector<42x32xbf16>
    %4 = arith.extf %3 : vector<42x32xbf16> to vector<42x32xf32>
    %cst = arith.constant dense<0.000000e+00> : vector<42xf32>
    %5 = vector.multi_reduction <add>, %4, %cst [1] : vector<42x32xf32> to vector<42xf32>
    %6 = vector.shape_cast %5 : vector<42xf32> to vector<42x1xf32>
    %cst_2 = arith.constant 3.200000e+01 : f32
    %7 = vector.broadcast %cst_2 : f32 to vector<42x1xf32>
    %8 = arith.divf %6, %7 : vector<42x1xf32>
    %9 = vector.broadcast %8 : vector<42x1xf32> to vector<42x32xf32>
    %10 = arith.subf %4, %9 : vector<42x32xf32>
    %11 = arith.mulf %10, %10 : vector<42x32xf32>
    %cst_3 = arith.constant dense<0.000000e+00> : vector<42xf32>
    %12 = vector.multi_reduction <add>, %11, %cst_3 [1] : vector<42x32xf32> to vector<42xf32>
    %13 = vector.shape_cast %12 : vector<42xf32> to vector<42x1xf32>
    %cst_4 = arith.constant 3.200000e+01 : f32
    %14 = vector.broadcast %cst_4 : f32 to vector<42x1xf32>
    %15 = arith.divf %13, %14 : vector<42x1xf32>
    %16 = vector.broadcast %8 : vector<42x1xf32> to vector<42x32xf32>
    %17 = arith.subf %4, %16 : vector<42x32xf32>
    %cst_5 = arith.constant 9.99999974E-6 : f32
    %18 = vector.broadcast %cst_5 : f32 to vector<42x1xf32>
    %19 = arith.addf %15, %18 : vector<42x1xf32>
    %20 = math.rsqrt %19 : vector<42x1xf32>
    %21 = vector.broadcast %20 : vector<42x1xf32> to vector<42x32xf32>
    %22 = arith.mulf %17, %21 : vector<42x32xf32>
    %c0_6 = arith.constant 0 : index
    %c0_7 = arith.constant 0 : index
    %23 = vector.load %arg5[%c0_6, %c0_7] : memref<1x32xf32, #tpu.memory_space<vmem>>, vector<1x32xf32>
    %24 = vector.broadcast %23 : vector<1x32xf32> to vector<42x32xf32>
    %25 = arith.mulf %22, %24 : vector<42x32xf32>
    %c0_8 = arith.constant 0 : index
    %c0_9 = arith.constant 0 : index
    %26 = vector.load %arg6[%c0_8, %c0_9] : memref<1x32xf32, #tpu.memory_space<vmem>>, vector<1x32xf32>
    %27 = vector.broadcast %26 : vector<1x32xf32> to vector<42x32xf32>
    %28 = arith.addf %25, %27 : vector<42x32xf32>
    %29 = arith.truncf %28 : vector<42x32xf32> to vector<42x32xbf16>
    %c0_10 = arith.constant 0 : index
    %c0_11 = arith.constant 0 : index
    %30 = vector.load %arg9[%c0_10, %c0_11] : memref<42x96xf32, #tpu.memory_space<vmem>>, vector<42x96xf32>
    %c0_12 = arith.constant 0 : index
    %c0_13 = arith.constant 0 : index
    %31 = vector.load %arg4[%c0_12, %c0_13] : memref<32x96xbf16, #tpu.memory_space<vmem>>, vector<32x96xbf16>
    %cst_14 = arith.constant dense<0.000000e+00> : vector<42x96xf32>
    %32 = tpu.matmul %29, %31, %cst_14 {dimension_numbers = #tpu.dot_dimension_numbers<[1], [0], [0], [1], [0, 0, 1, 1], [], []>} : vector<42x32xbf16>, vector<32x96xbf16>, vector<42x96xf32> -> vector<42x96xf32>
    %33 = arith.addf %30, %32 : vector<42x96xf32>
    %c0_15 = arith.constant 0 : index
    %c0_16 = arith.constant 0 : index
    %34 = vector.load %arg9[%c0_15, %c0_16] : memref<42x96xf32, #tpu.memory_space<vmem>>, vector<42x96xf32>
    tpu.vector_store %arg9[%c0_15, %c0_16], %33 {strides = array<i32>} : memref<42x96xf32, #tpu.memory_space<vmem>>, vector<42x96xf32>,
    %c0_i32_17 = arith.constant 0 : i32
    %35 = arith.cmpi eq, %arg2, %c0_i32_17 : i32
    %36 = arith.extui %35 : i1 to i32
    %c0_i32_18 = arith.constant 0 : i32
    %37 = arith.cmpi ne, %36, %c0_i32_18 : i32
    scf.if %37 {
      %c0_19 = arith.constant 0 : index
      %c0_20 = arith.constant 0 : index
      %38 = vector.load %arg9[%c0_19, %c0_20] : memref<42x96xf32, #tpu.memory_space<vmem>>, vector<42x96xf32>
      %c0_21 = arith.constant 0 : index
      %c0_22 = arith.constant 0 : index
      %39 = vector.load %arg7[%c0_21, %c0_22] : memref<1x96xf32, #tpu.memory_space<vmem>>, vector<1x96xf32>
      %40 = vector.broadcast %39 : vector<1x96xf32> to vector<42x96xf32>
      %41 = arith.addf %38, %40 : vector<42x96xf32>
      %42 = arith.truncf %41 : vector<42x96xf32> to vector<42x96xbf16>
      %c0_23 = arith.constant 0 : index
      %c0_24 = arith.constant 0 : index
      %43 = vector.load %arg8[%c0_23, %c0_24] : memref<42x96xbf16, #tpu.memory_space<vmem>>, vector<42x96xbf16>
      tpu.vector_store %arg8[%c0_23, %c0_24], %42 {strides = array<i32>} : memref<42x96xbf16, #tpu.memory_space<vmem>>, vector<42x96xbf16>,
    } else {
    }
    return
  }
  func.func @transform_0(%arg0: i32, %arg1: i32, %arg2: i32) -> (i32, i32) {
    %c0_i32 = arith.constant 0 : i32
    return %arg0, %arg2 : i32, i32
  }
  func.func @transform_1(%arg0: i32, %arg1: i32, %arg2: i32) -> (i32, i32) {
    %c0_i32 = arith.constant 0 : i32
    return %arg2, %arg1 : i32, i32
  }
  func.func @transform_2(%arg0: i32, %arg1: i32, %arg2: i32) -> (i32, i32) {
    %c0_i32 = arith.constant 0 : i32
    %c0_i32_0 = arith.constant 0 : i32
    return %c0_i32, %arg2 : i32, i32
  }
  func.func @transform_3(%arg0: i32, %arg1: i32, %arg2: i32) -> (i32, i32) {
    %c0_i32 = arith.constant 0 : i32
    %c0_i32_0 = arith.constant 0 : i32
    return %c0_i32, %arg2 : i32, i32
  }
  func.func @transform_4(%arg0: i32, %arg1: i32, %arg2: i32) -> (i32, i32) {
    %c0_i32 = arith.constant 0 : i32
    %c0_i32_0 = arith.constant 0 : i32
    return %c0_i32, %arg1 : i32, i32
  }
  func.func @transform_5(%arg0: i32, %arg1: i32, %arg2: i32) -> (i32, i32) {
    %c0_i32 = arith.constant 0 : i32
    return %arg0, %arg1 : i32, i32
  }
}

module attributes {stable_mosaic.version = 11 : i64} {
  func.func @_attention_kernel(%arg0: i32, %arg1: memref<1x21x96xbf16, #tpu.memory_space<vmem>>, %arg2: memref<1x21x32xbf16, #tpu.memory_space<vmem>>) attributes {dimension_semantics = [#tpu.dimension_semantics<parallel>], iteration_bounds = array<i64: 2>, scalar_prefetch = 0 : i64, scratch_operands = 0 : i64, tpu.core_type = #tpu.core_type<tc>, window_params = [{transform_indices = @transform_0, window_bounds = array<i64: 1, 21, 96>}, {transform_indices = @transform_1, window_bounds = array<i64: 1, 21, 32>}]} {
    %c0 = arith.constant 0 : index
    %c0_0 = arith.constant 0 : index
    %c0_1 = arith.constant 0 : index
    %0 = vector.load %arg1[%c0, %c0_0, %c0_1] : memref<1x21x96xbf16, #tpu.memory_space<vmem>>, vector<1x21x96xbf16>
    %1 = vector.shape_cast %0 : vector<1x21x96xbf16> to vector<21x96xbf16>
    %2 = vector.extract_strided_slice %1 {offsets = [0, 0], sizes = [21, 8], strides = [1, 1]} : vector<21x96xbf16> to vector<21x8xbf16>
    %3 = vector.extract_strided_slice %1 {offsets = [0, 32], sizes = [21, 8], strides = [1, 1]} : vector<21x96xbf16> to vector<21x8xbf16>
    %4 = vector.extract_strided_slice %1 {offsets = [0, 64], sizes = [21, 8], strides = [1, 1]} : vector<21x96xbf16> to vector<21x8xbf16>
    %cst = arith.constant dense<0.000000e+00> : vector<21x21xf32>
    %5 = tpu.matmul %2, %3, %cst {dimension_numbers = #tpu.dot_dimension_numbers<[1], [1], [0], [0], [0, 0, 1, 0], [], []>} : vector<21x8xbf16>, vector<21x8xbf16>, vector<21x21xf32> -> vector<21x21xf32>
    %cst_2 = arith.constant 0.353553385 : f32
    %6 = vector.broadcast %cst_2 : f32 to vector<21x21xf32>
    %7 = arith.mulf %5, %6 : vector<21x21xf32>
    %cst_3 = arith.constant dense<0xFF800000> : vector<21xf32>
    %8 = vector.multi_reduction <maximumf>, %7, %cst_3 [1] : vector<21x21xf32> to vector<21xf32>
    %9 = vector.shape_cast %8 : vector<21xf32> to vector<21x1xf32>
    %10 = vector.broadcast %9 : vector<21x1xf32> to vector<21x21xf32>
    %11 = arith.subf %7, %10 : vector<21x21xf32>
    %12 = math.exp %11 : vector<21x21xf32>
    %cst_4 = arith.constant dense<0.000000e+00> : vector<21xf32>
    %13 = vector.multi_reduction <add>, %12, %cst_4 [1] : vector<21x21xf32> to vector<21xf32>
    %14 = vector.shape_cast %13 : vector<21xf32> to vector<21x1xf32>
    %15 = tpu.reciprocal %14 {approx = true} : vector<21x1xf32> -> vector<21x1xf32>
    %16 = vector.broadcast %15 : vector<21x1xf32> to vector<21x21xf32>
    %17 = arith.mulf %12, %16 : vector<21x21xf32>
    %18 = arith.truncf %17 : vector<21x21xf32> to vector<21x21xbf16>
    %cst_5 = arith.constant dense<0.000000e+00> : vector<21x8xf32>
    %19 = tpu.matmul %18, %4, %cst_5 {dimension_numbers = #tpu.dot_dimension_numbers<[1], [0], [0], [1], [0, 0, 1, 1], [], []>} : vector<21x21xbf16>, vector<21x8xbf16>, vector<21x8xf32> -> vector<21x8xf32>
    %20 = vector.extract_strided_slice %1 {offsets = [0, 8], sizes = [21, 8], strides = [1, 1]} : vector<21x96xbf16> to vector<21x8xbf16>
    %21 = vector.extract_strided_slice %1 {offsets = [0, 40], sizes = [21, 8], strides = [1, 1]} : vector<21x96xbf16> to vector<21x8xbf16>
    %22 = vector.extract_strided_slice %1 {offsets = [0, 72], sizes = [21, 8], strides = [1, 1]} : vector<21x96xbf16> to vector<21x8xbf16>
    %cst_6 = arith.constant dense<0.000000e+00> : vector<21x21xf32>
    %23 = tpu.matmul %20, %21, %cst_6 {dimension_numbers = #tpu.dot_dimension_numbers<[1], [1], [0], [0], [0, 0, 1, 0], [], []>} : vector<21x8xbf16>, vector<21x8xbf16>, vector<21x21xf32> -> vector<21x21xf32>
    %cst_7 = arith.constant 0.353553385 : f32
    %24 = vector.broadcast %cst_7 : f32 to vector<21x21xf32>
    %25 = arith.mulf %23, %24 : vector<21x21xf32>
    %cst_8 = arith.constant dense<0xFF800000> : vector<21xf32>
    %26 = vector.multi_reduction <maximumf>, %25, %cst_8 [1] : vector<21x21xf32> to vector<21xf32>
    %27 = vector.shape_cast %26 : vector<21xf32> to vector<21x1xf32>
    %28 = vector.broadcast %27 : vector<21x1xf32> to vector<21x21xf32>
    %29 = arith.subf %25, %28 : vector<21x21xf32>
    %30 = math.exp %29 : vector<21x21xf32>
    %cst_9 = arith.constant dense<0.000000e+00> : vector<21xf32>
    %31 = vector.multi_reduction <add>, %30, %cst_9 [1] : vector<21x21xf32> to vector<21xf32>
    %32 = vector.shape_cast %31 : vector<21xf32> to vector<21x1xf32>
    %33 = tpu.reciprocal %32 {approx = true} : vector<21x1xf32> -> vector<21x1xf32>
    %34 = vector.broadcast %33 : vector<21x1xf32> to vector<21x21xf32>
    %35 = arith.mulf %30, %34 : vector<21x21xf32>
    %36 = arith.truncf %35 : vector<21x21xf32> to vector<21x21xbf16>
    %cst_10 = arith.constant dense<0.000000e+00> : vector<21x8xf32>
    %37 = tpu.matmul %36, %22, %cst_10 {dimension_numbers = #tpu.dot_dimension_numbers<[1], [0], [0], [1], [0, 0, 1, 1], [], []>} : vector<21x21xbf16>, vector<21x8xbf16>, vector<21x8xf32> -> vector<21x8xf32>
    %38 = vector.extract_strided_slice %1 {offsets = [0, 16], sizes = [21, 8], strides = [1, 1]} : vector<21x96xbf16> to vector<21x8xbf16>
    %39 = vector.extract_strided_slice %1 {offsets = [0, 48], sizes = [21, 8], strides = [1, 1]} : vector<21x96xbf16> to vector<21x8xbf16>
    %40 = vector.extract_strided_slice %1 {offsets = [0, 80], sizes = [21, 8], strides = [1, 1]} : vector<21x96xbf16> to vector<21x8xbf16>
    %cst_11 = arith.constant dense<0.000000e+00> : vector<21x21xf32>
    %41 = tpu.matmul %38, %39, %cst_11 {dimension_numbers = #tpu.dot_dimension_numbers<[1], [1], [0], [0], [0, 0, 1, 0], [], []>} : vector<21x8xbf16>, vector<21x8xbf16>, vector<21x21xf32> -> vector<21x21xf32>
    %cst_12 = arith.constant 0.353553385 : f32
    %42 = vector.broadcast %cst_12 : f32 to vector<21x21xf32>
    %43 = arith.mulf %41, %42 : vector<21x21xf32>
    %cst_13 = arith.constant dense<0xFF800000> : vector<21xf32>
    %44 = vector.multi_reduction <maximumf>, %43, %cst_13 [1] : vector<21x21xf32> to vector<21xf32>
    %45 = vector.shape_cast %44 : vector<21xf32> to vector<21x1xf32>
    %46 = vector.broadcast %45 : vector<21x1xf32> to vector<21x21xf32>
    %47 = arith.subf %43, %46 : vector<21x21xf32>
    %48 = math.exp %47 : vector<21x21xf32>
    %cst_14 = arith.constant dense<0.000000e+00> : vector<21xf32>
    %49 = vector.multi_reduction <add>, %48, %cst_14 [1] : vector<21x21xf32> to vector<21xf32>
    %50 = vector.shape_cast %49 : vector<21xf32> to vector<21x1xf32>
    %51 = tpu.reciprocal %50 {approx = true} : vector<21x1xf32> -> vector<21x1xf32>
    %52 = vector.broadcast %51 : vector<21x1xf32> to vector<21x21xf32>
    %53 = arith.mulf %48, %52 : vector<21x21xf32>
    %54 = arith.truncf %53 : vector<21x21xf32> to vector<21x21xbf16>
    %cst_15 = arith.constant dense<0.000000e+00> : vector<21x8xf32>
    %55 = tpu.matmul %54, %40, %cst_15 {dimension_numbers = #tpu.dot_dimension_numbers<[1], [0], [0], [1], [0, 0, 1, 1], [], []>} : vector<21x21xbf16>, vector<21x8xbf16>, vector<21x8xf32> -> vector<21x8xf32>
    %56 = vector.extract_strided_slice %1 {offsets = [0, 24], sizes = [21, 8], strides = [1, 1]} : vector<21x96xbf16> to vector<21x8xbf16>
    %57 = vector.extract_strided_slice %1 {offsets = [0, 56], sizes = [21, 8], strides = [1, 1]} : vector<21x96xbf16> to vector<21x8xbf16>
    %58 = vector.extract_strided_slice %1 {offsets = [0, 88], sizes = [21, 8], strides = [1, 1]} : vector<21x96xbf16> to vector<21x8xbf16>
    %cst_16 = arith.constant dense<0.000000e+00> : vector<21x21xf32>
    %59 = tpu.matmul %56, %57, %cst_16 {dimension_numbers = #tpu.dot_dimension_numbers<[1], [1], [0], [0], [0, 0, 1, 0], [], []>} : vector<21x8xbf16>, vector<21x8xbf16>, vector<21x21xf32> -> vector<21x21xf32>
    %cst_17 = arith.constant 0.353553385 : f32
    %60 = vector.broadcast %cst_17 : f32 to vector<21x21xf32>
    %61 = arith.mulf %59, %60 : vector<21x21xf32>
    %cst_18 = arith.constant dense<0xFF800000> : vector<21xf32>
    %62 = vector.multi_reduction <maximumf>, %61, %cst_18 [1] : vector<21x21xf32> to vector<21xf32>
    %63 = vector.shape_cast %62 : vector<21xf32> to vector<21x1xf32>
    %64 = vector.broadcast %63 : vector<21x1xf32> to vector<21x21xf32>
    %65 = arith.subf %61, %64 : vector<21x21xf32>
    %66 = math.exp %65 : vector<21x21xf32>
    %cst_19 = arith.constant dense<0.000000e+00> : vector<21xf32>
    %67 = vector.multi_reduction <add>, %66, %cst_19 [1] : vector<21x21xf32> to vector<21xf32>
    %68 = vector.shape_cast %67 : vector<21xf32> to vector<21x1xf32>
    %69 = tpu.reciprocal %68 {approx = true} : vector<21x1xf32> -> vector<21x1xf32>
    %70 = vector.broadcast %69 : vector<21x1xf32> to vector<21x21xf32>
    %71 = arith.mulf %66, %70 : vector<21x21xf32>
    %72 = arith.truncf %71 : vector<21x21xf32> to vector<21x21xbf16>
    %cst_20 = arith.constant dense<0.000000e+00> : vector<21x8xf32>
    %73 = tpu.matmul %72, %58, %cst_20 {dimension_numbers = #tpu.dot_dimension_numbers<[1], [0], [0], [1], [0, 0, 1, 1], [], []>} : vector<21x21xbf16>, vector<21x8xbf16>, vector<21x8xf32> -> vector<21x8xf32>
    %74 = tpu.concatenate %19, %37, %55, %73 in 1 : vector<21x8xf32>, vector<21x8xf32>, vector<21x8xf32>, vector<21x8xf32> -> vector<21x32xf32>
    %75 = arith.truncf %74 : vector<21x32xf32> to vector<21x32xbf16>
    %c0_21 = arith.constant 0 : index
    %c0_22 = arith.constant 0 : index
    %c0_23 = arith.constant 0 : index
    %76 = vector.load %arg2[%c0_21, %c0_22, %c0_23] : memref<1x21x32xbf16, #tpu.memory_space<vmem>>, vector<1x21x32xbf16>
    %77 = vector.shape_cast %76 : vector<1x21x32xbf16> to vector<21x32xbf16>
    %78 = vector.shape_cast %75 : vector<21x32xbf16> to vector<1x21x32xbf16>
    tpu.vector_store %arg2[%c0_21, %c0_22, %c0_23], %78 {strides = array<i32>} : memref<1x21x32xbf16, #tpu.memory_space<vmem>>, vector<1x21x32xbf16>,
    return
  }
  func.func @transform_0(%arg0: i32) -> (i32, i32, i32) {
    %c0_i32 = arith.constant 0 : i32
    %c0_i32_0 = arith.constant 0 : i32
    %c0_i32_1 = arith.constant 0 : i32
    return %arg0, %c0_i32, %c0_i32_0 : i32, i32, i32
  }
  func.func @transform_1(%arg0: i32) -> (i32, i32, i32) {
    %c0_i32 = arith.constant 0 : i32
    %c0_i32_0 = arith.constant 0 : i32
    %c0_i32_1 = arith.constant 0 : i32
    return %arg0, %c0_i32, %c0_i32_0 : i32, i32, i32
  }
}

module attributes {stable_mosaic.version = 11 : i64} {
  func.func @_linear_kernel(%arg0: i32, %arg1: i32, %arg2: i32, %arg3: memref<42x32xbf16, #tpu.memory_space<vmem>>, %arg4: memref<32x32xbf16, #tpu.memory_space<vmem>>, %arg5: memref<1x32xf32, #tpu.memory_space<vmem>>, %arg6: memref<42x32xbf16, #tpu.memory_space<vmem>>, %arg7: memref<42x32xbf16, #tpu.memory_space<vmem>>, %arg8: memref<42x32xf32, #tpu.memory_space<vmem>>) attributes {dimension_semantics = [#tpu.dimension_semantics<parallel>, #tpu.dimension_semantics<parallel>, #tpu.dimension_semantics<arbitrary>], iteration_bounds = array<i64: 1, 1, 1>, scalar_prefetch = 0 : i64, scratch_operands = 1 : i64, tpu.core_type = #tpu.core_type<tc>, window_params = [{transform_indices = @transform_0, window_bounds = array<i64: 42, 32>}, {transform_indices = @transform_1, window_bounds = array<i64: 32, 32>}, {transform_indices = @transform_2, window_bounds = array<i64: 1, 32>}, {transform_indices = @transform_3, window_bounds = array<i64: 42, 32>}, {transform_indices = @transform_4, window_bounds = array<i64: 42, 32>}]} {
    %c0_i32 = arith.constant 0 : i32
    %0 = arith.cmpi eq, %arg2, %c0_i32 : i32
    %1 = arith.extui %0 : i1 to i32
    %c0_i32_0 = arith.constant 0 : i32
    %2 = arith.cmpi ne, %1, %c0_i32_0 : i32
    scf.if %2 {
      %cst_10 = arith.constant 0.000000e+00 : f32
      %12 = vector.broadcast %cst_10 : f32 to vector<42x32xf32>
      %c0_11 = arith.constant 0 : index
      %c0_12 = arith.constant 0 : index
      %13 = vector.load %arg8[%c0_11, %c0_12] : memref<42x32xf32, #tpu.memory_space<vmem>>, vector<42x32xf32>
      tpu.vector_store %arg8[%c0_11, %c0_12], %12 {strides = array<i32>} : memref<42x32xf32, #tpu.memory_space<vmem>>, vector<42x32xf32>,
    } else {
    }
    %c0 = arith.constant 0 : index
    %c0_1 = arith.constant 0 : index
    %3 = vector.load %arg3[%c0, %c0_1] : memref<42x32xbf16, #tpu.memory_space<vmem>>, vector<42x32xbf16>
    %c0_2 = arith.constant 0 : index
    %c0_3 = arith.constant 0 : index
    %4 = vector.load %arg8[%c0_2, %c0_3] : memref<42x32xf32, #tpu.memory_space<vmem>>, vector<42x32xf32>
    %c0_4 = arith.constant 0 : index
    %c0_5 = arith.constant 0 : index
    %5 = vector.load %arg4[%c0_4, %c0_5] : memref<32x32xbf16, #tpu.memory_space<vmem>>, vector<32x32xbf16>
    %cst = arith.constant dense<0.000000e+00> : vector<42x32xf32>
    %6 = tpu.matmul %3, %5, %cst {dimension_numbers = #tpu.dot_dimension_numbers<[1], [0], [0], [1], [0, 0, 1, 1], [], []>} : vector<42x32xbf16>, vector<32x32xbf16>, vector<42x32xf32> -> vector<42x32xf32>
    %7 = arith.addf %4, %6 : vector<42x32xf32>
    %c0_6 = arith.constant 0 : index
    %c0_7 = arith.constant 0 : index
    %8 = vector.load %arg8[%c0_6, %c0_7] : memref<42x32xf32, #tpu.memory_space<vmem>>, vector<42x32xf32>
    tpu.vector_store %arg8[%c0_6, %c0_7], %7 {strides = array<i32>} : memref<42x32xf32, #tpu.memory_space<vmem>>, vector<42x32xf32>,
    %c0_i32_8 = arith.constant 0 : i32
    %9 = arith.cmpi eq, %arg2, %c0_i32_8 : i32
    %10 = arith.extui %9 : i1 to i32
    %c0_i32_9 = arith.constant 0 : i32
    %11 = arith.cmpi ne, %10, %c0_i32_9 : i32
    scf.if %11 {
      %c0_10 = arith.constant 0 : index
      %c0_11 = arith.constant 0 : index
      %12 = vector.load %arg8[%c0_10, %c0_11] : memref<42x32xf32, #tpu.memory_space<vmem>>, vector<42x32xf32>
      %c0_12 = arith.constant 0 : index
      %c0_13 = arith.constant 0 : index
      %13 = vector.load %arg5[%c0_12, %c0_13] : memref<1x32xf32, #tpu.memory_space<vmem>>, vector<1x32xf32>
      %14 = vector.broadcast %13 : vector<1x32xf32> to vector<42x32xf32>
      %15 = arith.addf %12, %14 : vector<42x32xf32>
      %c0_14 = arith.constant 0 : index
      %c0_15 = arith.constant 0 : index
      %16 = vector.load %arg6[%c0_14, %c0_15] : memref<42x32xbf16, #tpu.memory_space<vmem>>, vector<42x32xbf16>
      %17 = arith.extf %16 : vector<42x32xbf16> to vector<42x32xf32>
      %18 = arith.addf %15, %17 : vector<42x32xf32>
      %19 = arith.truncf %18 : vector<42x32xf32> to vector<42x32xbf16>
      %c0_16 = arith.constant 0 : index
      %c0_17 = arith.constant 0 : index
      %20 = vector.load %arg7[%c0_16, %c0_17] : memref<42x32xbf16, #tpu.memory_space<vmem>>, vector<42x32xbf16>
      tpu.vector_store %arg7[%c0_16, %c0_17], %19 {strides = array<i32>} : memref<42x32xbf16, #tpu.memory_space<vmem>>, vector<42x32xbf16>,
    } else {
    }
    return
  }
  func.func @transform_0(%arg0: i32, %arg1: i32, %arg2: i32) -> (i32, i32) {
    %c0_i32 = arith.constant 0 : i32
    return %arg0, %arg2 : i32, i32
  }
  func.func @transform_1(%arg0: i32, %arg1: i32, %arg2: i32) -> (i32, i32) {
    %c0_i32 = arith.constant 0 : i32
    return %arg2, %arg1 : i32, i32
  }
  func.func @transform_2(%arg0: i32, %arg1: i32, %arg2: i32) -> (i32, i32) {
    %c0_i32 = arith.constant 0 : i32
    %c0_i32_0 = arith.constant 0 : i32
    return %c0_i32, %arg1 : i32, i32
  }
  func.func @transform_3(%arg0: i32, %arg1: i32, %arg2: i32) -> (i32, i32) {
    %c0_i32 = arith.constant 0 : i32
    return %arg0, %arg1 : i32, i32
  }
  func.func @transform_4(%arg0: i32, %arg1: i32, %arg2: i32) -> (i32, i32) {
    %c0_i32 = arith.constant 0 : i32
    return %arg0, %arg1 : i32, i32
  }
}

module attributes {stable_mosaic.version = 11 : i64} {
  func.func @_linear_kernel(%arg0: i32, %arg1: i32, %arg2: i32, %arg3: memref<42x32xbf16, #tpu.memory_space<vmem>>, %arg4: memref<32x128xbf16, #tpu.memory_space<vmem>>, %arg5: memref<1x32xf32, #tpu.memory_space<vmem>>, %arg6: memref<1x32xf32, #tpu.memory_space<vmem>>, %arg7: memref<1x128xf32, #tpu.memory_space<vmem>>, %arg8: memref<42x128xbf16, #tpu.memory_space<vmem>>, %arg9: memref<42x128xf32, #tpu.memory_space<vmem>>) attributes {dimension_semantics = [#tpu.dimension_semantics<parallel>, #tpu.dimension_semantics<parallel>, #tpu.dimension_semantics<arbitrary>], iteration_bounds = array<i64: 1, 1, 1>, scalar_prefetch = 0 : i64, scratch_operands = 1 : i64, tpu.core_type = #tpu.core_type<tc>, window_params = [{transform_indices = @transform_0, window_bounds = array<i64: 42, 32>}, {transform_indices = @transform_1, window_bounds = array<i64: 32, 128>}, {transform_indices = @transform_2, window_bounds = array<i64: 1, 32>}, {transform_indices = @transform_3, window_bounds = array<i64: 1, 32>}, {transform_indices = @transform_4, window_bounds = array<i64: 1, 128>}, {transform_indices = @transform_5, window_bounds = array<i64: 42, 128>}]} {
    %c0_i32 = arith.constant 0 : i32
    %0 = arith.cmpi eq, %arg2, %c0_i32 : i32
    %1 = arith.extui %0 : i1 to i32
    %c0_i32_0 = arith.constant 0 : i32
    %2 = arith.cmpi ne, %1, %c0_i32_0 : i32
    scf.if %2 {
      %cst_19 = arith.constant 0.000000e+00 : f32
      %38 = vector.broadcast %cst_19 : f32 to vector<42x128xf32>
      %c0_20 = arith.constant 0 : index
      %c0_21 = arith.constant 0 : index
      %39 = vector.load %arg9[%c0_20, %c0_21] : memref<42x128xf32, #tpu.memory_space<vmem>>, vector<42x128xf32>
      tpu.vector_store %arg9[%c0_20, %c0_21], %38 {strides = array<i32>} : memref<42x128xf32, #tpu.memory_space<vmem>>, vector<42x128xf32>,
    } else {
    }
    %c0 = arith.constant 0 : index
    %c0_1 = arith.constant 0 : index
    %3 = vector.load %arg3[%c0, %c0_1] : memref<42x32xbf16, #tpu.memory_space<vmem>>, vector<42x32xbf16>
    %4 = arith.extf %3 : vector<42x32xbf16> to vector<42x32xf32>
    %cst = arith.constant dense<0.000000e+00> : vector<42xf32>
    %5 = vector.multi_reduction <add>, %4, %cst [1] : vector<42x32xf32> to vector<42xf32>
    %6 = vector.shape_cast %5 : vector<42xf32> to vector<42x1xf32>
    %cst_2 = arith.constant 3.200000e+01 : f32
    %7 = vector.broadcast %cst_2 : f32 to vector<42x1xf32>
    %8 = arith.divf %6, %7 : vector<42x1xf32>
    %9 = vector.broadcast %8 : vector<42x1xf32> to vector<42x32xf32>
    %10 = arith.subf %4, %9 : vector<42x32xf32>
    %11 = arith.mulf %10, %10 : vector<42x32xf32>
    %cst_3 = arith.constant dense<0.000000e+00> : vector<42xf32>
    %12 = vector.multi_reduction <add>, %11, %cst_3 [1] : vector<42x32xf32> to vector<42xf32>
    %13 = vector.shape_cast %12 : vector<42xf32> to vector<42x1xf32>
    %cst_4 = arith.constant 3.200000e+01 : f32
    %14 = vector.broadcast %cst_4 : f32 to vector<42x1xf32>
    %15 = arith.divf %13, %14 : vector<42x1xf32>
    %16 = vector.broadcast %8 : vector<42x1xf32> to vector<42x32xf32>
    %17 = arith.subf %4, %16 : vector<42x32xf32>
    %cst_5 = arith.constant 9.99999974E-6 : f32
    %18 = vector.broadcast %cst_5 : f32 to vector<42x1xf32>
    %19 = arith.addf %15, %18 : vector<42x1xf32>
    %20 = math.rsqrt %19 : vector<42x1xf32>
    %21 = vector.broadcast %20 : vector<42x1xf32> to vector<42x32xf32>
    %22 = arith.mulf %17, %21 : vector<42x32xf32>
    %c0_6 = arith.constant 0 : index
    %c0_7 = arith.constant 0 : index
    %23 = vector.load %arg5[%c0_6, %c0_7] : memref<1x32xf32, #tpu.memory_space<vmem>>, vector<1x32xf32>
    %24 = vector.broadcast %23 : vector<1x32xf32> to vector<42x32xf32>
    %25 = arith.mulf %22, %24 : vector<42x32xf32>
    %c0_8 = arith.constant 0 : index
    %c0_9 = arith.constant 0 : index
    %26 = vector.load %arg6[%c0_8, %c0_9] : memref<1x32xf32, #tpu.memory_space<vmem>>, vector<1x32xf32>
    %27 = vector.broadcast %26 : vector<1x32xf32> to vector<42x32xf32>
    %28 = arith.addf %25, %27 : vector<42x32xf32>
    %29 = arith.truncf %28 : vector<42x32xf32> to vector<42x32xbf16>
    %c0_10 = arith.constant 0 : index
    %c0_11 = arith.constant 0 : index
    %30 = vector.load %arg9[%c0_10, %c0_11] : memref<42x128xf32, #tpu.memory_space<vmem>>, vector<42x128xf32>
    %c0_12 = arith.constant 0 : index
    %c0_13 = arith.constant 0 : index
    %31 = vector.load %arg4[%c0_12, %c0_13] : memref<32x128xbf16, #tpu.memory_space<vmem>>, vector<32x128xbf16>
    %cst_14 = arith.constant dense<0.000000e+00> : vector<42x128xf32>
    %32 = tpu.matmul %29, %31, %cst_14 {dimension_numbers = #tpu.dot_dimension_numbers<[1], [0], [0], [1], [0, 0, 1, 1], [], []>} : vector<42x32xbf16>, vector<32x128xbf16>, vector<42x128xf32> -> vector<42x128xf32>
    %33 = arith.addf %30, %32 : vector<42x128xf32>
    %c0_15 = arith.constant 0 : index
    %c0_16 = arith.constant 0 : index
    %34 = vector.load %arg9[%c0_15, %c0_16] : memref<42x128xf32, #tpu.memory_space<vmem>>, vector<42x128xf32>
    tpu.vector_store %arg9[%c0_15, %c0_16], %33 {strides = array<i32>} : memref<42x128xf32, #tpu.memory_space<vmem>>, vector<42x128xf32>,
    %c0_i32_17 = arith.constant 0 : i32
    %35 = arith.cmpi eq, %arg2, %c0_i32_17 : i32
    %36 = arith.extui %35 : i1 to i32
    %c0_i32_18 = arith.constant 0 : i32
    %37 = arith.cmpi ne, %36, %c0_i32_18 : i32
    scf.if %37 {
      %c0_19 = arith.constant 0 : index
      %c0_20 = arith.constant 0 : index
      %38 = vector.load %arg9[%c0_19, %c0_20] : memref<42x128xf32, #tpu.memory_space<vmem>>, vector<42x128xf32>
      %c0_21 = arith.constant 0 : index
      %c0_22 = arith.constant 0 : index
      %39 = vector.load %arg7[%c0_21, %c0_22] : memref<1x128xf32, #tpu.memory_space<vmem>>, vector<1x128xf32>
      %40 = vector.broadcast %39 : vector<1x128xf32> to vector<42x128xf32>
      %41 = arith.addf %38, %40 : vector<42x128xf32>
      %cst_23 = arith.constant 1.702000e+00 : f32
      %42 = vector.broadcast %cst_23 : f32 to vector<42x128xf32>
      %43 = arith.mulf %42, %41 : vector<42x128xf32>
      %44 = arith.negf %43 : vector<42x128xf32>
      %45 = math.exp %44 : vector<42x128xf32>
      %cst_24 = arith.constant 1.000000e+00 : f32
      %46 = vector.broadcast %cst_24 : f32 to vector<42x128xf32>
      %47 = arith.addf %46, %45 : vector<42x128xf32>
      %48 = arith.divf %46, %47 : vector<42x128xf32>
      %49 = arith.mulf %41, %48 : vector<42x128xf32>
      %50 = arith.truncf %49 : vector<42x128xf32> to vector<42x128xbf16>
      %c0_25 = arith.constant 0 : index
      %c0_26 = arith.constant 0 : index
      %51 = vector.load %arg8[%c0_25, %c0_26] : memref<42x128xbf16, #tpu.memory_space<vmem>>, vector<42x128xbf16>
      tpu.vector_store %arg8[%c0_25, %c0_26], %50 {strides = array<i32>} : memref<42x128xbf16, #tpu.memory_space<vmem>>, vector<42x128xbf16>,
    } else {
    }
    return
  }
  func.func @transform_0(%arg0: i32, %arg1: i32, %arg2: i32) -> (i32, i32) {
    %c0_i32 = arith.constant 0 : i32
    return %arg0, %arg2 : i32, i32
  }
  func.func @transform_1(%arg0: i32, %arg1: i32, %arg2: i32) -> (i32, i32) {
    %c0_i32 = arith.constant 0 : i32
    return %arg2, %arg1 : i32, i32
  }
  func.func @transform_2(%arg0: i32, %arg1: i32, %arg2: i32) -> (i32, i32) {
    %c0_i32 = arith.constant 0 : i32
    %c0_i32_0 = arith.constant 0 : i32
    return %c0_i32, %arg2 : i32, i32
  }
  func.func @transform_3(%arg0: i32, %arg1: i32, %arg2: i32) -> (i32, i32) {
    %c0_i32 = arith.constant 0 : i32
    %c0_i32_0 = arith.constant 0 : i32
    return %c0_i32, %arg2 : i32, i32
  }
  func.func @transform_4(%arg0: i32, %arg1: i32, %arg2: i32) -> (i32, i32) {
    %c0_i32 = arith.constant 0 : i32
    %c0_i32_0 = arith.constant 0 : i32
    return %c0_i32, %arg1 : i32, i32
  }
  func.func @transform_5(%arg0: i32, %arg1: i32, %arg2: i32) -> (i32, i32) {
    %c0_i32 = arith.constant 0 : i32
    return %arg0, %arg1 : i32, i32
  }
}

module attributes {stable_mosaic.version = 11 : i64} {
  func.func @_linear_kernel(%arg0: i32, %arg1: i32, %arg2: i32, %arg3: memref<42x128xbf16, #tpu.memory_space<vmem>>, %arg4: memref<128x32xbf16, #tpu.memory_space<vmem>>, %arg5: memref<1x32xf32, #tpu.memory_space<vmem>>, %arg6: memref<42x32xbf16, #tpu.memory_space<vmem>>, %arg7: memref<42x32xbf16, #tpu.memory_space<vmem>>, %arg8: memref<42x32xf32, #tpu.memory_space<vmem>>) attributes {dimension_semantics = [#tpu.dimension_semantics<parallel>, #tpu.dimension_semantics<parallel>, #tpu.dimension_semantics<arbitrary>], iteration_bounds = array<i64: 1, 1, 1>, scalar_prefetch = 0 : i64, scratch_operands = 1 : i64, tpu.core_type = #tpu.core_type<tc>, window_params = [{transform_indices = @transform_0, window_bounds = array<i64: 42, 128>}, {transform_indices = @transform_1, window_bounds = array<i64: 128, 32>}, {transform_indices = @transform_2, window_bounds = array<i64: 1, 32>}, {transform_indices = @transform_3, window_bounds = array<i64: 42, 32>}, {transform_indices = @transform_4, window_bounds = array<i64: 42, 32>}]} {
    %c0_i32 = arith.constant 0 : i32
    %0 = arith.cmpi eq, %arg2, %c0_i32 : i32
    %1 = arith.extui %0 : i1 to i32
    %c0_i32_0 = arith.constant 0 : i32
    %2 = arith.cmpi ne, %1, %c0_i32_0 : i32
    scf.if %2 {
      %cst_10 = arith.constant 0.000000e+00 : f32
      %12 = vector.broadcast %cst_10 : f32 to vector<42x32xf32>
      %c0_11 = arith.constant 0 : index
      %c0_12 = arith.constant 0 : index
      %13 = vector.load %arg8[%c0_11, %c0_12] : memref<42x32xf32, #tpu.memory_space<vmem>>, vector<42x32xf32>
      tpu.vector_store %arg8[%c0_11, %c0_12], %12 {strides = array<i32>} : memref<42x32xf32, #tpu.memory_space<vmem>>, vector<42x32xf32>,
    } else {
    }
    %c0 = arith.constant 0 : index
    %c0_1 = arith.constant 0 : index
    %3 = vector.load %arg3[%c0, %c0_1] : memref<42x128xbf16, #tpu.memory_space<vmem>>, vector<42x128xbf16>
    %c0_2 = arith.constant 0 : index
    %c0_3 = arith.constant 0 : index
    %4 = vector.load %arg8[%c0_2, %c0_3] : memref<42x32xf32, #tpu.memory_space<vmem>>, vector<42x32xf32>
    %c0_4 = arith.constant 0 : index
    %c0_5 = arith.constant 0 : index
    %5 = vector.load %arg4[%c0_4, %c0_5] : memref<128x32xbf16, #tpu.memory_space<vmem>>, vector<128x32xbf16>
    %cst = arith.constant dense<0.000000e+00> : vector<42x32xf32>
    %6 = tpu.matmul %3, %5, %cst {dimension_numbers = #tpu.dot_dimension_numbers<[1], [0], [0], [1], [0, 0, 1, 1], [], []>} : vector<42x128xbf16>, vector<128x32xbf16>, vector<42x32xf32> -> vector<42x32xf32>
    %7 = arith.addf %4, %6 : vector<42x32xf32>
    %c0_6 = arith.constant 0 : index
    %c0_7 = arith.constant 0 : index
    %8 = vector.load %arg8[%c0_6, %c0_7] : memref<42x32xf32, #tpu.memory_space<vmem>>, vector<42x32xf32>
    tpu.vector_store %arg8[%c0_6, %c0_7], %7 {strides = array<i32>} : memref<42x32xf32, #tpu.memory_space<vmem>>, vector<42x32xf32>,
    %c0_i32_8 = arith.constant 0 : i32
    %9 = arith.cmpi eq, %arg2, %c0_i32_8 : i32
    %10 = arith.extui %9 : i1 to i32
    %c0_i32_9 = arith.constant 0 : i32
    %11 = arith.cmpi ne, %10, %c0_i32_9 : i32
    scf.if %11 {
      %c0_10 = arith.constant 0 : index
      %c0_11 = arith.constant 0 : index
      %12 = vector.load %arg8[%c0_10, %c0_11] : memref<42x32xf32, #tpu.memory_space<vmem>>, vector<42x32xf32>
      %c0_12 = arith.constant 0 : index
      %c0_13 = arith.constant 0 : index
      %13 = vector.load %arg5[%c0_12, %c0_13] : memref<1x32xf32, #tpu.memory_space<vmem>>, vector<1x32xf32>
      %14 = vector.broadcast %13 : vector<1x32xf32> to vector<42x32xf32>
      %15 = arith.addf %12, %14 : vector<42x32xf32>
      %c0_14 = arith.constant 0 : index
      %c0_15 = arith.constant 0 : index
      %16 = vector.load %arg6[%c0_14, %c0_15] : memref<42x32xbf16, #tpu.memory_space<vmem>>, vector<42x32xbf16>
      %17 = arith.extf %16 : vector<42x32xbf16> to vector<42x32xf32>
      %18 = arith.addf %15, %17 : vector<42x32xf32>
      %19 = arith.truncf %18 : vector<42x32xf32> to vector<42x32xbf16>
      %c0_16 = arith.constant 0 : index
      %c0_17 = arith.constant 0 : index
      %20 = vector.load %arg7[%c0_16, %c0_17] : memref<42x32xbf16, #tpu.memory_space<vmem>>, vector<42x32xbf16>
      tpu.vector_store %arg7[%c0_16, %c0_17], %19 {strides = array<i32>} : memref<42x32xbf16, #tpu.memory_space<vmem>>, vector<42x32xbf16>,
    } else {
    }
    return
  }
  func.func @transform_0(%arg0: i32, %arg1: i32, %arg2: i32) -> (i32, i32) {
    %c0_i32 = arith.constant 0 : i32
    return %arg0, %arg2 : i32, i32
  }
  func.func @transform_1(%arg0: i32, %arg1: i32, %arg2: i32) -> (i32, i32) {
    %c0_i32 = arith.constant 0 : i32
    return %arg2, %arg1 : i32, i32
  }
  func.func @transform_2(%arg0: i32, %arg1: i32, %arg2: i32) -> (i32, i32) {
    %c0_i32 = arith.constant 0 : i32
    %c0_i32_0 = arith.constant 0 : i32
    return %c0_i32, %arg1 : i32, i32
  }
  func.func @transform_3(%arg0: i32, %arg1: i32, %arg2: i32) -> (i32, i32) {
    %c0_i32 = arith.constant 0 : i32
    return %arg0, %arg1 : i32, i32
  }
  func.func @transform_4(%arg0: i32, %arg1: i32, %arg2: i32) -> (i32, i32) {
    %c0_i32 = arith.constant 0 : i32
    return %arg0, %arg1 : i32, i32
  }
}

module attributes {stable_mosaic.version = 11 : i64} {
  func.func @_linear_kernel(%arg0: i32, %arg1: i32, %arg2: i32, %arg3: memref<2x32xbf16, #tpu.memory_space<vmem>>, %arg4: memref<32x16xbf16, #tpu.memory_space<vmem>>, %arg5: memref<1x32xf32, #tpu.memory_space<vmem>>, %arg6: memref<1x32xf32, #tpu.memory_space<vmem>>, %arg7: memref<2x16xf32, #tpu.memory_space<vmem>>, %arg8: memref<2x16xf32, #tpu.memory_space<vmem>>) attributes {dimension_semantics = [#tpu.dimension_semantics<parallel>, #tpu.dimension_semantics<parallel>, #tpu.dimension_semantics<arbitrary>], iteration_bounds = array<i64: 1, 1, 1>, scalar_prefetch = 0 : i64, scratch_operands = 1 : i64, tpu.core_type = #tpu.core_type<tc>, window_params = [{transform_indices = @transform_0, window_bounds = array<i64: 2, 32>}, {transform_indices = @transform_1, window_bounds = array<i64: 32, 16>}, {transform_indices = @transform_2, window_bounds = array<i64: 1, 32>}, {transform_indices = @transform_3, window_bounds = array<i64: 1, 32>}, {transform_indices = @transform_4, window_bounds = array<i64: 2, 16>}]} {
    %c0_i32 = arith.constant 0 : i32
    %0 = arith.cmpi eq, %arg2, %c0_i32 : i32
    %1 = arith.extui %0 : i1 to i32
    %c0_i32_0 = arith.constant 0 : i32
    %2 = arith.cmpi ne, %1, %c0_i32_0 : i32
    scf.if %2 {
      %cst_19 = arith.constant 0.000000e+00 : f32
      %38 = vector.broadcast %cst_19 : f32 to vector<2x16xf32>
      %c0_20 = arith.constant 0 : index
      %c0_21 = arith.constant 0 : index
      %39 = vector.load %arg8[%c0_20, %c0_21] : memref<2x16xf32, #tpu.memory_space<vmem>>, vector<2x16xf32>
      tpu.vector_store %arg8[%c0_20, %c0_21], %38 {strides = array<i32>} : memref<2x16xf32, #tpu.memory_space<vmem>>, vector<2x16xf32>,
    } else {
    }
    %c0 = arith.constant 0 : index
    %c0_1 = arith.constant 0 : index
    %3 = vector.load %arg3[%c0, %c0_1] : memref<2x32xbf16, #tpu.memory_space<vmem>>, vector<2x32xbf16>
    %4 = arith.extf %3 : vector<2x32xbf16> to vector<2x32xf32>
    %cst = arith.constant dense<0.000000e+00> : vector<2xf32>
    %5 = vector.multi_reduction <add>, %4, %cst [1] : vector<2x32xf32> to vector<2xf32>
    %6 = vector.shape_cast %5 : vector<2xf32> to vector<2x1xf32>
    %cst_2 = arith.constant 3.200000e+01 : f32
    %7 = vector.broadcast %cst_2 : f32 to vector<2x1xf32>
    %8 = arith.divf %6, %7 : vector<2x1xf32>
    %9 = vector.broadcast %8 : vector<2x1xf32> to vector<2x32xf32>
    %10 = arith.subf %4, %9 : vector<2x32xf32>
    %11 = arith.mulf %10, %10 : vector<2x32xf32>
    %cst_3 = arith.constant dense<0.000000e+00> : vector<2xf32>
    %12 = vector.multi_reduction <add>, %11, %cst_3 [1] : vector<2x32xf32> to vector<2xf32>
    %13 = vector.shape_cast %12 : vector<2xf32> to vector<2x1xf32>
    %cst_4 = arith.constant 3.200000e+01 : f32
    %14 = vector.broadcast %cst_4 : f32 to vector<2x1xf32>
    %15 = arith.divf %13, %14 : vector<2x1xf32>
    %16 = vector.broadcast %8 : vector<2x1xf32> to vector<2x32xf32>
    %17 = arith.subf %4, %16 : vector<2x32xf32>
    %cst_5 = arith.constant 9.99999974E-6 : f32
    %18 = vector.broadcast %cst_5 : f32 to vector<2x1xf32>
    %19 = arith.addf %15, %18 : vector<2x1xf32>
    %20 = math.rsqrt %19 : vector<2x1xf32>
    %21 = vector.broadcast %20 : vector<2x1xf32> to vector<2x32xf32>
    %22 = arith.mulf %17, %21 : vector<2x32xf32>
    %c0_6 = arith.constant 0 : index
    %c0_7 = arith.constant 0 : index
    %23 = vector.load %arg5[%c0_6, %c0_7] : memref<1x32xf32, #tpu.memory_space<vmem>>, vector<1x32xf32>
    %24 = vector.broadcast %23 : vector<1x32xf32> to vector<2x32xf32>
    %25 = arith.mulf %22, %24 : vector<2x32xf32>
    %c0_8 = arith.constant 0 : index
    %c0_9 = arith.constant 0 : index
    %26 = vector.load %arg6[%c0_8, %c0_9] : memref<1x32xf32, #tpu.memory_space<vmem>>, vector<1x32xf32>
    %27 = vector.broadcast %26 : vector<1x32xf32> to vector<2x32xf32>
    %28 = arith.addf %25, %27 : vector<2x32xf32>
    %29 = arith.truncf %28 : vector<2x32xf32> to vector<2x32xbf16>
    %c0_10 = arith.constant 0 : index
    %c0_11 = arith.constant 0 : index
    %30 = vector.load %arg8[%c0_10, %c0_11] : memref<2x16xf32, #tpu.memory_space<vmem>>, vector<2x16xf32>
    %c0_12 = arith.constant 0 : index
    %c0_13 = arith.constant 0 : index
    %31 = vector.load %arg4[%c0_12, %c0_13] : memref<32x16xbf16, #tpu.memory_space<vmem>>, vector<32x16xbf16>
    %cst_14 = arith.constant dense<0.000000e+00> : vector<2x16xf32>
    %32 = tpu.matmul %29, %31, %cst_14 {dimension_numbers = #tpu.dot_dimension_numbers<[1], [0], [0], [1], [0, 0, 1, 1], [], []>} : vector<2x32xbf16>, vector<32x16xbf16>, vector<2x16xf32> -> vector<2x16xf32>
    %33 = arith.addf %30, %32 : vector<2x16xf32>
    %c0_15 = arith.constant 0 : index
    %c0_16 = arith.constant 0 : index
    %34 = vector.load %arg8[%c0_15, %c0_16] : memref<2x16xf32, #tpu.memory_space<vmem>>, vector<2x16xf32>
    tpu.vector_store %arg8[%c0_15, %c0_16], %33 {strides = array<i32>} : memref<2x16xf32, #tpu.memory_space<vmem>>, vector<2x16xf32>,
    %c0_i32_17 = arith.constant 0 : i32
    %35 = arith.cmpi eq, %arg2, %c0_i32_17 : i32
    %36 = arith.extui %35 : i1 to i32
    %c0_i32_18 = arith.constant 0 : i32
    %37 = arith.cmpi ne, %36, %c0_i32_18 : i32
    scf.if %37 {
      %c0_19 = arith.constant 0 : index
      %c0_20 = arith.constant 0 : index
      %38 = vector.load %arg8[%c0_19, %c0_20] : memref<2x16xf32, #tpu.memory_space<vmem>>, vector<2x16xf32>
      %c0_21 = arith.constant 0 : index
      %c0_22 = arith.constant 0 : index
      %39 = vector.load %arg7[%c0_21, %c0_22] : memref<2x16xf32, #tpu.memory_space<vmem>>, vector<2x16xf32>
      tpu.vector_store %arg7[%c0_21, %c0_22], %38 {strides = array<i32>} : memref<2x16xf32, #tpu.memory_space<vmem>>, vector<2x16xf32>,
    } else {
    }
    return
  }
  func.func @transform_0(%arg0: i32, %arg1: i32, %arg2: i32) -> (i32, i32) {
    %c0_i32 = arith.constant 0 : i32
    return %arg0, %arg2 : i32, i32
  }
  func.func @transform_1(%arg0: i32, %arg1: i32, %arg2: i32) -> (i32, i32) {
    %c0_i32 = arith.constant 0 : i32
    return %arg2, %arg1 : i32, i32
  }
  func.func @transform_2(%arg0: i32, %arg1: i32, %arg2: i32) -> (i32, i32) {
    %c0_i32 = arith.constant 0 : i32
    %c0_i32_0 = arith.constant 0 : i32
    return %c0_i32, %arg2 : i32, i32
  }
  func.func @transform_3(%arg0: i32, %arg1: i32, %arg2: i32) -> (i32, i32) {
    %c0_i32 = arith.constant 0 : i32
    %c0_i32_0 = arith.constant 0 : i32
    return %c0_i32, %arg2 : i32, i32
  }
  func.func @transform_4(%arg0: i32, %arg1: i32, %arg2: i32) -> (i32, i32) {
    %c0_i32 = arith.constant 0 : i32
    return %arg0, %arg1 : i32, i32
  }
}

</mosaic_0001>

<llo_original>
// kernel: encode_image.13
$region0: #{encode_image.13}
  #allocation0 [shape = 'u32[]', space=smem, size = 0x4, offset = 0x4, fixed_abs, tag = 'smem constant byte address 0x4 - core index']
  #allocation1 [shape = 'u32[72,128]{1,0:T(1,128)}', space=vmem, size = 0x9000, scoped, tag = 'internal scratch']
  #allocation2 [shape = 'f32[32,32]{1,0:T(8,128)}', space=vmem, size = 0x4000, scoped, tag = 'scratch operand']
  %s0 = inlined_call_operand.vmem [shape: bf16[32,48], index: 0, kind: input, shape index: {}]
  %s1 = inlined_call_operand.vmem [shape: bf16[48,32], index: 1, kind: input, shape index: {}]
  %s2 = inlined_call_operand.vmem [shape: bf16[32,32], index: 2, kind: output, shape index: {}]
  %s3 = sld [smem:[#allocation0]]
  $region26: #{encode_image.13} parent=0
    _
  %s5 = ssub.s32 1, %s3
  %s6 = scalar_select 0, %s5, %s3
  // Predicated region
  $region2: #{encode_image.13} parent=0 // pred_check
    _
  $region3: #{encode_image.13} parent=0 // pred_check_branch
    %8 = sbr.rel (0) target = $region5
  $region4: #{encode_image.13} parent=0 // pred_region
    _
  $region5: #{encode_image.13} parent=0 // pred_fallthru
    _
  // Predicated region
  $region6: #{encode_image.13} parent=0 // pred_check
    _
  $region7: #{encode_image.13} parent=0 // pred_check_branch
    %10 = sbr.rel (0) target = $region9
  $region8: #{encode_image.13} parent=0 // pred_region
    _
  $region9: #{encode_image.13} parent=0 // pred_fallthru
    _
  %p12 = scmp.eq.s32.totalorder 0, 0
  // Predicated region
  $region10: #{encode_image.13} parent=0 // pred_check
    %p13 = pneg %p12
  $region11: #{encode_image.13} parent=0 // pred_check_branch
    %15 = sbr.rel (%p13) target = $region13
  $region12: #{encode_image.13} parent=0 // pred_region
    %vm16 = vcmask 261120
    %17 = vst.msk [vmem:[#allocation2] sm:$0xff] %vm16, 0.0
    %18 = vst.msk [vmem:[#allocation2 + $0x8] sm:$0xff] %vm16, 0.0
    %19 = vst.msk [vmem:[#allocation2 + $0x10] sm:$0xff] %vm16, 0.0
    %20 = vst.msk [vmem:[#allocation2 + $0x18] sm:$0xff] %vm16, 0.0
  $region13: #{encode_image.13} parent=0 // pred_fallthru
    _
  %v21 = vld [vmem:[%s0] sm:$0xf]
  %v22 = vld [vmem:[%s0 + $0x4] sm:$0xf]
  %v23 = vld [vmem:[%s0 + $0x8] sm:$0xf]
  %v24 = vld [vmem:[%s0 + $0xc] sm:$0xf]
  %v25 = vld [vmem:[#allocation2] sm:$0xff]
  %v26 = vld [vmem:[#allocation2 + $0x8] sm:$0xff]
  %v27 = vld [vmem:[#allocation2 + $0x10] sm:$0xff]
  %v28 = vld [vmem:[#allocation2 + $0x18] sm:$0xff]
  %v29 = vld [vmem:[%s1] sm:$0xf]
  %v30 = vld [vmem:[%s1 + $0x4] sm:$0xf]
  %v31 = vld [vmem:[%s1 + $0x8] sm:$0xf]
  %v32 = vld [vmem:[%s1 + $0xc] sm:$0xf]
  %v33 = vld [vmem:[%s1 + $0x10] sm:$0xf]
  %v34 = vld [vmem:[%s1 + $0x14] sm:$0xf]
  %v39 = vunpack.c.l.b16 %v21
  %v40 = vunpack.c.l.b16 %v22
  %v41 = vunpack.c.l.b16 %v23
  %v42 = vunpack.c.l.b16 %v24
  %v43 = vpack.c.b16 %v40, %v39
  %v44 = vpack.c.b16 %v42, %v41
  %v51 = vunpack.c.l.b16 %v29
  %v52 = vunpack.c.l.b16 %v30
  %v53 = vunpack.c.l.b16 %v31
  %v54 = vunpack.c.l.b16 %v32
  %v55 = vunpack.c.l.b16 %v33
  %v56 = vunpack.c.l.b16 %v34
  %v57 = vpack.c.b16 %v52, %v51
  %v58 = vpack.c.b16 %v54, %v53
  %v59 = vpack.c.b16 %v56, %v55
  %vm63 = vcmask 392192
  %v65 = vsel %vm63, %v43, 0
  %v68 = vsel %vm63, %v44, 0
  %70 = vmatpush.bf16.msra.mxu0 0
  %71 = vmatpush.bf16.msra.mxu0 0
  %72 = vmatpush.bf16.msra.mxu0 0
  %73 = vmatpush.bf16.msra.mxu0 0
  %74 = vmatpush.bf16.msra.mxu0 0
  %75 = vmatpush.bf16.msra.mxu0 %v59
  %76 = vmatpush.bf16.msra.mxu0 %v58
  %77 = vmatpush.bf16.msra.mxu0 %v57
  %78 = vmatmul.bf16.gmra.mxu0 %v65
  %v79 = vpop.f32.mrf.mxu0
  %v80 = vadd.f32 0.0, %v79
  %v81 = vpop.f32.mrf.mxu0
  %v82 = vadd.f32 0.0, %v81
  %83 = vmatmul.bf16.gmra.mxu0 %v68
  %v84 = vpop.f32.mrf.mxu0
  %v85 = vadd.f32 0.0, %v84
  %v86 = vpop.f32.mrf.mxu0
  %v87 = vadd.f32 0.0, %v86
  %88 = vdwg.mxu0
  %v89 = vadd.f32 %v25, %v80
  %v90 = vadd.f32 %v26, %v82
  %v91 = vadd.f32 %v27, %v85
  %v92 = vadd.f32 %v28, %v87
  %vm93 = vcmask 261120
  %94 = vst.msk [vmem:[#allocation2] sm:$0xff] %vm93, %v89
  %95 = vst.msk [vmem:[#allocation2 + $0x8] sm:$0xff] %vm93, %v90
  %96 = vst.msk [vmem:[#allocation2 + $0x10] sm:$0xff] %vm93, %v91
  %97 = vst.msk [vmem:[#allocation2 + $0x18] sm:$0xff] %vm93, %v92
  // Predicated region
  $region14: #{encode_image.13} parent=0 // pred_check
    %p98 = pneg %p12
  $region15: #{encode_image.13} parent=0 // pred_check_branch
    %100 = sbr.rel (%p98) target = $region17
  $region16: #{encode_image.13} parent=0 // pred_region
    %v101 = vld [vmem:[#allocation2] sm:$0xff]
    %v102 = vld [vmem:[#allocation2 + $0x8] sm:$0xff]
    %v103 = vld [vmem:[#allocation2 + $0x10] sm:$0xff]
    %v104 = vld [vmem:[#allocation2 + $0x18] sm:$0xff]
    %v105 = vpack.c.bf16 %v101, %v101
    %v106 = vpack.c.bf16 %v102, %v102
    %v107 = vpack.c.bf16 %v103, %v103
    %v108 = vpack.c.bf16 %v104, %v104
    %vm109 = vcmask 257024
    %110 = vst.msk [vmem:[%s2] sm:$0xf] %vm109, %v105
    %111 = vst.msk [vmem:[%s2 + $0x4] sm:$0xf] %vm109, %v106
    %112 = vst.msk [vmem:[%s2 + $0x8] sm:$0xf] %vm109, %v107
    %113 = vst.msk [vmem:[%s2 + $0xc] sm:$0xf] %vm109, %v108
  $region17: #{encode_image.13} parent=0 // pred_fallthru
    _
  // Predicated region
  $region18: #{encode_image.13} parent=0 // pred_check
    _
  $region19: #{encode_image.13} parent=0 // pred_check_branch
    %115 = sbr.rel (0) target = $region21
  $region20: #{encode_image.13} parent=0 // pred_region
    _
  $region21: #{encode_image.13} parent=0 // pred_fallthru
    _
  // Predicated region
  $region22: #{encode_image.13} parent=0 // pred_check
    _
  $region23: #{encode_image.13} parent=0 // pred_check_branch
    %117 = sbr.rel (0) target = $region25
  $region24: #{encode_image.13} parent=0 // pred_region
    _
  $region25: #{encode_image.13} parent=0 // pred_fallthru
    _

// kernel: encode_image.14
$region0: #{encode_image.14}
  #allocation0 [shape = 'u32[]', space=smem, size = 0x4, offset = 0x4, fixed_abs, tag = 'smem constant byte address 0x4 - core index']
  #allocation1 [shape = 'u32[72,128]{1,0:T(1,128)}', space=vmem, size = 0x9000, scoped, tag = 'internal scratch']
  %s0 = inlined_call_operand.vmem [shape: bf16[42,32], index: 0, kind: input, shape index: {}]
  %s1 = inlined_call_operand.vmem [shape: f32[1,32], index: 1, kind: input, shape index: {}]
  %s2 = inlined_call_operand.vmem [shape: f32[1,32], index: 2, kind: input, shape index: {}]
  %s3 = inlined_call_operand.vmem [shape: bf16[42,32], index: 3, kind: output, shape index: {}]
  %s4 = sld [smem:[#allocation0]]
  $region22: #{encode_image.14} parent=0
    _
  %s6 = ssub.s32 1, %s4
  %s7 = scalar_select 0, %s6, %s4
  // Predicated region
  $region2: #{encode_image.14} parent=0 // pred_check
    _
  $region3: #{encode_image.14} parent=0 // pred_check_branch
    %9 = sbr.rel (0) target = $region5
  $region4: #{encode_image.14} parent=0 // pred_region
    _
  $region5: #{encode_image.14} parent=0 // pred_fallthru
    _
  // Predicated region
  $region6: #{encode_image.14} parent=0 // pred_check
    _
  $region7: #{encode_image.14} parent=0 // pred_check_branch
    %11 = sbr.rel (0) target = $region9
  $region8: #{encode_image.14} parent=0 // pred_region
    _
  $region9: #{encode_image.14} parent=0 // pred_fallthru
    _
  // Predicated region
  $region10: #{encode_image.14} parent=0 // pred_check
    _
  $region11: #{encode_image.14} parent=0 // pred_check_branch
    %13 = sbr.rel (0) target = $region13
  $region12: #{encode_image.14} parent=0 // pred_region
    _
  $region13: #{encode_image.14} parent=0 // pred_fallthru
    _
  %v14 = vld [vmem:[%s0] sm:$0xf]
  %v15 = vld [vmem:[%s0 + $0x4] sm:$0xf]
  %v16 = vld [vmem:[%s0 + $0x8] sm:$0xf]
  %v17 = vld [vmem:[%s0 + $0xc] sm:$0xf]
  %v18 = vld [vmem:[%s0 + $0x10] sm:$0xf]
  %v19 = vld [vmem:[%s0 + $0x14] sm:$0x1]
  %v20 = vunpack.c.l.bf16 %v14
  %v21 = vunpack.c.l.bf16 %v15
  %v22 = vunpack.c.l.bf16 %v16
  %v23 = vunpack.c.l.bf16 %v17
  %v24 = vunpack.c.l.bf16 %v18
  %v25 = vunpack.c.l.bf16 %v19
  %vm26 = vcmask 261120
  %v27 = vsel %vm26, %v20, 0.0
  %28 = vadd.xlane.f32.xlu0 %v27
  %v29 = vpop.xlane.xlu0 %28
  %v30 = vsel %vm26, %v21, 0.0
  %31 = vadd.xlane.f32.xlu0 %v30
  %v32 = vpop.xlane.xlu0 %31
  %v33 = vsel %vm26, %v22, 0.0
  %34 = vadd.xlane.f32.xlu0 %v33
  %v35 = vpop.xlane.xlu0 %34
  %v36 = vsel %vm26, %v23, 0.0
  %37 = vadd.xlane.f32.xlu0 %v36
  %v38 = vpop.xlane.xlu0 %37
  %v39 = vsel %vm26, %v24, 0.0
  %40 = vadd.xlane.f32.xlu0 %v39
  %v41 = vpop.xlane.xlu0 %40
  %vm42 = vcmask 254976
  %v43 = vsel %vm42, %v25, 0.0
  %44 = vadd.xlane.f32.xlu0 %v43
  %v45 = vpop.xlane.xlu0 %44
  %v46 = vrcp.pop 32.0
  %v47 = vmul.f32 32.0, %v46
  %v48 = vsub.f32 1.0, %v47
  %v49 = vmul.f32 %v46, %v48
  %v50 = vadd.f32 %v46, %v49
  %vm51 = vweird.f32 %v46
  %v52 = vsel %vm51, %v46, %v50
  %v53 = vmul.f32 %v29, %v52
  %v54 = vmul.f32 %v32, %v52
  %v55 = vmul.f32 %v35, %v52
  %v56 = vmul.f32 %v38, %v52
  %v57 = vmul.f32 %v41, %v52
  %v58 = vmul.f32 %v45, %v52
  %v59 = vsub.f32 %v20, %v53
  %v60 = vsub.f32 %v21, %v54
  %v61 = vsub.f32 %v22, %v55
  %v62 = vsub.f32 %v23, %v56
  %v63 = vsub.f32 %v24, %v57
  %v64 = vsub.f32 %v25, %v58
  %v65 = vmul.f32 %v59, %v59
  %v66 = vmul.f32 %v60, %v60
  %v67 = vmul.f32 %v61, %v61
  %v68 = vmul.f32 %v62, %v62
  %v69 = vmul.f32 %v63, %v63
  %v70 = vmul.f32 %v64, %v64
  %v71 = vsel %vm26, %v65, 0.0
  %72 = vadd.xlane.f32.xlu0 %v71
  %v73 = vpop.xlane.xlu0 %72
  %v74 = vsel %vm26, %v66, 0.0
  %75 = vadd.xlane.f32.xlu0 %v74
  %v76 = vpop.xlane.xlu0 %75
  %v77 = vsel %vm26, %v67, 0.0
  %78 = vadd.xlane.f32.xlu0 %v77
  %v79 = vpop.xlane.xlu0 %78
  %v80 = vsel %vm26, %v68, 0.0
  %81 = vadd.xlane.f32.xlu0 %v80
  %v82 = vpop.xlane.xlu0 %81
  %v83 = vsel %vm26, %v69, 0.0
  %84 = vadd.xlane.f32.xlu0 %v83
  %v85 = vpop.xlane.xlu0 %84
  %v86 = vsel %vm42, %v70, 0.0
  %87 = vadd.xlane.f32.xlu0 %v86
  %v88 = vpop.xlane.xlu0 %87
  %v89 = vmul.f32 %v73, %v52
  %v90 = vmul.f32 %v76, %v52
  %v91 = vmul.f32 %v79, %v52
  %v92 = vmul.f32 %v82, %v52
  %v93 = vmul.f32 %v85, %v52
  %v94 = vmul.f32 %v88, %v52
  %v95 = vadd.f32 %v89, 1e-05
  %v96 = vadd.f32 %v90, 1e-05
  %v97 = vadd.f32 %v91, 1e-05
  %v98 = vadd.f32 %v92, 1e-05
  %v99 = vadd.f32 %v93, 1e-05
  %v100 = vadd.f32 %v94, 1e-05
  %v101 = vrsqrt.pop %v95
  %v102 = vmul.f32 %v101, %v95
  %v103 = vmul.f32 %v102, %v101
  %v104 = vmul.f32 0.5, %v103
  %v105 = vsub.f32 1.5, %v104
  %v106 = vmul.f32 %v101, %v105
  %vm107 = vweird.f32 %v95
  %vm108 = vweird.f32 %v101
  %vm109 = vmor %vm107, %vm108
  %v110 = vsel %vm109, %v101, %v106
  %v111 = vrsqrt.pop %v96
  %v112 = vmul.f32 %v111, %v96
  %v113 = vmul.f32 %v112, %v111
  %v114 = vmul.f32 0.5, %v113
  %v115 = vsub.f32 1.5, %v114
  %v116 = vmul.f32 %v111, %v115
  %vm117 = vweird.f32 %v96
  %vm118 = vweird.f32 %v111
  %vm119 = vmor %vm117, %vm118
  %v120 = vsel %vm119, %v111, %v116
  %v121 = vrsqrt.pop %v97
  %v122 = vmul.f32 %v121, %v97
  %v123 = vmul.f32 %v122, %v121
  %v124 = vmul.f32 0.5, %v123
  %v125 = vsub.f32 1.5, %v124
  %v126 = vmul.f32 %v121, %v125
  %vm127 = vweird.f32 %v97
  %vm128 = vweird.f32 %v121
  %vm129 = vmor %vm127, %vm128
  %v130 = vsel %vm129, %v121, %v126
  %v131 = vrsqrt.pop %v98
  %v132 = vmul.f32 %v131, %v98
  %v133 = vmul.f32 %v132, %v131
  %v134 = vmul.f32 0.5, %v133
  %v135 = vsub.f32 1.5, %v134
  %v136 = vmul.f32 %v131, %v135
  %vm137 = vweird.f32 %v98
  %vm138 = vweird.f32 %v131
  %vm139 = vmor %vm137, %vm138
  %v140 = vsel %vm139, %v131, %v136
  %v141 = vrsqrt.pop %v99
  %v142 = vmul.f32 %v141, %v99
  %v143 = vmul.f32 %v142, %v141
  %v144 = vmul.f32 0.5, %v143
  %v145 = vsub.f32 1.5, %v144
  %v146 = vmul.f32 %v141, %v145
  %vm147 = vweird.f32 %v99
  %vm148 = vweird.f32 %v141
  %vm149 = vmor %vm147, %vm148
  %v150 = vsel %vm149, %v141, %v146
  %v151 = vrsqrt.pop %v100
  %v152 = vmul.f32 %v151, %v100
  %v153 = vmul.f32 %v152, %v151
  %v154 = vmul.f32 0.5, %v153
  %v155 = vsub.f32 1.5, %v154
  %v156 = vmul.f32 %v151, %v155
  %vm157 = vweird.f32 %v100
  %vm158 = vweird.f32 %v151
  %vm159 = vmor %vm157, %vm158
  %v160 = vsel %vm159, %v151, %v156
  %v161 = vmul.f32 %v59, %v110
  %v162 = vmul.f32 %v60, %v120
  %v163 = vmul.f32 %v61, %v130
  %v164 = vmul.f32 %v62, %v140
  %v165 = vmul.f32 %v63, %v150
  %v166 = vmul.f32 %v64, %v160
  %v167 = vld [vmem:[%s1] sm:$0x1]
  %v169 = vperm.slane %v167, 0
  %v171 = vmul.f32 %v161, %v169
  %v172 = vmul.f32 %v162, %v169
  %v173 = vmul.f32 %v163, %v169
  %v174 = vmul.f32 %v164, %v169
  %v175 = vmul.f32 %v165, %v169
  %v176 = vmul.f32 %v166, %v169
  %v177 = vld [vmem:[%s2] sm:$0x1]
  %v179 = vperm.slane %v177, 0
  %v181 = vadd.f32 %v171, %v179
  %v182 = vadd.f32 %v172, %v179
  %v183 = vadd.f32 %v173, %v179
  %v184 = vadd.f32 %v174, %v179
  %v185 = vadd.f32 %v175, %v179
  %v186 = vadd.f32 %v176, %v179
  %v187 = vpack.c.bf16 %v181, %v181
  %v188 = vpack.c.bf16 %v182, %v182
  %v189 = vpack.c.bf16 %v183, %v183
  %v190 = vpack.c.bf16 %v184, %v184
  %v191 = vpack.c.bf16 %v185, %v185
  %v192 = vpack.c.bf16 %v186, %v186
  %vm193 = vcmask 257024
  %194 = vst.msk [vmem:[%s3] sm:$0xf] %vm193, %v187
  %195 = vst.msk [vmem:[%s3 + $0x4] sm:$0xf] %vm193, %v188
  %196 = vst.msk [vmem:[%s3 + $0x8] sm:$0xf] %vm193, %v189
  %197 = vst.msk [vmem:[%s3 + $0xc] sm:$0xf] %vm193, %v190
  %198 = vst.msk [vmem:[%s3 + $0x10] sm:$0xf] %vm193, %v191
  %vm199 = vcmask 253952
  %200 = vst.msk [vmem:[%s3 + $0x14] sm:$0x1] %vm199, %v192
  // Predicated region
  $region14: #{encode_image.14} parent=0 // pred_check
    _
  $region15: #{encode_image.14} parent=0 // pred_check_branch
    %202 = sbr.rel (0) target = $region17
  $region16: #{encode_image.14} parent=0 // pred_region
    _
  $region17: #{encode_image.14} parent=0 // pred_fallthru
    _
  // Predicated region
  $region18: #{encode_image.14} parent=0 // pred_check
    _
  $region19: #{encode_image.14} parent=0 // pred_check_branch
    %204 = sbr.rel (0) target = $region21
  $region20: #{encode_image.14} parent=0 // pred_region
    _
  $region21: #{encode_image.14} parent=0 // pred_fallthru
    _

// kernel: encode_image.15
$region0: #{encode_image.15}
  #allocation0 [shape = 'u32[]', space=smem, size = 0x4, offset = 0x4, fixed_abs, tag = 'smem constant byte address 0x4 - core index']
  #allocation1 [shape = 'u32[72,128]{1,0:T(1,128)}', space=vmem, size = 0x9000, scoped, tag = 'internal scratch']
  #allocation2 [shape = 'f32[42,96]{1,0:T(8,128)}', space=vmem, size = 0x6000, scoped, tag = 'scratch operand']
  %s0 = inlined_call_operand.vmem [shape: bf16[42,32], index: 0, kind: input, shape index: {}]
  %s1 = inlined_call_operand.vmem [shape: bf16[32,96], index: 1, kind: input, shape index: {}]
  %s2 = inlined_call_operand.vmem [shape: f32[1,32], index: 2, kind: input, shape index: {}]
  %s3 = inlined_call_operand.vmem [shape: f32[1,32], index: 3, kind: input, shape index: {}]
  %s4 = inlined_call_operand.vmem [shape: f32[1,96], index: 4, kind: input, shape index: {}]
  %s5 = inlined_call_operand.vmem [shape: bf16[42,96], index: 5, kind: output, shape index: {}]
  %s6 = sld [smem:[#allocation0]]
  $region38: #{encode_image.15} parent=0
    _
  %s8 = ssub.s32 1, %s6
  %s9 = scalar_select 0, %s8, %s6
  // Predicated region
  $region2: #{encode_image.15} parent=0 // pred_check
    _
  $region3: #{encode_image.15} parent=0 // pred_check_branch
    %11 = sbr.rel (0) target = $region5
  $region4: #{encode_image.15} parent=0 // pred_region
    _
  $region5: #{encode_image.15} parent=0 // pred_fallthru
    _
  // Predicated region
  $region6: #{encode_image.15} parent=0 // pred_check
    _
  $region7: #{encode_image.15} parent=0 // pred_check_branch
    %13 = sbr.rel (0) target = $region9
  $region8: #{encode_image.15} parent=0 // pred_region
    _
  $region9: #{encode_image.15} parent=0 // pred_fallthru
    _
  // Predicated region
  $region10: #{encode_image.15} parent=0 // pred_check
    _
  $region11: #{encode_image.15} parent=0 // pred_check_branch
    %15 = sbr.rel (0) target = $region13
  $region12: #{encode_image.15} parent=0 // pred_region
    _
  $region13: #{encode_image.15} parent=0 // pred_fallthru
    _
  // Predicated region
  $region14: #{encode_image.15} parent=0 // pred_check
    _
  $region15: #{encode_image.15} parent=0 // pred_check_branch
    %17 = sbr.rel (0) target = $region17
  $region16: #{encode_image.15} parent=0 // pred_region
    _
  $region17: #{encode_image.15} parent=0 // pred_fallthru
    _
  // Predicated region
  $region18: #{encode_image.15} parent=0 // pred_check
    _
  $region19: #{encode_image.15} parent=0 // pred_check_branch
    %19 = sbr.rel (0) target = $region21
  $region20: #{encode_image.15} parent=0 // pred_region
    _
  $region21: #{encode_image.15} parent=0 // pred_fallthru
    _
  %p21 = scmp.eq.s32.totalorder 0, 0
  // Predicated region
  $region22: #{encode_image.15} parent=0 // pred_check
    %p22 = pneg %p21
  $region23: #{encode_image.15} parent=0 // pred_check_branch
    %24 = sbr.rel (%p22) target = $region25
  $region24: #{encode_image.15} parent=0 // pred_region
    %vm25 = vcmask 785408
    %26 = vst.msk [vmem:[#allocation2] sm:$0xff] %vm25, 0.0
    %27 = vst.msk [vmem:[#allocation2 + $0x8] sm:$0xff] %vm25, 0.0
    %28 = vst.msk [vmem:[#allocation2 + $0x10] sm:$0xff] %vm25, 0.0
    %29 = vst.msk [vmem:[#allocation2 + $0x18] sm:$0xff] %vm25, 0.0
    %30 = vst.msk [vmem:[#allocation2 + $0x20] sm:$0xff] %vm25, 0.0
    %vm31 = vcmask 779264
    %32 = vst.msk [vmem:[#allocation2 + $0x28] sm:$0x3] %vm31, 0.0
  $region25: #{encode_image.15} parent=0 // pred_fallthru
    _
  %v33 = vld [vmem:[%s0] sm:$0xf]
  %v34 = vld [vmem:[%s0 + $0x4] sm:$0xf]
  %v35 = vld [vmem:[%s0 + $0x8] sm:$0xf]
  %v36 = vld [vmem:[%s0 + $0xc] sm:$0xf]
  %v37 = vld [vmem:[%s0 + $0x10] sm:$0xf]
  %v38 = vld [vmem:[%s0 + $0x14] sm:$0x1]
  %v39 = vunpack.c.l.bf16 %v33
  %v40 = vunpack.c.l.bf16 %v34
  %v41 = vunpack.c.l.bf16 %v35
  %v42 = vunpack.c.l.bf16 %v36
  %v43 = vunpack.c.l.bf16 %v37
  %v44 = vunpack.c.l.bf16 %v38
  %vm45 = vcmask 261120
  %v46 = vsel %vm45, %v39, 0.0
  %47 = vadd.xlane.f32.xlu0 %v46
  %v48 = vpop.xlane.xlu0 %47
  %v49 = vsel %vm45, %v40, 0.0
  %50 = vadd.xlane.f32.xlu0 %v49
  %v51 = vpop.xlane.xlu0 %50
  %v52 = vsel %vm45, %v41, 0.0
  %53 = vadd.xlane.f32.xlu0 %v52
  %v54 = vpop.xlane.xlu0 %53
  %v55 = vsel %vm45, %v42, 0.0
  %56 = vadd.xlane.f32.xlu0 %v55
  %v57 = vpop.xlane.xlu0 %56
  %v58 = vsel %vm45, %v43, 0.0
  %59 = vadd.xlane.f32.xlu0 %v58
  %v60 = vpop.xlane.xlu0 %59
  %vm61 = vcmask 254976
  %v62 = vsel %vm61, %v44, 0.0
  %63 = vadd.xlane.f32.xlu0 %v62
  %v64 = vpop.xlane.xlu0 %63
  %v65 = vrcp.pop 32.0
  %v66 = vmul.f32 32.0, %v65
  %v67 = vsub.f32 1.0, %v66
  %v68 = vmul.f32 %v65, %v67
  %v69 = vadd.f32 %v65, %v68
  %vm70 = vweird.f32 %v65
  %v71 = vsel %vm70, %v65, %v69
  %v72 = vmul.f32 %v48, %v71
  %v73 = vmul.f32 %v51, %v71
  %v74 = vmul.f32 %v54, %v71
  %v75 = vmul.f32 %v57, %v71
  %v76 = vmul.f32 %v60, %v71
  %v77 = vmul.f32 %v64, %v71
  %v78 = vsub.f32 %v39, %v72
  %v79 = vsub.f32 %v40, %v73
  %v80 = vsub.f32 %v41, %v74
  %v81 = vsub.f32 %v42, %v75
  %v82 = vsub.f32 %v43, %v76
  %v83 = vsub.f32 %v44, %v77
  %v84 = vmul.f32 %v78, %v78
  %v85 = vmul.f32 %v79, %v79
  %v86 = vmul.f32 %v80, %v80
  %v87 = vmul.f32 %v81, %v81
  %v88 = vmul.f32 %v82, %v82
  %v89 = vmul.f32 %v83, %v83
  %v90 = vsel %vm45, %v84, 0.0
  %91 = vadd.xlane.f32.xlu0 %v90
  %v92 = vpop.xlane.xlu0 %91
  %v93 = vsel %vm45, %v85, 0.0
  %94 = vadd.xlane.f32.xlu0 %v93
  %v95 = vpop.xlane.xlu0 %94
  %v96 = vsel %vm45, %v86, 0.0
  %97 = vadd.xlane.f32.xlu0 %v96
  %v98 = vpop.xlane.xlu0 %97
  %v99 = vsel %vm45, %v87, 0.0
  %100 = vadd.xlane.f32.xlu0 %v99
  %v101 = vpop.xlane.xlu0 %100
  %v102 = vsel %vm45, %v88, 0.0
  %103 = vadd.xlane.f32.xlu0 %v102
  %v104 = vpop.xlane.xlu0 %103
  %v105 = vsel %vm61, %v89, 0.0
  %106 = vadd.xlane.f32.xlu0 %v105
  %v107 = vpop.xlane.xlu0 %106
  %v108 = vmul.f32 %v92, %v71
  %v109 = vmul.f32 %v95, %v71
  %v110 = vmul.f32 %v98, %v71
  %v111 = vmul.f32 %v101, %v71
  %v112 = vmul.f32 %v104, %v71
  %v113 = vmul.f32 %v107, %v71
  %v114 = vadd.f32 %v108, 1e-05
  %v115 = vadd.f32 %v109, 1e-05
  %v116 = vadd.f32 %v110, 1e-05
  %v117 = vadd.f32 %v111, 1e-05
  %v118 = vadd.f32 %v112, 1e-05
  %v119 = vadd.f32 %v113, 1e-05
  %v120 = vrsqrt.pop %v114
  %v121 = vmul.f32 %v120, %v114
  %v122 = vmul.f32 %v121, %v120
  %v123 = vmul.f32 0.5, %v122
  %v124 = vsub.f32 1.5, %v123
  %v125 = vmul.f32 %v120, %v124
  %vm126 = vweird.f32 %v114
  %vm127 = vweird.f32 %v120
  %vm128 = vmor %vm126, %vm127
  %v129 = vsel %vm128, %v120, %v125
  %v130 = vrsqrt.pop %v115
  %v131 = vmul.f32 %v130, %v115
  %v132 = vmul.f32 %v131, %v130
  %v133 = vmul.f32 0.5, %v132
  %v134 = vsub.f32 1.5, %v133
  %v135 = vmul.f32 %v130, %v134
  %vm136 = vweird.f32 %v115
  %vm137 = vweird.f32 %v130
  %vm138 = vmor %vm136, %vm137
  %v139 = vsel %vm138, %v130, %v135
  %v140 = vrsqrt.pop %v116
  %v141 = vmul.f32 %v140, %v116
  %v142 = vmul.f32 %v141, %v140
  %v143 = vmul.f32 0.5, %v142
  %v144 = vsub.f32 1.5, %v143
  %v145 = vmul.f32 %v140, %v144
  %vm146 = vweird.f32 %v116
  %vm147 = vweird.f32 %v140
  %vm148 = vmor %vm146, %vm147
  %v149 = vsel %vm148, %v140, %v145
  %v150 = vrsqrt.pop %v117
  %v151 = vmul.f32 %v150, %v117
  %v152 = vmul.f32 %v151, %v150
  %v153 = vmul.f32 0.5, %v152
  %v154 = vsub.f32 1.5, %v153
  %v155 = vmul.f32 %v150, %v154
  %vm156 = vweird.f32 %v117
  %vm157 = vweird.f32 %v150
  %vm158 = vmor %vm156, %vm157
  %v159 = vsel %vm158, %v150, %v155
  %v160 = vrsqrt.pop %v118
  %v161 = vmul.f32 %v160, %v118
  %v162 = vmul.f32 %v161, %v160
  %v163 = vmul.f32 0.5, %v162
  %v164 = vsub.f32 1.5, %v163
  %v165 = vmul.f32 %v160, %v164
  %vm166 = vweird.f32 %v118
  %vm167 = vweird.f32 %v160
  %vm168 = vmor %vm166, %vm167
  %v169 = vsel %vm168, %v160, %v165
  %v170 = vrsqrt.pop %v119
  %v171 = vmul.f32 %v170, %v119
  %v172 = vmul.f32 %v171, %v170
  %v173 = vmul.f32 0.5, %v172
  %v174 = vsub.f32 1.5, %v173
  %v175 = vmul.f32 %v170, %v174
  %vm176 = vweird.f32 %v119
  %vm177 = vweird.f32 %v170
  %vm178 = vmor %vm176, %vm177
  %v179 = vsel %vm178, %v170, %v175
  %v180 = vmul.f32 %v78, %v129
  %v181 = vmul.f32 %v79, %v139
  %v182 = vmul.f32 %v80, %v149
  %v183 = vmul.f32 %v81, %v159
  %v184 = vmul.f32 %v82, %v169
  %v185 = vmul.f32 %v83, %v179
  %v186 = vld [vmem:[%s2] sm:$0x1]
  %v188 = vperm.slane %v186, 0
  %v190 = vmul.f32 %v180, %v188
  %v191 = vmul.f32 %v181, %v188
  %v192 = vmul.f32 %v182, %v188
  %v193 = vmul.f32 %v183, %v188
  %v194 = vmul.f32 %v184, %v188
  %v195 = vmul.f32 %v185, %v188
  %v196 = vld [vmem:[%s3] sm:$0x1]
  %v198 = vperm.slane %v196, 0
  %v200 = vadd.f32 %v190, %v198
  %v201 = vadd.f32 %v191, %v198
  %v202 = vadd.f32 %v192, %v198
  %v203 = vadd.f32 %v193, %v198
  %v204 = vadd.f32 %v194, %v198
  %v205 = vadd.f32 %v195, %v198
  %v206 = vpack.c.bf16 %v201, %v200
  %v207 = vpack.c.bf16 %v203, %v202
  %v208 = vpack.c.bf16 %v205, %v204
  %v209 = vld [vmem:[#allocation2] sm:$0xff]
  %v210 = vld [vmem:[#allocation2 + $0x8] sm:$0xff]
  %v211 = vld [vmem:[#allocation2 + $0x10] sm:$0xff]
  %v212 = vld [vmem:[#allocation2 + $0x18] sm:$0xff]
  %v213 = vld [vmem:[#allocation2 + $0x20] sm:$0xff]
  %v214 = vld [vmem:[#allocation2 + $0x28] sm:$0x3]
  %v215 = vld [vmem:[%s1] sm:$0xf]
  %v216 = vld [vmem:[%s1 + $0x4] sm:$0xf]
  %v217 = vld [vmem:[%s1 + $0x8] sm:$0xf]
  %v218 = vld [vmem:[%s1 + $0xc] sm:$0xf]
  %v223 = vunpack.c.l.b16 %v215
  %v224 = vunpack.c.l.b16 %v216
  %v225 = vunpack.c.l.b16 %v217
  %v226 = vunpack.c.l.b16 %v218
  %v227 = vpack.c.b16 %v224, %v223
  %v228 = vpack.c.b16 %v226, %v225
  %v232 = vsel %vm45, %v206, 0
  %v235 = vsel %vm45, %v207, 0
  %v238 = vsel %vm45, %v208, 0
  %240 = vmatpush.bf16.msra.mxu0 0
  %241 = vmatpush.bf16.msra.mxu0 0
  %242 = vmatpush.bf16.msra.mxu0 0
  %243 = vmatpush.bf16.msra.mxu0 0
  %244 = vmatpush.bf16.msra.mxu0 0
  %245 = vmatpush.bf16.msra.mxu0 0
  %246 = vmatpush.bf16.msra.mxu0 %v228
  %247 = vmatpush.bf16.msra.mxu0 %v227
  %248 = vmatmul.bf16.gmra.mxu0 %v232
  %v249 = vpop.f32.mrf.mxu0
  %v250 = vadd.f32 0.0, %v249
  %v251 = vpop.f32.mrf.mxu0
  %v252 = vadd.f32 0.0, %v251
  %253 = vmatmul.bf16.gmra.mxu0 %v235
  %v254 = vpop.f32.mrf.mxu0
  %v255 = vadd.f32 0.0, %v254
  %v256 = vpop.f32.mrf.mxu0
  %v257 = vadd.f32 0.0, %v256
  %258 = vmatmul.bf16.gmra.mxu0 %v238
  %v259 = vpop.f32.mrf.mxu0
  %v260 = vadd.f32 0.0, %v259
  %v261 = vpop.f32.mrf.mxu0
  %v262 = vadd.f32 0.0, %v261
  %263 = vdwg.mxu0
  %v264 = vadd.f32 %v209, %v250
  %v265 = vadd.f32 %v210, %v252
  %v266 = vadd.f32 %v211, %v255
  %v267 = vadd.f32 %v212, %v257
  %v268 = vadd.f32 %v213, %v260
  %v269 = vadd.f32 %v214, %v262
  %vm270 = vcmask 785408
  %271 = vst.msk [vmem:[#allocation2] sm:$0xff] %vm270, %v264
  %272 = vst.msk [vmem:[#allocation2 + $0x8] sm:$0xff] %vm270, %v265
  %273 = vst.msk [vmem:[#allocation2 + $0x10] sm:$0xff] %vm270, %v266
  %274 = vst.msk [vmem:[#allocation2 + $0x18] sm:$0xff] %vm270, %v267
  %275 = vst.msk [vmem:[#allocation2 + $0x20] sm:$0xff] %vm270, %v268
  %vm276 = vcmask 779264
  %277 = vst.msk [vmem:[#allocation2 + $0x28] sm:$0x3] %vm276, %v269
  // Predicated region
  $region26: #{encode_image.15} parent=0 // pred_check
    %p278 = pneg %p21
  $region27: #{encode_image.15} parent=0 // pred_check_branch
    %280 = sbr.rel (%p278) target = $region29
  $region28: #{encode_image.15} parent=0 // pred_region
    %v281 = vld [vmem:[#allocation2] sm:$0xff]
    %v282 = vld [vmem:[#allocation2 + $0x8] sm:$0xff]
    %v283 = vld [vmem:[#allocation2 + $0x10] sm:$0xff]
    %v284 = vld [vmem:[#allocation2 + $0x18] sm:$0xff]
    %v285 = vld [vmem:[#allocation2 + $0x20] sm:$0xff]
    %v286 = vld [vmem:[#allocation2 + $0x28] sm:$0x3]
    %v287 = vld [vmem:[%s4] sm:$0x1]
    %v289 = vperm.slane %v287, 0
    %v291 = vadd.f32 %v281, %v289
    %v292 = vadd.f32 %v282, %v289
    %v293 = vadd.f32 %v283, %v289
    %v294 = vadd.f32 %v284, %v289
    %v295 = vadd.f32 %v285, %v289
    %v296 = vadd.f32 %v286, %v289
    %v297 = vpack.c.bf16 %v291, %v291
    %v298 = vpack.c.bf16 %v292, %v292
    %v299 = vpack.c.bf16 %v293, %v293
    %v300 = vpack.c.bf16 %v294, %v294
    %v301 = vpack.c.bf16 %v295, %v295
    %v302 = vpack.c.bf16 %v296, %v296
    %vm303 = vcmask 781312
    %304 = vst.msk [vmem:[%s5] sm:$0xf] %vm303, %v297
    %305 = vst.msk [vmem:[%s5 + $0x4] sm:$0xf] %vm303, %v298
    %306 = vst.msk [vmem:[%s5 + $0x8] sm:$0xf] %vm303, %v299
    %307 = vst.msk [vmem:[%s5 + $0xc] sm:$0xf] %vm303, %v300
    %308 = vst.msk [vmem:[%s5 + $0x10] sm:$0xf] %vm303, %v301
    %vm309 = vcmask 778240
    %310 = vst.msk [vmem:[%s5 + $0x14] sm:$0x1] %vm309, %v302
  $region29: #{encode_image.15} parent=0 // pred_fallthru
    _
  // Predicated region
  $region30: #{encode_image.15} parent=0 // pred_check
    _
  $region31: #{encode_image.15} parent=0 // pred_check_branch
    %312 = sbr.rel (0) target = $region33
  $region32: #{encode_image.15} parent=0 // pred_region
    _
  $region33: #{encode_image.15} parent=0 // pred_fallthru
    _
  // Predicated region
  $region34: #{encode_image.15} parent=0 // pred_check
    _
  $region35: #{encode_image.15} parent=0 // pred_check_branch
    %314 = sbr.rel (0) target = $region37
  $region36: #{encode_image.15} parent=0 // pred_region
    _
  $region37: #{encode_image.15} parent=0 // pred_fallthru
    _

// kernel: encode_image.16
$region0: #{encode_image.16}
  #allocation0 [shape = 'u32[]', space=smem, size = 0x4, offset = 0x4, fixed_abs, tag = 'smem constant byte address 0x4 - core index']
  #allocation1 [shape = 'u32[72,128]{1,0:T(1,128)}', space=vmem, size = 0x9000, scoped, tag = 'internal scratch']
  %s0 = inlined_call_operand.vmem [shape: bf16[2,21,96], index: 0, kind: input, shape index: {}]
  %s1 = inlined_call_operand.vmem [shape: bf16[2,21,32], index: 1, kind: output, shape index: {}]
  %s2 = sld [smem:[#allocation0]]
  $region37: #{encode_image.16} parent=0
    _
  %s4 = ssub.s32 1, %s2
  %s5 = scalar_select 0, %s4, %s2
  loop: start=0, step=1, limit=4
  $region2: #{encode_image.16} parent=0 // loop_pre_header
    _
  $region3: #{encode_image.16} parent=0 // loop_header
    %s7 = sphi 0, %s11
    %p8 = scmp.ge.s32.totalorder %s7, 4
    %s17 = sphi 0, %s19
    %s20 = sphi 0, %s17
    %s21 = sphi 0, %s20
    %s37 = sphi 0, %s21
    %s43 = sphi 0, %s45
    %s46 = sphi 0, %s43
    %s47 = sphi 0, %s46
    %s63 = sphi 0, %s47
  $region4: #{encode_image.16} parent=0 // loop_header_branch
    %10 = sbr.rel (%p8) target = $region8
  $region5: #{encode_image.16} parent=0 // loop_body
    %s12 = ssub.s32 %s7, 1
    %s13 = ssub.s32 %s7, 2
    %s14 = sadd.s32 %s7, 1
    %s15 = ssub.s32 %s7, %s14
    %p16 = scmp.eq.s32.totalorder %s15, 0
    %s18 = sadd.s32 %s17, 1
    %s19 = scalar_select %p16, %s17, %s18
    %p22 = pneg %p16
    %p23 = scmp.eq.s32.totalorder %s7, 1
    %p24 = por %p22, %p23
    %p25 = scmp.ne.s32.totalorder %s17, %s20
    %p26 = scmp.eq.s32.totalorder %s7, 0
    %p27 = por %p25, %p26
    %p28 = scmp.ne.s32.totalorder %s17, %s20
    %p29 = scmp.eq.s32.totalorder %s12, 1
    %p30 = por %p28, %p29
    %p31 = scmp.ne.s32.totalorder %s20, %s21
    %p32 = scmp.eq.s32.totalorder %s12, 0
    %p33 = por %p31, %p32
    %p34 = scmp.ne.s32.totalorder %s20, %s21
    %p35 = scmp.eq.s32.totalorder %s13, 1
    %p36 = por %p34, %p35
    %p38 = scmp.ne.s32.totalorder %s21, %s37
    %p39 = scmp.eq.s32.totalorder %s13, 0
    %p40 = por %p38, %p39
    %s41 = ssub.s32 %s7, %s14
    %p42 = scmp.eq.s32.totalorder %s41, 0
    %s44 = sadd.s32 %s43, 1
    %s45 = scalar_select %p42, %s43, %s44
    %p48 = pneg %p42
    %p49 = scmp.eq.s32.totalorder %s7, 1
    %p50 = por %p48, %p49
    %p51 = scmp.ne.s32.totalorder %s43, %s46
    %p52 = scmp.eq.s32.totalorder %s7, 0
    %p53 = por %p51, %p52
    %p54 = scmp.ne.s32.totalorder %s43, %s46
    %p55 = scmp.eq.s32.totalorder %s12, 1
    %p56 = por %p54, %p55
    %p57 = scmp.ne.s32.totalorder %s46, %s47
    %p58 = scmp.eq.s32.totalorder %s12, 0
    %p59 = por %p57, %p58
    %p60 = scmp.ne.s32.totalorder %s46, %s47
    %p61 = scmp.eq.s32.totalorder %s13, 1
    %p62 = por %p60, %p61
    %p64 = scmp.ne.s32.totalorder %s47, %s63
    %p65 = scmp.eq.s32.totalorder %s13, 0
    %p66 = por %p64, %p65
    %p67 = scmp.le.s32.totalorder 1, %s7
    %p68 = scmp.lt.s32.totalorder %s7, 3
    %p69 = pnand %p67, %p68
    %p70 = pneg %p69
    // Predicated region
    $region9: #{encode_image.16} parent=5 // pred_check
      _
    $region10: #{encode_image.16} parent=5 // pred_check_branch
      %72 = sbr.rel (%p69) target = $region12
    $region11: #{encode_image.16} parent=5 // pred_region
      %s73 = ssub.s32 %s7, 1
    $region12: #{encode_image.16} parent=5 // pred_fallthru
      _
    %p74 = scmp.lt.s32.totalorder %s7, 2
    // Predicated region
    $region13: #{encode_image.16} parent=5 // pred_check
      %p75 = pneg %p74
    $region14: #{encode_image.16} parent=5 // pred_check_branch
      %77 = sbr.rel (%p75) target = $region16
    $region15: #{encode_image.16} parent=5 // pred_region
      // Predicated region
      $region17: #{encode_image.16} parent=15 // pred_check
        %p78 = pneg %p27
      $region18: #{encode_image.16} parent=15 // pred_check_branch
        %80 = sbr.rel (%p78) target = $region20
      $region19: #{encode_image.16} parent=15 // pred_region
        %p81 = scmp.lt.s32.totalorder %s7, 1
        %s82 = scalar_select %p81, %s7, 1
        %s83 = smul.addr %s82, 3
        %s84 = smul.addr %s83, 4
        %s85 = scalar_lea.vmem %s0, %s84
      $region20: #{encode_image.16} parent=15 // pred_fallthru
        _
    $region16: #{encode_image.16} parent=5 // pred_fallthru
      _
    %p86 = scmp.le.s32.totalorder 1, %s7
    %p87 = scmp.lt.s32.totalorder %s7, 3
    %p88 = pnand %p86, %p87
    %p89 = pneg %p88
    // Predicated region
    $region21: #{encode_image.16} parent=5 // pred_check
      _
    $region22: #{encode_image.16} parent=5 // pred_check_branch
      %91 = sbr.rel (%p88) target = $region24
    $region23: #{encode_image.16} parent=5 // pred_region
      %s92 = ssub.s32 %s7, 1
      %p93 = scmp.lt.s32.totalorder %s12, 1
      %s94 = scalar_select %p93, %s12, 1
      %s95 = smul.addr %s94, 3
      %s96 = smul.addr %s95, 4
      %s97 = scalar_lea.vmem %s0, %s96
      %p98 = pneg %p33
      %p99 = pneg %p30
      %p100 = pneg %p59
      %p101 = pneg %p56
      %p102 = scmp.lt.s32.totalorder %s12, 1
      %s103 = scalar_select %p102, %s12, 1
      %s104 = smul.addr %s103, 3
      %s105 = smul.addr %s104, 4
      %s106 = scalar_lea.vmem %s1, %s105
      %p107 = scmp.lt.s32.totalorder %s12, 1
      %s108 = scalar_select %p107, %s12, 1
      %s109 = smul.addr %s108, 3
      %s110 = smul.addr %s109, 4
      %s111 = scalar_lea.vmem %s0, %s110
      %p112 = scmp.lt.s32.totalorder %s12, 1
      %s113 = scalar_select %p112, %s12, 1
      %s114 = smul.addr %s113, 3
      %s115 = smul.addr %s114, 4
      %s116 = scalar_lea.vmem %s1, %s115
      %v118 = vld [vmem:[%s111] sm:$0xf]
      %v119 = vld [vmem:[%s111 + $0x4] sm:$0xf]
      %v120 = vld [vmem:[%s111 + $0x8] sm:$0x7]
      %v124 = vunpack.c.l.b16 %v118
      %v125 = vunpack.c.l.b16 %v119
      %v126 = vunpack.c.l.b16 %v120
      %v127 = vpack.c.b16 %v125, %v124
      %v128 = vpack.c.b16 %v126, %v126
      %129 = vrot.lane.b32.xlu0 %v127, 96
      %v130 = vpop.permute.xlu0 %129
      %131 = vrot.lane.b32.xlu0 %v128, 96
      %v132 = vpop.permute.xlu0 %131
      %vm133 = vcmask 64512
      %v135 = vsel %vm133, %v127, 0
      %v138 = vsel %vm133, %v128, 0
      %v141 = vsel %vm133, %v130, 0
      %v144 = vsel %vm133, %v132, 0
      %146 = vmatpush.bf16.xpose.msra.mxu0 0
      %147 = vmatpush.bf16.xpose.msra.mxu0 0
      %148 = vmatpush.bf16.xpose.msra.mxu0 0
      %149 = vmatpush.bf16.xpose.msra.mxu0 0
      %150 = vmatpush.bf16.xpose.msra.mxu0 0
      %151 = vmatpush.bf16.xpose.msra.mxu0 0
      %152 = vmatpush.bf16.xpose.msra.mxu0 %v144
      %153 = vmatpush.bf16.xpose.msra.mxu0 %v141
      %154 = vmatmul.bf16.gmra.mxu0 %v135
      %v155 = vpop.f32.mrf.mxu0
      %v156 = vadd.f32 0.0, %v155
      %v157 = vpop.f32.mrf.mxu0
      %v158 = vadd.f32 0.0, %v157
      %159 = vmatmul.bf16.gmra.mxu0 %v138
      %v160 = vpop.f32.mrf.mxu0
      %v161 = vadd.f32 0.0, %v160
      %v162 = vpop.f32.mrf.mxu0
      %163 = vdwg.mxu0
      %v164 = vmul.f32 %v156, 0.35355338
      %v165 = vmul.f32 %v158, 0.35355338
      %v166 = vmul.f32 %v161, 0.35355338
      %vm167 = vcmask 171008
      %v168 = vsel %vm167, %v164, -inf
      %169 = vmax.xlane.f32.xlu0 %v168
      %v170 = vpop.xlane.xlu0 %169
      %v171 = vsel %vm167, %v165, -inf
      %172 = vmax.xlane.f32.xlu0 %v171
      %v173 = vpop.xlane.xlu0 %172
      %vm174 = vcmask 167936
      %v175 = vsel %vm174, %v166, -inf
      %176 = vmax.xlane.f32.xlu0 %v175
      %v177 = vpop.xlane.xlu0 %176
      %v178 = vsub.f32 %v164, %v170
      %v179 = vsub.f32 %v165, %v173
      %v180 = vsub.f32 %v166, %v177
      %v181 = vmul.f32 %v178, 1.442695
      %v182 = vpow.pop %v181
      %v183 = vmul.f32 %v179, 1.442695
      %v184 = vpow.pop %v183
      %v185 = vmul.f32 %v180, 1.442695
      %v186 = vpow.pop %v185
      %v187 = vsel %vm167, %v182, 0.0
      %188 = vadd.xlane.f32.xlu0 %v187
      %v189 = vpop.xlane.xlu0 %188
      %v190 = vsel %vm167, %v184, 0.0
      %191 = vadd.xlane.f32.xlu0 %v190
      %v192 = vpop.xlane.xlu0 %191
      %v193 = vsel %vm174, %v186, 0.0
      %194 = vadd.xlane.f32.xlu0 %v193
      %v195 = vpop.xlane.xlu0 %194
      %v196 = vrcp.pop %v189
      %v197 = vrcp.pop %v192
      %v198 = vrcp.pop %v195
      %v199 = vmul.f32 %v182, %v196
      %v200 = vmul.f32 %v184, %v197
      %v201 = vmul.f32 %v186, %v198
      %v202 = vpack.c.bf16 %v200, %v199
      %v203 = vpack.c.bf16 %v201, %v201
      %204 = vrot.lane.b32.xlu0 %v127, 64
      %v205 = vpop.permute.xlu0 %204
      %206 = vrot.lane.b32.xlu0 %v128, 64
      %v207 = vpop.permute.xlu0 %206
      %v210 = vsel %vm167, %v202, 0
      %v213 = vsel %vm167, %v203, 0
      %vm215 = vcmask 1041408
      %vm216 = vcmask 1042432
      %v217 = vsel %vm215, 4294967295, 65535
      %v218 = vsel %vm216, %v217, 0
      %v220 = vand.u32 %v207, %v218
      %222 = vmatpush.bf16.msra.mxu0 0
      %223 = vmatpush.bf16.msra.mxu0 0
      %224 = vmatpush.bf16.msra.mxu0 0
      %225 = vmatpush.bf16.msra.mxu0 0
      %226 = vmatpush.bf16.msra.mxu0 0
      %227 = vmatpush.bf16.msra.mxu0 0
      %228 = vmatpush.bf16.msra.mxu0 %v220
      %229 = vmatpush.bf16.msra.mxu0 %v205
      %230 = vmatmul.bf16.gmra.mxu0 %v210
      %v231 = vpop.f32.mrf.mxu0
      %v232 = vadd.f32 0.0, %v231
      %v233 = vpop.f32.mrf.mxu0
      %v234 = vadd.f32 0.0, %v233
      %235 = vmatmul.bf16.gmra.mxu0 %v213
      %v236 = vpop.f32.mrf.mxu0
      %v237 = vadd.f32 0.0, %v236
      %v238 = vpop.f32.mrf.mxu0
      %239 = vdwg.mxu0
      %240 = vrot.lane.b32.xlu0 %v127, 120
      %v241 = vpop.permute.xlu0 %240
      %242 = vrot.lane.b32.xlu0 %v128, 120
      %v243 = vpop.permute.xlu0 %242
      %244 = vrot.lane.b32.xlu0 %v127, 88
      %v245 = vpop.permute.xlu0 %244
      %246 = vrot.lane.b32.xlu0 %v128, 88
      %v247 = vpop.permute.xlu0 %246
      %v249 = vsel %vm133, %v241, 0
      %v252 = vsel %vm133, %v243, 0
      %v255 = vsel %vm133, %v245, 0
      %v258 = vsel %vm133, %v247, 0
      %260 = vmatpush.bf16.xpose.msra.mxu0 0
      %261 = vmatpush.bf16.xpose.msra.mxu0 0
      %262 = vmatpush.bf16.xpose.msra.mxu0 0
      %263 = vmatpush.bf16.xpose.msra.mxu0 0
      %264 = vmatpush.bf16.xpose.msra.mxu0 0
      %265 = vmatpush.bf16.xpose.msra.mxu0 0
      %266 = vmatpush.bf16.xpose.msra.mxu0 %v258
      %267 = vmatpush.bf16.xpose.msra.mxu0 %v255
      %268 = vmatmul.bf16.gmra.mxu0 %v249
      %v269 = vpop.f32.mrf.mxu0
      %v270 = vadd.f32 0.0, %v269
      %v271 = vpop.f32.mrf.mxu0
      %v272 = vadd.f32 0.0, %v271
      %273 = vmatmul.bf16.gmra.mxu0 %v252
      %v274 = vpop.f32.mrf.mxu0
      %v275 = vadd.f32 0.0, %v274
      %v276 = vpop.f32.mrf.mxu0
      %277 = vdwg.mxu0
      %v278 = vmul.f32 %v270, 0.35355338
      %v279 = vmul.f32 %v272, 0.35355338
      %v280 = vmul.f32 %v275, 0.35355338
      %v281 = vsel %vm167, %v278, -inf
      %282 = vmax.xlane.f32.xlu0 %v281
      %v283 = vpop.xlane.xlu0 %282
      %v284 = vsel %vm167, %v279, -inf
      %285 = vmax.xlane.f32.xlu0 %v284
      %v286 = vpop.xlane.xlu0 %285
      %v287 = vsel %vm174, %v280, -inf
      %288 = vmax.xlane.f32.xlu0 %v287
      %v289 = vpop.xlane.xlu0 %288
      %v290 = vsub.f32 %v278, %v283
      %v291 = vsub.f32 %v279, %v286
      %v292 = vsub.f32 %v280, %v289
      %v293 = vmul.f32 %v290, 1.442695
      %v294 = vpow.pop %v293
      %v295 = vmul.f32 %v291, 1.442695
      %v296 = vpow.pop %v295
      %v297 = vmul.f32 %v292, 1.442695
      %v298 = vpow.pop %v297
      %v299 = vsel %vm167, %v294, 0.0
      %300 = vadd.xlane.f32.xlu0 %v299
      %v301 = vpop.xlane.xlu0 %300
      %v302 = vsel %vm167, %v296, 0.0
      %303 = vadd.xlane.f32.xlu0 %v302
      %v304 = vpop.xlane.xlu0 %303
      %v305 = vsel %vm174, %v298, 0.0
      %306 = vadd.xlane.f32.xlu0 %v305
      %v307 = vpop.xlane.xlu0 %306
      %v308 = vrcp.pop %v301
      %v309 = vrcp.pop %v304
      %v310 = vrcp.pop %v307
      %v311 = vmul.f32 %v294, %v308
      %v312 = vmul.f32 %v296, %v309
      %v313 = vmul.f32 %v298, %v310
      %v314 = vpack.c.bf16 %v312, %v311
      %v315 = vpack.c.bf16 %v313, %v313
      %316 = vrot.lane.b32.xlu0 %v127, 56
      %v317 = vpop.permute.xlu0 %316
      %318 = vrot.lane.b32.xlu0 %v128, 56
      %v319 = vpop.permute.xlu0 %318
      %v322 = vsel %vm167, %v314, 0
      %v325 = vsel %vm167, %v315, 0
      %v328 = vand.u32 %v319, %v218
      %330 = vmatpush.bf16.msra.mxu0 0
      %331 = vmatpush.bf16.msra.mxu0 0
      %332 = vmatpush.bf16.msra.mxu0 0
      %333 = vmatpush.bf16.msra.mxu0 0
      %334 = vmatpush.bf16.msra.mxu0 0
      %335 = vmatpush.bf16.msra.mxu0 0
      %336 = vmatpush.bf16.msra.mxu0 %v328
      %337 = vmatpush.bf16.msra.mxu0 %v317
      %338 = vmatmul.bf16.gmra.mxu0 %v322
      %v339 = vpop.f32.mrf.mxu0
      %v340 = vadd.f32 0.0, %v339
      %v341 = vpop.f32.mrf.mxu0
      %v342 = vadd.f32 0.0, %v341
      %343 = vmatmul.bf16.gmra.mxu0 %v325
      %v344 = vpop.f32.mrf.mxu0
      %v345 = vadd.f32 0.0, %v344
      %v346 = vpop.f32.mrf.mxu0
      %347 = vdwg.mxu0
      %348 = vrot.lane.b32.xlu0 %v127, 112
      %v349 = vpop.permute.xlu0 %348
      %350 = vrot.lane.b32.xlu0 %v128, 112
      %v351 = vpop.permute.xlu0 %350
      %352 = vrot.lane.b32.xlu0 %v127, 80
      %v353 = vpop.permute.xlu0 %352
      %354 = vrot.lane.b32.xlu0 %v128, 80
      %v355 = vpop.permute.xlu0 %354
      %v357 = vsel %vm133, %v349, 0
      %v360 = vsel %vm133, %v351, 0
      %v363 = vsel %vm133, %v353, 0
      %v366 = vsel %vm133, %v355, 0
      %368 = vmatpush.bf16.xpose.msra.mxu0 0
      %369 = vmatpush.bf16.xpose.msra.mxu0 0
      %370 = vmatpush.bf16.xpose.msra.mxu0 0
      %371 = vmatpush.bf16.xpose.msra.mxu0 0
      %372 = vmatpush.bf16.xpose.msra.mxu0 0
      %373 = vmatpush.bf16.xpose.msra.mxu0 0
      %374 = vmatpush.bf16.xpose.msra.mxu0 %v366
      %375 = vmatpush.bf16.xpose.msra.mxu0 %v363
      %376 = vmatmul.bf16.gmra.mxu0 %v357
      %v377 = vpop.f32.mrf.mxu0
      %v378 = vadd.f32 0.0, %v377
      %v379 = vpop.f32.mrf.mxu0
      %v380 = vadd.f32 0.0, %v379
      %381 = vmatmul.bf16.gmra.mxu0 %v360
      %v382 = vpop.f32.mrf.mxu0
      %v383 = vadd.f32 0.0, %v382
      %v384 = vpop.f32.mrf.mxu0
      %385 = vdwg.mxu0
      %v386 = vmul.f32 %v378, 0.35355338
      %v387 = vmul.f32 %v380, 0.35355338
      %v388 = vmul.f32 %v383, 0.35355338
      %v389 = vsel %vm167, %v386, -inf
      %390 = vmax.xlane.f32.xlu0 %v389
      %v391 = vpop.xlane.xlu0 %390
      %v392 = vsel %vm167, %v387, -inf
      %393 = vmax.xlane.f32.xlu0 %v392
      %v394 = vpop.xlane.xlu0 %393
      %v395 = vsel %vm174, %v388, -inf
      %396 = vmax.xlane.f32.xlu0 %v395
      %v397 = vpop.xlane.xlu0 %396
      %v398 = vsub.f32 %v386, %v391
      %v399 = vsub.f32 %v387, %v394
      %v400 = vsub.f32 %v388, %v397
      %v401 = vmul.f32 %v398, 1.442695
      %v402 = vpow.pop %v401
      %v403 = vmul.f32 %v399, 1.442695
      %v404 = vpow.pop %v403
      %v405 = vmul.f32 %v400, 1.442695
      %v406 = vpow.pop %v405
      %v407 = vsel %vm167, %v402, 0.0
      %408 = vadd.xlane.f32.xlu0 %v407
      %v409 = vpop.xlane.xlu0 %408
      %v410 = vsel %vm167, %v404, 0.0
      %411 = vadd.xlane.f32.xlu0 %v410
      %v412 = vpop.xlane.xlu0 %411
      %v413 = vsel %vm174, %v406, 0.0
      %414 = vadd.xlane.f32.xlu0 %v413
      %v415 = vpop.xlane.xlu0 %414
      %v416 = vrcp.pop %v409
      %v417 = vrcp.pop %v412
      %v418 = vrcp.pop %v415
      %v419 = vmul.f32 %v402, %v416
      %v420 = vmul.f32 %v404, %v417
      %v421 = vmul.f32 %v406, %v418
      %v422 = vpack.c.bf16 %v420, %v419
      %v423 = vpack.c.bf16 %v421, %v421
      %424 = vrot.lane.b32.xlu0 %v127, 48
      %v425 = vpop.permute.xlu0 %424
      %426 = vrot.lane.b32.xlu0 %v128, 48
      %v427 = vpop.permute.xlu0 %426
      %v430 = vsel %vm167, %v422, 0
      %v433 = vsel %vm167, %v423, 0
      %v436 = vand.u32 %v427, %v218
      %438 = vmatpush.bf16.msra.mxu0 0
      %439 = vmatpush.bf16.msra.mxu0 0
      %440 = vmatpush.bf16.msra.mxu0 0
      %441 = vmatpush.bf16.msra.mxu0 0
      %442 = vmatpush.bf16.msra.mxu0 0
      %443 = vmatpush.bf16.msra.mxu0 0
      %444 = vmatpush.bf16.msra.mxu0 %v436
      %445 = vmatpush.bf16.msra.mxu0 %v425
      %446 = vmatmul.bf16.gmra.mxu0 %v430
      %v447 = vpop.f32.mrf.mxu0
      %v448 = vadd.f32 0.0, %v447
      %v449 = vpop.f32.mrf.mxu0
      %v450 = vadd.f32 0.0, %v449
      %451 = vmatmul.bf16.gmra.mxu0 %v433
      %v452 = vpop.f32.mrf.mxu0
      %v453 = vadd.f32 0.0, %v452
      %v454 = vpop.f32.mrf.mxu0
      %455 = vdwg.mxu0
      %456 = vrot.lane.b32.xlu0 %v127, 104
      %v457 = vpop.permute.xlu0 %456
      %458 = vrot.lane.b32.xlu0 %v128, 104
      %v459 = vpop.permute.xlu0 %458
      %460 = vrot.lane.b32.xlu0 %v127, 72
      %v461 = vpop.permute.xlu0 %460
      %462 = vrot.lane.b32.xlu0 %v128, 72
      %v463 = vpop.permute.xlu0 %462
      %v465 = vsel %vm133, %v457, 0
      %v468 = vsel %vm133, %v459, 0
      %v471 = vsel %vm133, %v461, 0
      %v474 = vsel %vm133, %v463, 0
      %476 = vmatpush.bf16.xpose.msra.mxu0 0
      %477 = vmatpush.bf16.xpose.msra.mxu0 0
      %478 = vmatpush.bf16.xpose.msra.mxu0 0
      %479 = vmatpush.bf16.xpose.msra.mxu0 0
      %480 = vmatpush.bf16.xpose.msra.mxu0 0
      %481 = vmatpush.bf16.xpose.msra.mxu0 0
      %482 = vmatpush.bf16.xpose.msra.mxu0 %v474
      %483 = vmatpush.bf16.xpose.msra.mxu0 %v471
      %484 = vmatmul.bf16.gmra.mxu0 %v465
      %v485 = vpop.f32.mrf.mxu0
      %v486 = vadd.f32 0.0, %v485
      %v487 = vpop.f32.mrf.mxu0
      %v488 = vadd.f32 0.0, %v487
      %489 = vmatmul.bf16.gmra.mxu0 %v468
      %v490 = vpop.f32.mrf.mxu0
      %v491 = vadd.f32 0.0, %v490
      %v492 = vpop.f32.mrf.mxu0
      %493 = vdwg.mxu0
      %v494 = vmul.f32 %v486, 0.35355338
      %v495 = vmul.f32 %v488, 0.35355338
      %v496 = vmul.f32 %v491, 0.35355338
      %v497 = vsel %vm167, %v494, -inf
      %498 = vmax.xlane.f32.xlu0 %v497
      %v499 = vpop.xlane.xlu0 %498
      %v500 = vsel %vm167, %v495, -inf
      %501 = vmax.xlane.f32.xlu0 %v500
      %v502 = vpop.xlane.xlu0 %501
      %v503 = vsel %vm174, %v496, -inf
      %504 = vmax.xlane.f32.xlu0 %v503
      %v505 = vpop.xlane.xlu0 %504
      %v506 = vsub.f32 %v494, %v499
      %v507 = vsub.f32 %v495, %v502
      %v508 = vsub.f32 %v496, %v505
      %v509 = vmul.f32 %v506, 1.442695
      %v510 = vpow.pop %v509
      %v511 = vmul.f32 %v507, 1.442695
      %v512 = vpow.pop %v511
      %v513 = vmul.f32 %v508, 1.442695
      %v514 = vpow.pop %v513
      %v515 = vsel %vm167, %v510, 0.0
      %516 = vadd.xlane.f32.xlu0 %v515
      %v517 = vpop.xlane.xlu0 %516
      %v518 = vsel %vm167, %v512, 0.0
      %519 = vadd.xlane.f32.xlu0 %v518
      %v520 = vpop.xlane.xlu0 %519
      %v521 = vsel %vm174, %v514, 0.0
      %522 = vadd.xlane.f32.xlu0 %v521
      %v523 = vpop.xlane.xlu0 %522
      %v524 = vrcp.pop %v517
      %v525 = vrcp.pop %v520
      %v526 = vrcp.pop %v523
      %v527 = vmul.f32 %v510, %v524
      %v528 = vmul.f32 %v512, %v525
      %v529 = vmul.f32 %v514, %v526
      %v530 = vpack.c.bf16 %v528, %v527
      %v531 = vpack.c.bf16 %v529, %v529
      %532 = vrot.lane.b32.xlu0 %v127, 40
      %v533 = vpop.permute.xlu0 %532
      %534 = vrot.lane.b32.xlu0 %v128, 40
      %v535 = vpop.permute.xlu0 %534
      %v538 = vsel %vm167, %v530, 0
      %v541 = vsel %vm167, %v531, 0
      %v544 = vand.u32 %v535, %v218
      %546 = vmatpush.bf16.msra.mxu0 0
      %547 = vmatpush.bf16.msra.mxu0 0
      %548 = vmatpush.bf16.msra.mxu0 0
      %549 = vmatpush.bf16.msra.mxu0 0
      %550 = vmatpush.bf16.msra.mxu0 0
      %551 = vmatpush.bf16.msra.mxu0 0
      %552 = vmatpush.bf16.msra.mxu0 %v544
      %553 = vmatpush.bf16.msra.mxu0 %v533
      %554 = vmatmul.bf16.gmra.mxu0 %v538
      %v555 = vpop.f32.mrf.mxu0
      %v556 = vadd.f32 0.0, %v555
      %v557 = vpop.f32.mrf.mxu0
      %v558 = vadd.f32 0.0, %v557
      %559 = vmatmul.bf16.gmra.mxu0 %v541
      %v560 = vpop.f32.mrf.mxu0
      %v561 = vadd.f32 0.0, %v560
      %v562 = vpop.f32.mrf.mxu0
      %563 = vdwg.mxu0
      %567 = vrot.lane.b32.xlu0 %v340, 8
      %v568 = vpop.permute.xlu0 %567
      %569 = vrot.lane.b32.xlu0 %v342, 8
      %v570 = vpop.permute.xlu0 %569
      %571 = vrot.lane.b32.xlu0 %v345, 8
      %v572 = vpop.permute.xlu0 %571
      %579 = vrot.lane.b32.xlu0 %v448, 16
      %v580 = vpop.permute.xlu0 %579
      %581 = vrot.lane.b32.xlu0 %v450, 16
      %v582 = vpop.permute.xlu0 %581
      %583 = vrot.lane.b32.xlu0 %v453, 16
      %v584 = vpop.permute.xlu0 %583
      %591 = vrot.lane.b32.xlu0 %v556, 24
      %v592 = vpop.permute.xlu0 %591
      %593 = vrot.lane.b32.xlu0 %v558, 24
      %v594 = vpop.permute.xlu0 %593
      %595 = vrot.lane.b32.xlu0 %v561, 24
      %v596 = vpop.permute.xlu0 %595
      %v600 = vsel %vm133, %v232, %v568
      %v601 = vsel %vm133, %v234, %v570
      %v602 = vsel %vm133, %v237, %v572
      %vm603 = vcmask 130048
      %v604 = vsel %vm603, %v600, %v580
      %v605 = vsel %vm603, %v601, %v582
      %v606 = vsel %vm603, %v602, %v584
      %vm607 = vcmask 195584
      %v608 = vsel %vm607, %v604, %v592
      %v609 = vsel %vm607, %v605, %v594
      %v610 = vsel %vm607, %v606, %v596
      %v611 = vpack.c.bf16 %v608, %v608
      %v612 = vpack.c.bf16 %v609, %v609
      %v613 = vpack.c.bf16 %v610, %v610
      %vm614 = vcmask 257024
      %615 = vst.msk [vmem:[%s116] sm:$0xf] %vm614, %v611
      %616 = vst.msk [vmem:[%s116 + $0x4] sm:$0xf] %vm614, %v612
      %vm617 = vcmask 256000
      %vm618 = vsmask.f32 2304
      %vm619 = vmand %vm617, %vm618
      %v620 = vld [vmem:[%s116 + $0x8] sm:$0x7]
      %v621 = vsel %vm619, %v613, %v620
      %622 = vst [vmem:[%s116 + $0x8] sm:$0x7] %v621
      %p623 = scmp.lt.s32.totalorder %s12, 1
      %s624 = scalar_select %p623, %s12, 1
      %s625 = smul.addr %s624, 3
      %s626 = smul.addr %s625, 4
      %s627 = scalar_lea.vmem %s1, %s626
      // Predicated region
      $region25: #{encode_image.16} parent=23 // pred_check
        %p628 = pneg %p56
      $region26: #{encode_image.16} parent=23 // pred_check_branch
        %630 = sbr.rel (%p628) target = $region28
      $region27: #{encode_image.16} parent=23 // pred_region
        _
      $region28: #{encode_image.16} parent=23 // pred_fallthru
        _
    $region24: #{encode_image.16} parent=5 // pred_fallthru
      _
    %p631 = scmp.le.s32.totalorder 2, %s7
    // Predicated region
    $region29: #{encode_image.16} parent=5 // pred_check
      %p632 = pneg %p631
    $region30: #{encode_image.16} parent=5 // pred_check_branch
      %634 = sbr.rel (%p632) target = $region32
    $region31: #{encode_image.16} parent=5 // pred_region
      %s635 = ssub.s32 %s7, 2
      // Predicated region
      $region33: #{encode_image.16} parent=31 // pred_check
        %p636 = pneg %p62
      $region34: #{encode_image.16} parent=31 // pred_check_branch
        %638 = sbr.rel (%p636) target = $region36
      $region35: #{encode_image.16} parent=31 // pred_region
        %p639 = scmp.lt.s32.totalorder %s13, 1
        %s640 = scalar_select %p639, %s13, 1
        %s641 = smul.addr %s640, 3
        %s642 = smul.addr %s641, 4
        %s643 = scalar_lea.vmem %s1, %s642
      $region36: #{encode_image.16} parent=31 // pred_fallthru
        _
    $region32: #{encode_image.16} parent=5 // pred_fallthru
      _
  $region6: #{encode_image.16} parent=0 // loop_footer
    %s11 = sadd.s32 1, %s7
  $region7: #{encode_image.16} parent=0 // loop_footer_branch
    %6 = sbr.rel target = $region3
  $region8: #{encode_image.16} parent=0 // loop_exit
    _

// kernel: encode_image.17
$region0: #{encode_image.17}
  #allocation0 [shape = 'u32[]', space=smem, size = 0x4, offset = 0x4, fixed_abs, tag = 'smem constant byte address 0x4 - core index']
  #allocation1 [shape = 'u32[72,128]{1,0:T(1,128)}', space=vmem, size = 0x9000, scoped, tag = 'internal scratch']
  #allocation2 [shape = 'f32[42,32]{1,0:T(8,128)}', space=vmem, size = 0x6000, scoped, tag = 'scratch operand']
  %s0 = inlined_call_operand.vmem [shape: bf16[42,32], index: 0, kind: input, shape index: {}]
  %s1 = inlined_call_operand.vmem [shape: bf16[32,32], index: 1, kind: input, shape index: {}]
  %s2 = inlined_call_operand.vmem [shape: f32[1,32], index: 2, kind: input, shape index: {}]
  %s3 = inlined_call_operand.vmem [shape: bf16[42,32], index: 3, kind: input, shape index: {}]
  %s4 = inlined_call_operand.vmem [shape: bf16[42,32], index: 4, kind: output, shape index: {}]
  %s5 = sld [smem:[#allocation0]]
  $region34: #{encode_image.17} parent=0
    _
  %s7 = ssub.s32 1, %s5
  %s8 = scalar_select 0, %s7, %s5
  // Predicated region
  $region2: #{encode_image.17} parent=0 // pred_check
    _
  $region3: #{encode_image.17} parent=0 // pred_check_branch
    %10 = sbr.rel (0) target = $region5
  $region4: #{encode_image.17} parent=0 // pred_region
    _
  $region5: #{encode_image.17} parent=0 // pred_fallthru
    _
  // Predicated region
  $region6: #{encode_image.17} parent=0 // pred_check
    _
  $region7: #{encode_image.17} parent=0 // pred_check_branch
    %12 = sbr.rel (0) target = $region9
  $region8: #{encode_image.17} parent=0 // pred_region
    _
  $region9: #{encode_image.17} parent=0 // pred_fallthru
    _
  // Predicated region
  $region10: #{encode_image.17} parent=0 // pred_check
    _
  $region11: #{encode_image.17} parent=0 // pred_check_branch
    %14 = sbr.rel (0) target = $region13
  $region12: #{encode_image.17} parent=0 // pred_region
    _
  $region13: #{encode_image.17} parent=0 // pred_fallthru
    _
  // Predicated region
  $region14: #{encode_image.17} parent=0 // pred_check
    _
  $region15: #{encode_image.17} parent=0 // pred_check_branch
    %16 = sbr.rel (0) target = $region17
  $region16: #{encode_image.17} parent=0 // pred_region
    _
  $region17: #{encode_image.17} parent=0 // pred_fallthru
    _
  %p18 = scmp.eq.s32.totalorder 0, 0
  // Predicated region
  $region18: #{encode_image.17} parent=0 // pred_check
    %p19 = pneg %p18
  $region19: #{encode_image.17} parent=0 // pred_check_branch
    %21 = sbr.rel (%p19) target = $region21
  $region20: #{encode_image.17} parent=0 // pred_region
    %vm22 = vcmask 261120
    %23 = vst.msk [vmem:[#allocation2] sm:$0xff] %vm22, 0.0
    %24 = vst.msk [vmem:[#allocation2 + $0x8] sm:$0xff] %vm22, 0.0
    %25 = vst.msk [vmem:[#allocation2 + $0x10] sm:$0xff] %vm22, 0.0
    %26 = vst.msk [vmem:[#allocation2 + $0x18] sm:$0xff] %vm22, 0.0
    %27 = vst.msk [vmem:[#allocation2 + $0x20] sm:$0xff] %vm22, 0.0
    %vm28 = vcmask 254976
    %29 = vst.msk [vmem:[#allocation2 + $0x28] sm:$0x3] %vm28, 0.0
  $region21: #{encode_image.17} parent=0 // pred_fallthru
    _
  %v30 = vld [vmem:[%s0] sm:$0xf]
  %v31 = vld [vmem:[%s0 + $0x4] sm:$0xf]
  %v32 = vld [vmem:[%s0 + $0x8] sm:$0xf]
  %v33 = vld [vmem:[%s0 + $0xc] sm:$0xf]
  %v34 = vld [vmem:[%s0 + $0x10] sm:$0xf]
  %v35 = vld [vmem:[%s0 + $0x14] sm:$0x1]
  %v36 = vld [vmem:[#allocation2] sm:$0xff]
  %v37 = vld [vmem:[#allocation2 + $0x8] sm:$0xff]
  %v38 = vld [vmem:[#allocation2 + $0x10] sm:$0xff]
  %v39 = vld [vmem:[#allocation2 + $0x18] sm:$0xff]
  %v40 = vld [vmem:[#allocation2 + $0x20] sm:$0xff]
  %v41 = vld [vmem:[#allocation2 + $0x28] sm:$0x3]
  %v42 = vld [vmem:[%s1] sm:$0xf]
  %v43 = vld [vmem:[%s1 + $0x4] sm:$0xf]
  %v44 = vld [vmem:[%s1 + $0x8] sm:$0xf]
  %v45 = vld [vmem:[%s1 + $0xc] sm:$0xf]
  %v52 = vunpack.c.l.b16 %v30
  %v53 = vunpack.c.l.b16 %v31
  %v54 = vunpack.c.l.b16 %v32
  %v55 = vunpack.c.l.b16 %v33
  %v56 = vunpack.c.l.b16 %v34
  %v57 = vunpack.c.l.b16 %v35
  %v58 = vpack.c.b16 %v53, %v52
  %v59 = vpack.c.b16 %v55, %v54
  %v60 = vpack.c.b16 %v57, %v56
  %v65 = vunpack.c.l.b16 %v42
  %v66 = vunpack.c.l.b16 %v43
  %v67 = vunpack.c.l.b16 %v44
  %v68 = vunpack.c.l.b16 %v45
  %v69 = vpack.c.b16 %v66, %v65
  %v70 = vpack.c.b16 %v68, %v67
  %vm73 = vcmask 261120
  %v75 = vsel %vm73, %v58, 0
  %v78 = vsel %vm73, %v59, 0
  %v81 = vsel %vm73, %v60, 0
  %83 = vmatpush.bf16.msra.mxu0 0
  %84 = vmatpush.bf16.msra.mxu0 0
  %85 = vmatpush.bf16.msra.mxu0 0
  %86 = vmatpush.bf16.msra.mxu0 0
  %87 = vmatpush.bf16.msra.mxu0 0
  %88 = vmatpush.bf16.msra.mxu0 0
  %89 = vmatpush.bf16.msra.mxu0 %v70
  %90 = vmatpush.bf16.msra.mxu0 %v69
  %91 = vmatmul.bf16.gmra.mxu0 %v75
  %v92 = vpop.f32.mrf.mxu0
  %v93 = vadd.f32 0.0, %v92
  %v94 = vpop.f32.mrf.mxu0
  %v95 = vadd.f32 0.0, %v94
  %96 = vmatmul.bf16.gmra.mxu0 %v78
  %v97 = vpop.f32.mrf.mxu0
  %v98 = vadd.f32 0.0, %v97
  %v99 = vpop.f32.mrf.mxu0
  %v100 = vadd.f32 0.0, %v99
  %101 = vmatmul.bf16.gmra.mxu0 %v81
  %v102 = vpop.f32.mrf.mxu0
  %v103 = vadd.f32 0.0, %v102
  %v104 = vpop.f32.mrf.mxu0
  %v105 = vadd.f32 0.0, %v104
  %106 = vdwg.mxu0
  %v107 = vadd.f32 %v36, %v93
  %v108 = vadd.f32 %v37, %v95
  %v109 = vadd.f32 %v38, %v98
  %v110 = vadd.f32 %v39, %v100
  %v111 = vadd.f32 %v40, %v103
  %v112 = vadd.f32 %v41, %v105
  %113 = vst.msk [vmem:[#allocation2] sm:$0xff] %vm73, %v107
  %114 = vst.msk [vmem:[#allocation2 + $0x8] sm:$0xff] %vm73, %v108
  %115 = vst.msk [vmem:[#allocation2 + $0x10] sm:$0xff] %vm73, %v109
  %116 = vst.msk [vmem:[#allocation2 + $0x18] sm:$0xff] %vm73, %v110
  %117 = vst.msk [vmem:[#allocation2 + $0x20] sm:$0xff] %vm73, %v111
  %vm118 = vcmask 254976
  %119 = vst.msk [vmem:[#allocation2 + $0x28] sm:$0x3] %vm118, %v112
  // Predicated region
  $region22: #{encode_image.17} parent=0 // pred_check
    %p120 = pneg %p18
  $region23: #{encode_image.17} parent=0 // pred_check_branch
    %122 = sbr.rel (%p120) target = $region25
  $region24: #{encode_image.17} parent=0 // pred_region
    %v123 = vld [vmem:[#allocation2] sm:$0xff]
    %v124 = vld [vmem:[#allocation2 + $0x8] sm:$0xff]
    %v125 = vld [vmem:[#allocation2 + $0x10] sm:$0xff]
    %v126 = vld [vmem:[#allocation2 + $0x18] sm:$0xff]
    %v127 = vld [vmem:[#allocation2 + $0x20] sm:$0xff]
    %v128 = vld [vmem:[#allocation2 + $0x28] sm:$0x3]
    %v129 = vld [vmem:[%s2] sm:$0x1]
    %v131 = vperm.slane %v129, 0
    %v133 = vadd.f32 %v123, %v131
    %v134 = vadd.f32 %v124, %v131
    %v135 = vadd.f32 %v125, %v131
    %v136 = vadd.f32 %v126, %v131
    %v137 = vadd.f32 %v127, %v131
    %v138 = vadd.f32 %v128, %v131
    %v139 = vld [vmem:[%s3] sm:$0xf]
    %v140 = vld [vmem:[%s3 + $0x4] sm:$0xf]
    %v141 = vld [vmem:[%s3 + $0x8] sm:$0xf]
    %v142 = vld [vmem:[%s3 + $0xc] sm:$0xf]
    %v143 = vld [vmem:[%s3 + $0x10] sm:$0xf]
    %v144 = vld [vmem:[%s3 + $0x14] sm:$0x1]
    %v145 = vunpack.c.l.bf16 %v139
    %v146 = vunpack.c.l.bf16 %v140
    %v147 = vunpack.c.l.bf16 %v141
    %v148 = vunpack.c.l.bf16 %v142
    %v149 = vunpack.c.l.bf16 %v143
    %v150 = vunpack.c.l.bf16 %v144
    %v151 = vadd.f32 %v133, %v145
    %v152 = vadd.f32 %v134, %v146
    %v153 = vadd.f32 %v135, %v147
    %v154 = vadd.f32 %v136, %v148
    %v155 = vadd.f32 %v137, %v149
    %v156 = vadd.f32 %v138, %v150
    %v157 = vpack.c.bf16 %v151, %v151
    %v158 = vpack.c.bf16 %v152, %v152
    %v159 = vpack.c.bf16 %v153, %v153
    %v160 = vpack.c.bf16 %v154, %v154
    %v161 = vpack.c.bf16 %v155, %v155
    %v162 = vpack.c.bf16 %v156, %v156
    %vm163 = vcmask 257024
    %164 = vst.msk [vmem:[%s4] sm:$0xf] %vm163, %v157
    %165 = vst.msk [vmem:[%s4 + $0x4] sm:$0xf] %vm163, %v158
    %166 = vst.msk [vmem:[%s4 + $0x8] sm:$0xf] %vm163, %v159
    %167 = vst.msk [vmem:[%s4 + $0xc] sm:$0xf] %vm163, %v160
    %168 = vst.msk [vmem:[%s4 + $0x10] sm:$0xf] %vm163, %v161
    %vm169 = vcmask 253952
    %170 = vst.msk [vmem:[%s4 + $0x14] sm:$0x1] %vm169, %v162
  $region25: #{encode_image.17} parent=0 // pred_fallthru
    _
  // Predicated region
  $region26: #{encode_image.17} parent=0 // pred_check
    _
  $region27: #{encode_image.17} parent=0 // pred_check_branch
    %172 = sbr.rel (0) target = $region29
  $region28: #{encode_image.17} parent=0 // pred_region
    _
  $region29: #{encode_image.17} parent=0 // pred_fallthru
    _
  // Predicated region
  $region30: #{encode_image.17} parent=0 // pred_check
    _
  $region31: #{encode_image.17} parent=0 // pred_check_branch
    %174 = sbr.rel (0) target = $region33
  $region32: #{encode_image.17} parent=0 // pred_region
    _
  $region33: #{encode_image.17} parent=0 // pred_fallthru
    _

// kernel: encode_image.18
$region0: #{encode_image.18}
  #allocation0 [shape = 'u32[]', space=smem, size = 0x4, offset = 0x4, fixed_abs, tag = 'smem constant byte address 0x4 - core index']
  #allocation1 [shape = 'u32[72,128]{1,0:T(1,128)}', space=vmem, size = 0x9000, scoped, tag = 'internal scratch']
  #allocation2 [shape = 'f32[42,128]{1,0:T(8,128)}', space=vmem, size = 0x6000, scoped, tag = 'scratch operand']
  %s0 = inlined_call_operand.vmem [shape: bf16[42,32], index: 0, kind: input, shape index: {}]
  %s1 = inlined_call_operand.vmem [shape: bf16[32,128], index: 1, kind: input, shape index: {}]
  %s2 = inlined_call_operand.vmem [shape: f32[1,32], index: 2, kind: input, shape index: {}]
  %s3 = inlined_call_operand.vmem [shape: f32[1,32], index: 3, kind: input, shape index: {}]
  %s4 = inlined_call_operand.vmem [shape: f32[1,128], index: 4, kind: input, shape index: {}]
  %s5 = inlined_call_operand.vmem [shape: bf16[42,128], index: 5, kind: output, shape index: {}]
  %s6 = sld [smem:[#allocation0]]
  $region38: #{encode_image.18} parent=0
    _
  %s8 = ssub.s32 1, %s6
  %s9 = scalar_select 0, %s8, %s6
  // Predicated region
  $region2: #{encode_image.18} parent=0 // pred_check
    _
  $region3: #{encode_image.18} parent=0 // pred_check_branch
    %11 = sbr.rel (0) target = $region5
  $region4: #{encode_image.18} parent=0 // pred_region
    _
  $region5: #{encode_image.18} parent=0 // pred_fallthru
    _
  // Predicated region
  $region6: #{encode_image.18} parent=0 // pred_check
    _
  $region7: #{encode_image.18} parent=0 // pred_check_branch
    %13 = sbr.rel (0) target = $region9
  $region8: #{encode_image.18} parent=0 // pred_region
    _
  $region9: #{encode_image.18} parent=0 // pred_fallthru
    _
  // Predicated region
  $region10: #{encode_image.18} parent=0 // pred_check
    _
  $region11: #{encode_image.18} parent=0 // pred_check_branch
    %15 = sbr.rel (0) target = $region13
  $region12: #{encode_image.18} parent=0 // pred_region
    _
  $region13: #{encode_image.18} parent=0 // pred_fallthru
    _
  // Predicated region
  $region14: #{encode_image.18} parent=0 // pred_check
    _
  $region15: #{encode_image.18} parent=0 // pred_check_branch
    %17 = sbr.rel (0) target = $region17
  $region16: #{encode_image.18} parent=0 // pred_region
    _
  $region17: #{encode_image.18} parent=0 // pred_fallthru
    _
  // Predicated region
  $region18: #{encode_image.18} parent=0 // pred_check
    _
  $region19: #{encode_image.18} parent=0 // pred_check_branch
    %19 = sbr.rel (0) target = $region21
  $region20: #{encode_image.18} parent=0 // pred_region
    _
  $region21: #{encode_image.18} parent=0 // pred_fallthru
    _
  %p21 = scmp.eq.s32.totalorder 0, 0
  // Predicated region
  $region22: #{encode_image.18} parent=0 // pred_check
    %p22 = pneg %p21
  $region23: #{encode_image.18} parent=0 // pred_check_branch
    %24 = sbr.rel (%p22) target = $region25
  $region24: #{encode_image.18} parent=0 // pred_region
    %25 = vst [vmem:[#allocation2] sm:$0xff] 0.0
    %26 = vst [vmem:[#allocation2 + $0x8] sm:$0xff] 0.0
    %27 = vst [vmem:[#allocation2 + $0x10] sm:$0xff] 0.0
    %28 = vst [vmem:[#allocation2 + $0x18] sm:$0xff] 0.0
    %29 = vst [vmem:[#allocation2 + $0x20] sm:$0xff] 0.0
    %30 = vst [vmem:[#allocation2 + $0x28] sm:$0x3] 0.0
  $region25: #{encode_image.18} parent=0 // pred_fallthru
    _
  %v31 = vld [vmem:[%s0] sm:$0xf]
  %v32 = vld [vmem:[%s0 + $0x4] sm:$0xf]
  %v33 = vld [vmem:[%s0 + $0x8] sm:$0xf]
  %v34 = vld [vmem:[%s0 + $0xc] sm:$0xf]
  %v35 = vld [vmem:[%s0 + $0x10] sm:$0xf]
  %v36 = vld [vmem:[%s0 + $0x14] sm:$0x1]
  %v37 = vunpack.c.l.bf16 %v31
  %v38 = vunpack.c.l.bf16 %v32
  %v39 = vunpack.c.l.bf16 %v33
  %v40 = vunpack.c.l.bf16 %v34
  %v41 = vunpack.c.l.bf16 %v35
  %v42 = vunpack.c.l.bf16 %v36
  %vm43 = vcmask 261120
  %v44 = vsel %vm43, %v37, 0.0
  %45 = vadd.xlane.f32.xlu0 %v44
  %v46 = vpop.xlane.xlu0 %45
  %v47 = vsel %vm43, %v38, 0.0
  %48 = vadd.xlane.f32.xlu0 %v47
  %v49 = vpop.xlane.xlu0 %48
  %v50 = vsel %vm43, %v39, 0.0
  %51 = vadd.xlane.f32.xlu0 %v50
  %v52 = vpop.xlane.xlu0 %51
  %v53 = vsel %vm43, %v40, 0.0
  %54 = vadd.xlane.f32.xlu0 %v53
  %v55 = vpop.xlane.xlu0 %54
  %v56 = vsel %vm43, %v41, 0.0
  %57 = vadd.xlane.f32.xlu0 %v56
  %v58 = vpop.xlane.xlu0 %57
  %vm59 = vcmask 254976
  %v60 = vsel %vm59, %v42, 0.0
  %61 = vadd.xlane.f32.xlu0 %v60
  %v62 = vpop.xlane.xlu0 %61
  %v63 = vrcp.pop 32.0
  %v64 = vmul.f32 32.0, %v63
  %v65 = vsub.f32 1.0, %v64
  %v66 = vmul.f32 %v63, %v65
  %v67 = vadd.f32 %v63, %v66
  %vm68 = vweird.f32 %v63
  %v69 = vsel %vm68, %v63, %v67
  %v70 = vmul.f32 %v46, %v69
  %v71 = vmul.f32 %v49, %v69
  %v72 = vmul.f32 %v52, %v69
  %v73 = vmul.f32 %v55, %v69
  %v74 = vmul.f32 %v58, %v69
  %v75 = vmul.f32 %v62, %v69
  %v76 = vsub.f32 %v37, %v70
  %v77 = vsub.f32 %v38, %v71
  %v78 = vsub.f32 %v39, %v72
  %v79 = vsub.f32 %v40, %v73
  %v80 = vsub.f32 %v41, %v74
  %v81 = vsub.f32 %v42, %v75
  %v82 = vmul.f32 %v76, %v76
  %v83 = vmul.f32 %v77, %v77
  %v84 = vmul.f32 %v78, %v78
  %v85 = vmul.f32 %v79, %v79
  %v86 = vmul.f32 %v80, %v80
  %v87 = vmul.f32 %v81, %v81
  %v88 = vsel %vm43, %v82, 0.0
  %89 = vadd.xlane.f32.xlu0 %v88
  %v90 = vpop.xlane.xlu0 %89
  %v91 = vsel %vm43, %v83, 0.0
  %92 = vadd.xlane.f32.xlu0 %v91
  %v93 = vpop.xlane.xlu0 %92
  %v94 = vsel %vm43, %v84, 0.0
  %95 = vadd.xlane.f32.xlu0 %v94
  %v96 = vpop.xlane.xlu0 %95
  %v97 = vsel %vm43, %v85, 0.0
  %98 = vadd.xlane.f32.xlu0 %v97
  %v99 = vpop.xlane.xlu0 %98
  %v100 = vsel %vm43, %v86, 0.0
  %101 = vadd.xlane.f32.xlu0 %v100
  %v102 = vpop.xlane.xlu0 %101
  %v103 = vsel %vm59, %v87, 0.0
  %104 = vadd.xlane.f32.xlu0 %v103
  %v105 = vpop.xlane.xlu0 %104
  %v106 = vmul.f32 %v90, %v69
  %v107 = vmul.f32 %v93, %v69
  %v108 = vmul.f32 %v96, %v69
  %v109 = vmul.f32 %v99, %v69
  %v110 = vmul.f32 %v102, %v69
  %v111 = vmul.f32 %v105, %v69
  %v112 = vadd.f32 %v106, 1e-05
  %v113 = vadd.f32 %v107, 1e-05
  %v114 = vadd.f32 %v108, 1e-05
  %v115 = vadd.f32 %v109, 1e-05
  %v116 = vadd.f32 %v110, 1e-05
  %v117 = vadd.f32 %v111, 1e-05
  %v118 = vrsqrt.pop %v112
  %v119 = vmul.f32 %v118, %v112
  %v120 = vmul.f32 %v119, %v118
  %v121 = vmul.f32 0.5, %v120
  %v122 = vsub.f32 1.5, %v121
  %v123 = vmul.f32 %v118, %v122
  %vm124 = vweird.f32 %v112
  %vm125 = vweird.f32 %v118
  %vm126 = vmor %vm124, %vm125
  %v127 = vsel %vm126, %v118, %v123
  %v128 = vrsqrt.pop %v113
  %v129 = vmul.f32 %v128, %v113
  %v130 = vmul.f32 %v129, %v128
  %v131 = vmul.f32 0.5, %v130
  %v132 = vsub.f32 1.5, %v131
  %v133 = vmul.f32 %v128, %v132
  %vm134 = vweird.f32 %v113
  %vm135 = vweird.f32 %v128
  %vm136 = vmor %vm134, %vm135
  %v137 = vsel %vm136, %v128, %v133
  %v138 = vrsqrt.pop %v114
  %v139 = vmul.f32 %v138, %v114
  %v140 = vmul.f32 %v139, %v138
  %v141 = vmul.f32 0.5, %v140
  %v142 = vsub.f32 1.5, %v141
  %v143 = vmul.f32 %v138, %v142
  %vm144 = vweird.f32 %v114
  %vm145 = vweird.f32 %v138
  %vm146 = vmor %vm144, %vm145
  %v147 = vsel %vm146, %v138, %v143
  %v148 = vrsqrt.pop %v115
  %v149 = vmul.f32 %v148, %v115
  %v150 = vmul.f32 %v149, %v148
  %v151 = vmul.f32 0.5, %v150
  %v152 = vsub.f32 1.5, %v151
  %v153 = vmul.f32 %v148, %v152
  %vm154 = vweird.f32 %v115
  %vm155 = vweird.f32 %v148
  %vm156 = vmor %vm154, %vm155
  %v157 = vsel %vm156, %v148, %v153
  %v158 = vrsqrt.pop %v116
  %v159 = vmul.f32 %v158, %v116
  %v160 = vmul.f32 %v159, %v158
  %v161 = vmul.f32 0.5, %v160
  %v162 = vsub.f32 1.5, %v161
  %v163 = vmul.f32 %v158, %v162
  %vm164 = vweird.f32 %v116
  %vm165 = vweird.f32 %v158
  %vm166 = vmor %vm164, %vm165
  %v167 = vsel %vm166, %v158, %v163
  %v168 = vrsqrt.pop %v117
  %v169 = vmul.f32 %v168, %v117
  %v170 = vmul.f32 %v169, %v168
  %v171 = vmul.f32 0.5, %v170
  %v172 = vsub.f32 1.5, %v171
  %v173 = vmul.f32 %v168, %v172
  %vm174 = vweird.f32 %v117
  %vm175 = vweird.f32 %v168
  %vm176 = vmor %vm174, %vm175
  %v177 = vsel %vm176, %v168, %v173
  %v178 = vmul.f32 %v76, %v127
  %v179 = vmul.f32 %v77, %v137
  %v180 = vmul.f32 %v78, %v147
  %v181 = vmul.f32 %v79, %v157
  %v182 = vmul.f32 %v80, %v167
  %v183 = vmul.f32 %v81, %v177
  %v184 = vld [vmem:[%s2] sm:$0x1]
  %v186 = vperm.slane %v184, 0
  %v188 = vmul.f32 %v178, %v186
  %v189 = vmul.f32 %v179, %v186
  %v190 = vmul.f32 %v180, %v186
  %v191 = vmul.f32 %v181, %v186
  %v192 = vmul.f32 %v182, %v186
  %v193 = vmul.f32 %v183, %v186
  %v194 = vld [vmem:[%s3] sm:$0x1]
  %v196 = vperm.slane %v194, 0
  %v198 = vadd.f32 %v188, %v196
  %v199 = vadd.f32 %v189, %v196
  %v200 = vadd.f32 %v190, %v196
  %v201 = vadd.f32 %v191, %v196
  %v202 = vadd.f32 %v192, %v196
  %v203 = vadd.f32 %v193, %v196
  %v204 = vpack.c.bf16 %v199, %v198
  %v205 = vpack.c.bf16 %v201, %v200
  %v206 = vpack.c.bf16 %v203, %v202
  %v207 = vld [vmem:[#allocation2] sm:$0xff]
  %v208 = vld [vmem:[#allocation2 + $0x8] sm:$0xff]
  %v209 = vld [vmem:[#allocation2 + $0x10] sm:$0xff]
  %v210 = vld [vmem:[#allocation2 + $0x18] sm:$0xff]
  %v211 = vld [vmem:[#allocation2 + $0x20] sm:$0xff]
  %v212 = vld [vmem:[#allocation2 + $0x28] sm:$0x3]
  %v213 = vld [vmem:[%s1] sm:$0xf]
  %v214 = vld [vmem:[%s1 + $0x4] sm:$0xf]
  %v215 = vld [vmem:[%s1 + $0x8] sm:$0xf]
  %v216 = vld [vmem:[%s1 + $0xc] sm:$0xf]
  %v221 = vunpack.c.l.b16 %v213
  %v222 = vunpack.c.l.b16 %v214
  %v223 = vunpack.c.l.b16 %v215
  %v224 = vunpack.c.l.b16 %v216
  %v225 = vpack.c.b16 %v222, %v221
  %v226 = vpack.c.b16 %v224, %v223
  %v230 = vsel %vm43, %v204, 0
  %v233 = vsel %vm43, %v205, 0
  %v236 = vsel %vm43, %v206, 0
  %238 = vmatpush.bf16.msra.mxu0 0
  %239 = vmatpush.bf16.msra.mxu0 0
  %240 = vmatpush.bf16.msra.mxu0 0
  %241 = vmatpush.bf16.msra.mxu0 0
  %242 = vmatpush.bf16.msra.mxu0 0
  %243 = vmatpush.bf16.msra.mxu0 0
  %244 = vmatpush.bf16.msra.mxu0 %v226
  %245 = vmatpush.bf16.msra.mxu0 %v225
  %246 = vmatmul.bf16.gmra.mxu0 %v230
  %v247 = vpop.f32.mrf.mxu0
  %v248 = vadd.f32 0.0, %v247
  %v249 = vpop.f32.mrf.mxu0
  %v250 = vadd.f32 0.0, %v249
  %251 = vmatmul.bf16.gmra.mxu0 %v233
  %v252 = vpop.f32.mrf.mxu0
  %v253 = vadd.f32 0.0, %v252
  %v254 = vpop.f32.mrf.mxu0
  %v255 = vadd.f32 0.0, %v254
  %256 = vmatmul.bf16.gmra.mxu0 %v236
  %v257 = vpop.f32.mrf.mxu0
  %v258 = vadd.f32 0.0, %v257
  %v259 = vpop.f32.mrf.mxu0
  %v260 = vadd.f32 0.0, %v259
  %261 = vdwg.mxu0
  %v262 = vadd.f32 %v207, %v248
  %v263 = vadd.f32 %v208, %v250
  %v264 = vadd.f32 %v209, %v253
  %v265 = vadd.f32 %v210, %v255
  %v266 = vadd.f32 %v211, %v258
  %v267 = vadd.f32 %v212, %v260
  %268 = vst [vmem:[#allocation2] sm:$0xff] %v262
  %269 = vst [vmem:[#allocation2 + $0x8] sm:$0xff] %v263
  %270 = vst [vmem:[#allocation2 + $0x10] sm:$0xff] %v264
  %271 = vst [vmem:[#allocation2 + $0x18] sm:$0xff] %v265
  %272 = vst [vmem:[#allocation2 + $0x20] sm:$0xff] %v266
  %273 = vst [vmem:[#allocation2 + $0x28] sm:$0x3] %v267
  // Predicated region
  $region26: #{encode_image.18} parent=0 // pred_check
    %p274 = pneg %p21
  $region27: #{encode_image.18} parent=0 // pred_check_branch
    %276 = sbr.rel (%p274) target = $region29
  $region28: #{encode_image.18} parent=0 // pred_region
    %v277 = vld [vmem:[#allocation2] sm:$0xff]
    %v278 = vld [vmem:[#allocation2 + $0x8] sm:$0xff]
    %v279 = vld [vmem:[#allocation2 + $0x10] sm:$0xff]
    %v280 = vld [vmem:[#allocation2 + $0x18] sm:$0xff]
    %v281 = vld [vmem:[#allocation2 + $0x20] sm:$0xff]
    %v282 = vld [vmem:[#allocation2 + $0x28] sm:$0x3]
    %v283 = vld [vmem:[%s4] sm:$0x1]
    %v285 = vperm.slane %v283, 0
    %v287 = vadd.f32 %v277, %v285
    %v288 = vadd.f32 %v278, %v285
    %v289 = vadd.f32 %v279, %v285
    %v290 = vadd.f32 %v280, %v285
    %v291 = vadd.f32 %v281, %v285
    %v292 = vadd.f32 %v282, %v285
    %v293 = vmul.f32 %v287, 1.702
    %v294 = vmul.f32 %v288, 1.702
    %v295 = vmul.f32 %v289, 1.702
    %v296 = vmul.f32 %v290, 1.702
    %v297 = vmul.f32 %v291, 1.702
    %v298 = vmul.f32 %v292, 1.702
    %v299 = vxor.u32 %v293, 2147483648
    %v300 = vxor.u32 %v294, 2147483648
    %v301 = vxor.u32 %v295, 2147483648
    %v302 = vxor.u32 %v296, 2147483648
    %v303 = vxor.u32 %v297, 2147483648
    %v304 = vxor.u32 %v298, 2147483648
    %v305 = vmul.f32 %v299, 1.442695
    %v306 = vpow.pop %v305
    %v307 = vmul.f32 %v300, 1.442695
    %v308 = vpow.pop %v307
    %v309 = vmul.f32 %v301, 1.442695
    %v310 = vpow.pop %v309
    %v311 = vmul.f32 %v302, 1.442695
    %v312 = vpow.pop %v311
    %v313 = vmul.f32 %v303, 1.442695
    %v314 = vpow.pop %v313
    %v315 = vmul.f32 %v304, 1.442695
    %v316 = vpow.pop %v315
    %v317 = vadd.f32 %v306, 1.0
    %v318 = vadd.f32 %v308, 1.0
    %v319 = vadd.f32 %v310, 1.0
    %v320 = vadd.f32 %v312, 1.0
    %v321 = vadd.f32 %v314, 1.0
    %v322 = vadd.f32 %v316, 1.0
    %v323 = vrcp.pop %v317
    %v324 = vmul.f32 %v317, %v323
    %v325 = vsub.f32 1.0, %v324
    %v326 = vmul.f32 %v323, %v325
    %v327 = vadd.f32 %v323, %v326
    %vm328 = vweird.f32 %v317
    %vm329 = vweird.f32 %v323
    %vm330 = vmor %vm328, %vm329
    %v331 = vsel %vm330, %v323, %v327
    %v332 = vand.u32 2147483647, %v317
    %vm333 = vcmp.eq.f32.partialorder %v332, 8.507059e+37
    %v334 = vand.u32 %v317, 2147483648
    %v335 = vor.u32 1.1754944e-38, %v334
    %v336 = vsel %vm333, %v335, %v331
    %v337 = vmul.f32 1.0, %v336
    %v338 = vrcp.pop %v318
    %v339 = vmul.f32 %v318, %v338
    %v340 = vsub.f32 1.0, %v339
    %v341 = vmul.f32 %v338, %v340
    %v342 = vadd.f32 %v338, %v341
    %vm343 = vweird.f32 %v318
    %vm344 = vweird.f32 %v338
    %vm345 = vmor %vm343, %vm344
    %v346 = vsel %vm345, %v338, %v342
    %v347 = vand.u32 2147483647, %v318
    %vm348 = vcmp.eq.f32.partialorder %v347, 8.507059e+37
    %v349 = vand.u32 %v318, 2147483648
    %v350 = vor.u32 1.1754944e-38, %v349
    %v351 = vsel %vm348, %v350, %v346
    %v352 = vmul.f32 1.0, %v351
    %v353 = vrcp.pop %v319
    %v354 = vmul.f32 %v319, %v353
    %v355 = vsub.f32 1.0, %v354
    %v356 = vmul.f32 %v353, %v355
    %v357 = vadd.f32 %v353, %v356
    %vm358 = vweird.f32 %v319
    %vm359 = vweird.f32 %v353
    %vm360 = vmor %vm358, %vm359
    %v361 = vsel %vm360, %v353, %v357
    %v362 = vand.u32 2147483647, %v319
    %vm363 = vcmp.eq.f32.partialorder %v362, 8.507059e+37
    %v364 = vand.u32 %v319, 2147483648
    %v365 = vor.u32 1.1754944e-38, %v364
    %v366 = vsel %vm363, %v365, %v361
    %v367 = vmul.f32 1.0, %v366
    %v368 = vrcp.pop %v320
    %v369 = vmul.f32 %v320, %v368
    %v370 = vsub.f32 1.0, %v369
    %v371 = vmul.f32 %v368, %v370
    %v372 = vadd.f32 %v368, %v371
    %vm373 = vweird.f32 %v320
    %vm374 = vweird.f32 %v368
    %vm375 = vmor %vm373, %vm374
    %v376 = vsel %vm375, %v368, %v372
    %v377 = vand.u32 2147483647, %v320
    %vm378 = vcmp.eq.f32.partialorder %v377, 8.507059e+37
    %v379 = vand.u32 %v320, 2147483648
    %v380 = vor.u32 1.1754944e-38, %v379
    %v381 = vsel %vm378, %v380, %v376
    %v382 = vmul.f32 1.0, %v381
    %v383 = vrcp.pop %v321
    %v384 = vmul.f32 %v321, %v383
    %v385 = vsub.f32 1.0, %v384
    %v386 = vmul.f32 %v383, %v385
    %v387 = vadd.f32 %v383, %v386
    %vm388 = vweird.f32 %v321
    %vm389 = vweird.f32 %v383
    %vm390 = vmor %vm388, %vm389
    %v391 = vsel %vm390, %v383, %v387
    %v392 = vand.u32 2147483647, %v321
    %vm393 = vcmp.eq.f32.partialorder %v392, 8.507059e+37
    %v394 = vand.u32 %v321, 2147483648
    %v395 = vor.u32 1.1754944e-38, %v394
    %v396 = vsel %vm393, %v395, %v391
    %v397 = vmul.f32 1.0, %v396
    %v398 = vrcp.pop %v322
    %v399 = vmul.f32 %v322, %v398
    %v400 = vsub.f32 1.0, %v399
    %v401 = vmul.f32 %v398, %v400
    %v402 = vadd.f32 %v398, %v401
    %vm403 = vweird.f32 %v322
    %vm404 = vweird.f32 %v398
    %vm405 = vmor %vm403, %vm404
    %v406 = vsel %vm405, %v398, %v402
    %v407 = vand.u32 2147483647, %v322
    %vm408 = vcmp.eq.f32.partialorder %v407, 8.507059e+37
    %v409 = vand.u32 %v322, 2147483648
    %v410 = vor.u32 1.1754944e-38, %v409
    %v411 = vsel %vm408, %v410, %v406
    %v412 = vmul.f32 1.0, %v411
    %v413 = vmul.f32 %v287, %v337
    %v414 = vmul.f32 %v288, %v352
    %v415 = vmul.f32 %v289, %v367
    %v416 = vmul.f32 %v290, %v382
    %v417 = vmul.f32 %v291, %v397
    %v418 = vmul.f32 %v292, %v412
    %v419 = vpack.c.bf16 %v413, %v413
    %v420 = vpack.c.bf16 %v414, %v414
    %v421 = vpack.c.bf16 %v415, %v415
    %v422 = vpack.c.bf16 %v416, %v416
    %v423 = vpack.c.bf16 %v417, %v417
    %v424 = vpack.c.bf16 %v418, %v418
    %425 = vst [vmem:[%s5] sm:$0xf] %v419
    %426 = vst [vmem:[%s5 + $0x4] sm:$0xf] %v420
    %427 = vst [vmem:[%s5 + $0x8] sm:$0xf] %v421
    %428 = vst [vmem:[%s5 + $0xc] sm:$0xf] %v422
    %429 = vst [vmem:[%s5 + $0x10] sm:$0xf] %v423
    %430 = vst [vmem:[%s5 + $0x14] sm:$0x1] %v424
  $region29: #{encode_image.18} parent=0 // pred_fallthru
    _
  // Predicated region
  $region30: #{encode_image.18} parent=0 // pred_check
    _
  $region31: #{encode_image.18} parent=0 // pred_check_branch
    %432 = sbr.rel (0) target = $region33
  $region32: #{encode_image.18} parent=0 // pred_region
    _
  $region33: #{encode_image.18} parent=0 // pred_fallthru
    _
  // Predicated region
  $region34: #{encode_image.18} parent=0 // pred_check
    _
  $region35: #{encode_image.18} parent=0 // pred_check_branch
    %434 = sbr.rel (0) target = $region37
  $region36: #{encode_image.18} parent=0 // pred_region
    _
  $region37: #{encode_image.18} parent=0 // pred_fallthru
    _

// kernel: encode_image.19
$region0: #{encode_image.19}
  #allocation0 [shape = 'u32[]', space=smem, size = 0x4, offset = 0x4, fixed_abs, tag = 'smem constant byte address 0x4 - core index']
  #allocation1 [shape = 'u32[72,128]{1,0:T(1,128)}', space=vmem, size = 0x9000, scoped, tag = 'internal scratch']
  #allocation2 [shape = 'f32[42,32]{1,0:T(8,128)}', space=vmem, size = 0x6000, scoped, tag = 'scratch operand']
  %s0 = inlined_call_operand.vmem [shape: bf16[42,128], index: 0, kind: input, shape index: {}]
  %s1 = inlined_call_operand.vmem [shape: bf16[128,32], index: 1, kind: input, shape index: {}]
  %s2 = inlined_call_operand.vmem [shape: f32[1,32], index: 2, kind: input, shape index: {}]
  %s3 = inlined_call_operand.vmem [shape: bf16[42,32], index: 3, kind: input, shape index: {}]
  %s4 = inlined_call_operand.vmem [shape: bf16[42,32], index: 4, kind: output, shape index: {}]
  %s5 = sld [smem:[#allocation0]]
  $region34: #{encode_image.19} parent=0
    _
  %s7 = ssub.s32 1, %s5
  %s8 = scalar_select 0, %s7, %s5
  // Predicated region
  $region2: #{encode_image.19} parent=0 // pred_check
    _
  $region3: #{encode_image.19} parent=0 // pred_check_branch
    %10 = sbr.rel (0) target = $region5
  $region4: #{encode_image.19} parent=0 // pred_region
    _
  $region5: #{encode_image.19} parent=0 // pred_fallthru
    _
  // Predicated region
  $region6: #{encode_image.19} parent=0 // pred_check
    _
  $region7: #{encode_image.19} parent=0 // pred_check_branch
    %12 = sbr.rel (0) target = $region9
  $region8: #{encode_image.19} parent=0 // pred_region
    _
  $region9: #{encode_image.19} parent=0 // pred_fallthru
    _
  // Predicated region
  $region10: #{encode_image.19} parent=0 // pred_check
    _
  $region11: #{encode_image.19} parent=0 // pred_check_branch
    %14 = sbr.rel (0) target = $region13
  $region12: #{encode_image.19} parent=0 // pred_region
    _
  $region13: #{encode_image.19} parent=0 // pred_fallthru
    _
  // Predicated region
  $region14: #{encode_image.19} parent=0 // pred_check
    _
  $region15: #{encode_image.19} parent=0 // pred_check_branch
    %16 = sbr.rel (0) target = $region17
  $region16: #{encode_image.19} parent=0 // pred_region
    _
  $region17: #{encode_image.19} parent=0 // pred_fallthru
    _
  %p17 = scmp.eq.s32.totalorder 0, 0
  // Predicated region
  $region18: #{encode_image.19} parent=0 // pred_check
    %p18 = pneg %p17
  $region19: #{encode_image.19} parent=0 // pred_check_branch
    %20 = sbr.rel (%p18) target = $region21
  $region20: #{encode_image.19} parent=0 // pred_region
    %vm21 = vcmask 261120
    %22 = vst.msk [vmem:[#allocation2] sm:$0xff] %vm21, 0.0
    %23 = vst.msk [vmem:[#allocation2 + $0x8] sm:$0xff] %vm21, 0.0
    %24 = vst.msk [vmem:[#allocation2 + $0x10] sm:$0xff] %vm21, 0.0
    %25 = vst.msk [vmem:[#allocation2 + $0x18] sm:$0xff] %vm21, 0.0
    %26 = vst.msk [vmem:[#allocation2 + $0x20] sm:$0xff] %vm21, 0.0
    %vm27 = vcmask 254976
    %28 = vst.msk [vmem:[#allocation2 + $0x28] sm:$0x3] %vm27, 0.0
  $region21: #{encode_image.19} parent=0 // pred_fallthru
    _
  %v29 = vld [vmem:[%s0] sm:$0xf]
  %v30 = vld [vmem:[%s0 + $0x4] sm:$0xf]
  %v31 = vld [vmem:[%s0 + $0x8] sm:$0xf]
  %v32 = vld [vmem:[%s0 + $0xc] sm:$0xf]
  %v33 = vld [vmem:[%s0 + $0x10] sm:$0xf]
  %v34 = vld [vmem:[%s0 + $0x14] sm:$0x1]
  %v35 = vld [vmem:[#allocation2] sm:$0xff]
  %v36 = vld [vmem:[#allocation2 + $0x8] sm:$0xff]
  %v37 = vld [vmem:[#allocation2 + $0x10] sm:$0xff]
  %v38 = vld [vmem:[#allocation2 + $0x18] sm:$0xff]
  %v39 = vld [vmem:[#allocation2 + $0x20] sm:$0xff]
  %v40 = vld [vmem:[#allocation2 + $0x28] sm:$0x3]
  %v41 = vld [vmem:[%s1] sm:$0xf]
  %v42 = vld [vmem:[%s1 + $0x4] sm:$0xf]
  %v43 = vld [vmem:[%s1 + $0x8] sm:$0xf]
  %v44 = vld [vmem:[%s1 + $0xc] sm:$0xf]
  %v45 = vld [vmem:[%s1 + $0x10] sm:$0xf]
  %v46 = vld [vmem:[%s1 + $0x14] sm:$0xf]
  %v47 = vld [vmem:[%s1 + $0x18] sm:$0xf]
  %v48 = vld [vmem:[%s1 + $0x1c] sm:$0xf]
  %v49 = vld [vmem:[%s1 + $0x20] sm:$0xf]
  %v50 = vld [vmem:[%s1 + $0x24] sm:$0xf]
  %v51 = vld [vmem:[%s1 + $0x28] sm:$0xf]
  %v52 = vld [vmem:[%s1 + $0x2c] sm:$0xf]
  %v53 = vld [vmem:[%s1 + $0x30] sm:$0xf]
  %v54 = vld [vmem:[%s1 + $0x34] sm:$0xf]
  %v55 = vld [vmem:[%s1 + $0x38] sm:$0xf]
  %v56 = vld [vmem:[%s1 + $0x3c] sm:$0xf]
  %v63 = vunpack.c.l.b16 %v29
  %v64 = vunpack.c.l.b16 %v30
  %v65 = vunpack.c.l.b16 %v31
  %v66 = vunpack.c.l.b16 %v32
  %v67 = vunpack.c.l.b16 %v33
  %v68 = vunpack.c.l.b16 %v34
  %v69 = vpack.c.b16 %v64, %v63
  %v70 = vpack.c.b16 %v66, %v65
  %v71 = vpack.c.b16 %v68, %v67
  %v91 = vunpack.c.l.b16 %v41
  %v92 = vunpack.c.l.b16 %v42
  %v93 = vunpack.c.l.b16 %v43
  %v94 = vunpack.c.l.b16 %v44
  %v95 = vunpack.c.l.b16 %v45
  %v96 = vunpack.c.l.b16 %v46
  %v97 = vunpack.c.l.b16 %v47
  %v98 = vunpack.c.l.b16 %v48
  %v99 = vunpack.c.l.b16 %v49
  %v100 = vunpack.c.l.b16 %v50
  %v101 = vunpack.c.l.b16 %v51
  %v102 = vunpack.c.l.b16 %v52
  %v103 = vunpack.c.l.b16 %v53
  %v104 = vunpack.c.l.b16 %v54
  %v105 = vunpack.c.l.b16 %v55
  %v106 = vunpack.c.l.b16 %v56
  %v107 = vpack.c.b16 %v92, %v91
  %v108 = vpack.c.b16 %v94, %v93
  %v109 = vpack.c.b16 %v96, %v95
  %v110 = vpack.c.b16 %v98, %v97
  %v111 = vpack.c.b16 %v100, %v99
  %v112 = vpack.c.b16 %v102, %v101
  %v113 = vpack.c.b16 %v104, %v103
  %v114 = vpack.c.b16 %v106, %v105
  %123 = vmatpush.bf16.msra.mxu0 %v114
  %124 = vmatpush.bf16.msra.mxu0 %v113
  %125 = vmatpush.bf16.msra.mxu0 %v112
  %126 = vmatpush.bf16.msra.mxu0 %v111
  %127 = vmatpush.bf16.msra.mxu0 %v110
  %128 = vmatpush.bf16.msra.mxu0 %v109
  %129 = vmatpush.bf16.msra.mxu0 %v108
  %130 = vmatpush.bf16.msra.mxu0 %v107
  %131 = vmatmul.bf16.gmra.mxu0 %v69
  %v132 = vpop.f32.mrf.mxu0
  %v133 = vadd.f32 0.0, %v132
  %v134 = vpop.f32.mrf.mxu0
  %v135 = vadd.f32 0.0, %v134
  %136 = vmatmul.bf16.gmra.mxu0 %v70
  %v137 = vpop.f32.mrf.mxu0
  %v138 = vadd.f32 0.0, %v137
  %v139 = vpop.f32.mrf.mxu0
  %v140 = vadd.f32 0.0, %v139
  %141 = vmatmul.bf16.gmra.mxu0 %v71
  %v142 = vpop.f32.mrf.mxu0
  %v143 = vadd.f32 0.0, %v142
  %v144 = vpop.f32.mrf.mxu0
  %v145 = vadd.f32 0.0, %v144
  %146 = vdwg.mxu0
  %v147 = vadd.f32 %v35, %v133
  %v148 = vadd.f32 %v36, %v135
  %v149 = vadd.f32 %v37, %v138
  %v150 = vadd.f32 %v38, %v140
  %v151 = vadd.f32 %v39, %v143
  %v152 = vadd.f32 %v40, %v145
  %vm153 = vcmask 261120
  %154 = vst.msk [vmem:[#allocation2] sm:$0xff] %vm153, %v147
  %155 = vst.msk [vmem:[#allocation2 + $0x8] sm:$0xff] %vm153, %v148
  %156 = vst.msk [vmem:[#allocation2 + $0x10] sm:$0xff] %vm153, %v149
  %157 = vst.msk [vmem:[#allocation2 + $0x18] sm:$0xff] %vm153, %v150
  %158 = vst.msk [vmem:[#allocation2 + $0x20] sm:$0xff] %vm153, %v151
  %vm159 = vcmask 254976
  %160 = vst.msk [vmem:[#allocation2 + $0x28] sm:$0x3] %vm159, %v152
  // Predicated region
  $region22: #{encode_image.19} parent=0 // pred_check
    %p161 = pneg %p17
  $region23: #{encode_image.19} parent=0 // pred_check_branch
    %163 = sbr.rel (%p161) target = $region25
  $region24: #{encode_image.19} parent=0 // pred_region
    %v164 = vld [vmem:[#allocation2] sm:$0xff]
    %v165 = vld [vmem:[#allocation2 + $0x8] sm:$0xff]
    %v166 = vld [vmem:[#allocation2 + $0x10] sm:$0xff]
    %v167 = vld [vmem:[#allocation2 + $0x18] sm:$0xff]
    %v168 = vld [vmem:[#allocation2 + $0x20] sm:$0xff]
    %v169 = vld [vmem:[#allocation2 + $0x28] sm:$0x3]
    %v170 = vld [vmem:[%s2] sm:$0x1]
    %v172 = vperm.slane %v170, 0
    %v174 = vadd.f32 %v164, %v172
    %v175 = vadd.f32 %v165, %v172
    %v176 = vadd.f32 %v166, %v172
    %v177 = vadd.f32 %v167, %v172
    %v178 = vadd.f32 %v168, %v172
    %v179 = vadd.f32 %v169, %v172
    %v180 = vld [vmem:[%s3] sm:$0xf]
    %v181 = vld [vmem:[%s3 + $0x4] sm:$0xf]
    %v182 = vld [vmem:[%s3 + $0x8] sm:$0xf]
    %v183 = vld [vmem:[%s3 + $0xc] sm:$0xf]
    %v184 = vld [vmem:[%s3 + $0x10] sm:$0xf]
    %v185 = vld [vmem:[%s3 + $0x14] sm:$0x1]
    %v186 = vunpack.c.l.bf16 %v180
    %v187 = vunpack.c.l.bf16 %v181
    %v188 = vunpack.c.l.bf16 %v182
    %v189 = vunpack.c.l.bf16 %v183
    %v190 = vunpack.c.l.bf16 %v184
    %v191 = vunpack.c.l.bf16 %v185
    %v192 = vadd.f32 %v174, %v186
    %v193 = vadd.f32 %v175, %v187
    %v194 = vadd.f32 %v176, %v188
    %v195 = vadd.f32 %v177, %v189
    %v196 = vadd.f32 %v178, %v190
    %v197 = vadd.f32 %v179, %v191
    %v198 = vpack.c.bf16 %v192, %v192
    %v199 = vpack.c.bf16 %v193, %v193
    %v200 = vpack.c.bf16 %v194, %v194
    %v201 = vpack.c.bf16 %v195, %v195
    %v202 = vpack.c.bf16 %v196, %v196
    %v203 = vpack.c.bf16 %v197, %v197
    %vm204 = vcmask 257024
    %205 = vst.msk [vmem:[%s4] sm:$0xf] %vm204, %v198
    %206 = vst.msk [vmem:[%s4 + $0x4] sm:$0xf] %vm204, %v199
    %207 = vst.msk [vmem:[%s4 + $0x8] sm:$0xf] %vm204, %v200
    %208 = vst.msk [vmem:[%s4 + $0xc] sm:$0xf] %vm204, %v201
    %209 = vst.msk [vmem:[%s4 + $0x10] sm:$0xf] %vm204, %v202
    %vm210 = vcmask 253952
    %211 = vst.msk [vmem:[%s4 + $0x14] sm:$0x1] %vm210, %v203
  $region25: #{encode_image.19} parent=0 // pred_fallthru
    _
  // Predicated region
  $region26: #{encode_image.19} parent=0 // pred_check
    _
  $region27: #{encode_image.19} parent=0 // pred_check_branch
    %213 = sbr.rel (0) target = $region29
  $region28: #{encode_image.19} parent=0 // pred_region
    _
  $region29: #{encode_image.19} parent=0 // pred_fallthru
    _
  // Predicated region
  $region30: #{encode_image.19} parent=0 // pred_check
    _
  $region31: #{encode_image.19} parent=0 // pred_check_branch
    %215 = sbr.rel (0) target = $region33
  $region32: #{encode_image.19} parent=0 // pred_region
    _
  $region33: #{encode_image.19} parent=0 // pred_fallthru
    _

// kernel: encode_image.25
$region0: #{encode_image.25}
  #allocation0 [shape = 'u32[]', space=smem, size = 0x4, offset = 0x4, fixed_abs, tag = 'smem constant byte address 0x4 - core index']
  #allocation1 [shape = 'u32[72,128]{1,0:T(1,128)}', space=vmem, size = 0x9000, scoped, tag = 'internal scratch']
  #allocation2 [shape = 'f32[2,16]{1,0:T(2,128)}', space=vmem, size = 0x400, scoped, tag = 'scratch operand']
  %s0 = inlined_call_operand.vmem [shape: bf16[2,32], index: 0, kind: input, shape index: {}]
  %s1 = inlined_call_operand.vmem [shape: bf16[32,16], index: 1, kind: input, shape index: {}]
  %s2 = inlined_call_operand.vmem [shape: f32[1,32], index: 2, kind: input, shape index: {}]
  %s3 = inlined_call_operand.vmem [shape: f32[1,32], index: 3, kind: input, shape index: {}]
  %s4 = inlined_call_operand.hbm [shape: f32[2,16], index: 4, kind: output, shape index: {}]
  %s5 = sld [smem:[#allocation0]]
  $region34: #{encode_image.25} parent=0
    _
  %s7 = ssub.s32 1, %s5
  %s8 = scalar_select 0, %s7, %s5
  $region1: #{encode_image.25} parent=0
    #allocation3 [shape = 'u8[1024]{0}', space=vmem, size = 0x400, scoped, tag = 'output window, operand 0, single buffered']
    #allocation4 [shape = 's32[1]{0}', space=sflag, size = 0x4, scoped, tag = 'scoped memory for encode_image.25']
    %9 = vsyncpa [#allocation4], 0
    // Predicated region
    $region2: #{encode_image.25} parent=1 // pred_check
      _
    $region3: #{encode_image.25} parent=1 // pred_check_branch
      %11 = sbr.rel (0) target = $region5
    $region4: #{encode_image.25} parent=1 // pred_region
      _
    $region5: #{encode_image.25} parent=1 // pred_fallthru
      _
    // Predicated region
    $region6: #{encode_image.25} parent=1 // pred_check
      _
    $region7: #{encode_image.25} parent=1 // pred_check_branch
      %13 = sbr.rel (0) target = $region9
    $region8: #{encode_image.25} parent=1 // pred_region
      _
    $region9: #{encode_image.25} parent=1 // pred_fallthru
      _
    // Predicated region
    $region10: #{encode_image.25} parent=1 // pred_check
      _
    $region11: #{encode_image.25} parent=1 // pred_check_branch
      %15 = sbr.rel (0) target = $region13
    $region12: #{encode_image.25} parent=1 // pred_region
      _
    $region13: #{encode_image.25} parent=1 // pred_fallthru
      _
    // Predicated region
    $region14: #{encode_image.25} parent=1 // pred_check
      _
    $region15: #{encode_image.25} parent=1 // pred_check_branch
      %17 = sbr.rel (0) target = $region17
    $region16: #{encode_image.25} parent=1 // pred_region
      _
    $region17: #{encode_image.25} parent=1 // pred_fallthru
      _
    %p19 = scmp.eq.s32.totalorder 0, 0
    // Predicated region
    $region18: #{encode_image.25} parent=1 // pred_check
      %p20 = pneg %p19
    $region19: #{encode_image.25} parent=1 // pred_check_branch
      %22 = sbr.rel (%p20) target = $region21
    $region20: #{encode_image.25} parent=1 // pred_region
      %vm23 = vcmask 123904
      %24 = vst.msk [vmem:[#allocation2] sm:$0x3] %vm23, 0.0
    $region21: #{encode_image.25} parent=1 // pred_fallthru
      _
    %v25 = vld [vmem:[%s0] sm:$0x1]
    %v26 = vunpack.c.l.bf16 %v25
    %vm27 = vcmask 254976
    %v28 = vsel %vm27, %v26, 0.0
    %29 = vadd.xlane.f32.xlu0 %v28
    %v30 = vpop.xlane.xlu0 %29
    %v31 = vrcp.pop 32.0
    %v32 = vmul.f32 32.0, %v31
    %v33 = vsub.f32 1.0, %v32
    %v34 = vmul.f32 %v31, %v33
    %v35 = vadd.f32 %v31, %v34
    %vm36 = vweird.f32 %v31
    %v37 = vsel %vm36, %v31, %v35
    %v38 = vmul.f32 %v30, %v37
    %v39 = vsub.f32 %v26, %v38
    %v40 = vmul.f32 %v39, %v39
    %v41 = vsel %vm27, %v40, 0.0
    %42 = vadd.xlane.f32.xlu0 %v41
    %v43 = vpop.xlane.xlu0 %42
    %v44 = vmul.f32 %v43, %v37
    %v45 = vadd.f32 %v44, 1e-05
    %v46 = vrsqrt.pop %v45
    %v47 = vmul.f32 %v46, %v45
    %v48 = vmul.f32 %v47, %v46
    %v49 = vmul.f32 0.5, %v48
    %v50 = vsub.f32 1.5, %v49
    %v51 = vmul.f32 %v46, %v50
    %vm52 = vweird.f32 %v45
    %vm53 = vweird.f32 %v46
    %vm54 = vmor %vm52, %vm53
    %v55 = vsel %vm54, %v46, %v51
    %v56 = vmul.f32 %v39, %v55
    %v57 = vld [vmem:[%s2] sm:$0x1]
    %v59 = vperm.slane %v57, 0
    %v61 = vmul.f32 %v56, %v59
    %v62 = vld [vmem:[%s3] sm:$0x1]
    %v64 = vperm.slane %v62, 0
    %v66 = vadd.f32 %v61, %v64
    %v67 = vpack.c.bf16 %v66, %v66
    %v68 = vld [vmem:[#allocation2] sm:$0x3]
    %v69 = vld [vmem:[%s1] sm:$0xf]
    %v70 = vld [vmem:[%s1 + $0x4] sm:$0xf]
    %v71 = vld [vmem:[%s1 + $0x8] sm:$0xf]
    %v72 = vld [vmem:[%s1 + $0xc] sm:$0xf]
    %v77 = vunpack.c.l.b16 %v69
    %v78 = vunpack.c.l.b16 %v70
    %v79 = vunpack.c.l.b16 %v71
    %v80 = vunpack.c.l.b16 %v72
    %v81 = vpack.c.b16 %v78, %v77
    %v82 = vpack.c.b16 %v80, %v79
    %vm85 = vcmask 261120
    %v87 = vsel %vm85, %v67, 0
    %89 = vmatpush.bf16.msra.mxu0 0
    %90 = vmatpush.bf16.msra.mxu0 0
    %91 = vmatpush.bf16.msra.mxu0 0
    %92 = vmatpush.bf16.msra.mxu0 0
    %93 = vmatpush.bf16.msra.mxu0 0
    %94 = vmatpush.bf16.msra.mxu0 0
    %95 = vmatpush.bf16.msra.mxu0 %v82
    %96 = vmatpush.bf16.msra.mxu0 %v81
    %97 = vmatmul.bf16.gmra.mxu0 %v87
    %v98 = vpop.f32.mrf.mxu0
    %v99 = vadd.f32 0.0, %v98
    %v100 = vpop.f32.mrf.mxu0
    %101 = vdwg.mxu0
    %v102 = vadd.f32 %v68, %v99
    %vm103 = vcmask 123904
    %104 = vst.msk [vmem:[#allocation2] sm:$0x3] %vm103, %v102
    // Predicated region
    $region22: #{encode_image.25} parent=1 // pred_check
      %p105 = pneg %p19
    $region23: #{encode_image.25} parent=1 // pred_check_branch
      %107 = sbr.rel (%p105) target = $region25
    $region24: #{encode_image.25} parent=1 // pred_region
      %v108 = vld [vmem:[#allocation2] sm:$0x3]
      %109 = vst.msk [vmem:[#allocation3] sm:$0x3] %vm103, %v108
    $region25: #{encode_image.25} parent=1 // pred_fallthru
      _
    // Predicated region
    $region26: #{encode_image.25} parent=1 // pred_check
      _
    $region27: #{encode_image.25} parent=1 // pred_check_branch
      %111 = sbr.rel (0) target = $region29
    $region28: #{encode_image.25} parent=1 // pred_region
      %113 = vsyncadd [#allocation4], 0
      %s115 = sshll.u32 [#allocation3], 4
      %s116 = int_to_ptr.vmem [resolvable:$true] %s115
      %s117 = sshll.u32 %s4, 4
      %s118 = int_to_ptr.hbm [resolvable:$true] %s117
      %120 = dma.vmem_to_hbm [thread:$0]  %s116, 32, %s118, [#allocation4]
    $region29: #{encode_image.25} parent=1 // pred_fallthru
      _
    // Predicated region
    $region30: #{encode_image.25} parent=1 // pred_check
      _
    $region31: #{encode_image.25} parent=1 // pred_check_branch
      %122 = sbr.rel (0) target = $region33
    $region32: #{encode_image.25} parent=1 // pred_region
      %124 = dma.done [#allocation4], 32
    $region33: #{encode_image.25} parent=1 // pred_fallthru
      _
    %125 = vsyncpa [#allocation4], 1

</llo_original>
